<compile_context>
chip_gen: v6e
topology: v6e:2x2x1
jax: 0.10.0
libtpu: 0.0.40
codegen_flags: <defaults>
</compile_context>

<pallas_src>
import jax
import jax.numpy as jnp
import numpy as np
from jax import lax
from jax.experimental import pallas as pl
from jax.experimental.pallas import tpu as pltpu

# ----------------- synthetic FalconH1 config (small) -----------------
HIDDEN = 32                      # config.hidden_size
MAMBA_EXPAND = 2                 # config.mamba_expand
D_SSM = MAMBA_EXPAND * HIDDEN    # 64   (config.mamba_d_ssm is None)
D_STATE = 16                     # config.mamba_d_state
D_CONV = 4                       # config.mamba_d_conv
N_GROUPS = 1                     # config.mamba_n_groups
N_HEADS = 4                      # config.mamba_n_heads
HEAD_DIM = D_SSM // N_HEADS      # 16   (config.mamba_d_head)
RMS_EPS = 1e-5                   # config.rms_norm_eps
SSM_MULTIPLIERS = (0.25, 0.5, 1.0, 2.0, 4.0)   # config.ssm_multipliers (z,x,B,C,dt)
GSS = N_GROUPS * D_STATE                       # groups_time_state_size
CONV_DIM = D_SSM + 2 * GSS                     # 96
PROJ_DIM = 2 * D_SSM + 2 * GSS + N_HEADS       # 164

SEQ = 256        # tokens (vLLM flattened-token layout); 2 chunks -> carry exercised
CHUNK = 128      # tokens per grid step (128-256 sweet spot; cap ~256 on v7x 64MiB)
CONV_TAIL = 8    # sublane-aligned conv halo carried between chunks (>= D_CONV-1)

# bf16 decay path (exp / multiply of the (T,T) decay matrix) - v6e/v7x have
# bf16 VPU+EUP.  Set False on v5e (no bf16 VPU/EUP there).
DECAY_IN_BF16 = True


def _softplus(x):
    return jnp.where(x > 20.0, x, jnp.log(1.0 + jnp.exp(x)))


def _silu_kernel(x):
    # x * sigmoid(x); exp -> EUP, approx reciprocal -> EUP, keeps divide off VALU.
    return x * pl.reciprocal(1.0 + jnp.exp(-x), approx=True)


def _silu_ref(x):
    return x * jax.nn.sigmoid(x)


def _rep_heads(v):
    """(rows, N_HEADS) -> (rows, N_HEADS*HEAD_DIM): each head's value repeated
    HEAD_DIM times along lanes.  Implemented as per-head lane broadcast + one
    concat (avoids a minor-dims reshape relayout; for real configs with
    HEAD_DIM a multiple of 128 lanes this becomes a free vreg-boundary concat)."""
    rows = v.shape[0]
    return jnp.concatenate(
        [jnp.broadcast_to(v[:, h:h + 1], (rows, HEAD_DIM)) for h in range(N_HEADS)],
        axis=1)


# ======================= Pallas kernel =======================
def _falcon_h1_ssm_kernel(hs_ref,
                          w_zdt_ref, w_x_ref, w_bc_ref,
                          conv_wx_ref, conv_bx_ref, conv_wbc_ref, conv_bbc_ref,
                          dt_bias_ref, a_ref, d_ref, norm_w_ref, w_out_ref,
                          out_ref,
                          state_scr, x_tail_scr, bc_tail_scr):
    f32 = jnp.float32
    bf16 = jnp.bfloat16
    T = hs_ref.shape[0]

    # ---- chunk 0: zero the carried SSM state and the conv halos ----
    @pl.when(pl.program_id(0) == 0)
    def _():
        state_scr[...] = jnp.zeros_like(state_scr)
        x_tail_scr[...] = jnp.zeros_like(x_tail_scr)
        bc_tail_scr[...] = jnp.zeros_like(bc_tail_scr)

    hs_bf = hs_ref[...].astype(bf16)

    # ---- in_proj (mup folded into weights offline; z|dt fused, x / B|C split) ----
    zdt = jnp.dot(hs_bf, w_zdt_ref[...], preferred_element_type=f32)    # (T, D_SSM+H)
    z = zdt[:, :D_SSM]                                                  # (T, D_SSM)
    dt = zdt[:, D_SSM:]                                                 # (T, H) f32
    x_pre = jnp.dot(hs_bf, w_x_ref[...], preferred_element_type=f32)    # (T, D_SSM)
    bc_pre = jnp.dot(hs_bf, w_bc_ref[...], preferred_element_type=f32)  # (T, 2*GSS)

    # ---- causal depthwise conv along time: halo + shifted VPU FMAs ----
    # TODO(synk): for large CONV_DIM, route the misaligned taps through
    # pltpu.roll(ext, shift, axis=0) + an aligned slice (XLU instead of VPU).
    def depthwise_conv(pre, tail_scr, w_ref, b_ref):
        ext = jnp.concatenate([tail_scr[...], pre], axis=0)             # (TAIL+T, C)
        acc = b_ref[...]
        for k in range(D_CONV):
            start = CONV_TAIL - (D_CONV - 1) + k
            acc = acc + ext[start:start + T, :] * w_ref[k:k + 1, :]
        tail_scr[...] = pre[T - CONV_TAIL:, :]     # pre-activation halo for next chunk
        return _silu_kernel(acc)

    x_all = depthwise_conv(x_pre, x_tail_scr, conv_wx_ref, conv_bx_ref)       # (T, D_SSM)
    bc_act = depthwise_conv(bc_pre, bc_tail_scr, conv_wbc_ref, conv_bbc_ref)  # (T, 2*GSS)
    b_all = bc_act[:, :GSS]
    c_all = bc_act[:, GSS:]

    # ---- dt discretization, all heads at once (f32: feeds exponentials) ----
    dt_sp = _softplus(dt + dt_bias_ref[...])          # (T, H)
    a_step = dt_sp * a_ref[...]                       # (T, H),  a = -exp(A_log) <= 0

    # inclusive cumulative log-decay: log-step prefix sum (no (T,T) temp, no MXU)
    cs = a_step
    off = 1
    while off < T:
        cs = cs + jnp.concatenate(
            [jnp.zeros((off, N_HEADS), f32), cs], axis=0)[:T, :]
        off *= 2
    cs_row = cs.T                                     # (H, T) for the decay row term
    cs_last = cs[T - 1:T, :]                          # (1, H)

    # head-repeated per-token factors, computed once and shared by all heads
    xdt = x_all * _rep_heads(dt_sp)                                   # (T, D_SSM)
    xdt_bf = xdt.astype(bf16)
    xw_bf = (xdt * _rep_heads(jnp.exp(cs_last - cs))).astype(bf16)    # state-upd weight
    ecs_rep = _rep_heads(jnp.exp(cs))                                 # (T, D_SSM)

    # causal mask shared by all heads
    row = lax.broadcasted_iota(jnp.int32, (T, T), 0)
    col = lax.broadcasted_iota(jnp.int32, (T, T), 1)
    causal = col <= row

    state_old = state_scr[...]                        # (S, H*hd) f32
    heads_per_group = N_HEADS // N_GROUPS
    gcols = heads_per_group * HEAD_DIM

    y_cols, inter_cols, upd_cols = [], [], []
    # TODO(synk): switch to lax.fori_loop(..., unroll=k) + an accumulator once
    # head count grows beyond the toy H=4 (bounds live ranges of (T,T) temps).
    for g in range(N_GROUPS):
        b_g_bf = b_all[:, g * D_STATE:(g + 1) * D_STATE].astype(bf16)   # (T, S)
        c_g_bf = c_all[:, g * D_STATE:(g + 1) * D_STATE].astype(bf16)   # (T, S)
        c0 = g * gcols

        # shared across the group's heads: cb[t, s] = C_t . B_s
        cb = lax.dot_general(c_g_bf, b_g_bf, (((1,), (1,)), ((), ())),
                             preferred_element_type=f32)                # (T, T)
        cb_bf = cb.astype(bf16)

        # inter-chunk read-out and state update, batched over the group's heads
        inter_cols.append(
            jnp.dot(c_g_bf, state_old[:, c0:c0 + gcols].astype(bf16),
                    preferred_element_type=f32))                        # (T, gcols)
        upd_cols.append(
            lax.dot_general(b_g_bf, xw_bf[:, c0:c0 + gcols],
                            (((0,), (0,)), ((), ())),
                            preferred_element_type=f32))                # (S, gcols)

        # intra-chunk decay matmuls (decay matrix differs per head)
        for hh in range(heads_per_group):
            h = g * heads_per_group + hh
            seg = jnp.where(causal, cs[:, h:h + 1] - cs_row[h:h + 1, :], -1e30)
            if DECAY_IN_BF16:
                m_bf = cb_bf * jnp.exp(seg.astype(bf16))
            else:  # v5e: keep the exp / multiply in f32
                m_bf = (cb * jnp.exp(seg)).astype(bf16)
            y_cols.append(
                jnp.dot(m_bf, xdt_bf[:, h * HEAD_DIM:(h + 1) * HEAD_DIM],
                        preferred_element_type=f32))                    # (T, hd)

    # carried-state update for the next chunk (lane-dense (S, H*hd) store)
    state_scr[...] = (_rep_heads(jnp.exp(cs_last)) * state_old
                      + jnp.concatenate(upd_cols, axis=1))

    # ---- assemble heads in registers + inter-chunk contribution + D skip ----
    y = (jnp.concatenate(y_cols, axis=1)
         + ecs_rep * jnp.concatenate(inter_cols, axis=1)
         + d_ref[...] * x_all)                                          # (T, D_SSM)

    # ---- gated RMSNorm (Mixer2RMSNormGated) + out_proj, one full-width store ----
    gated = y * _silu_kernel(z)
    var = jnp.mean(gated * gated, axis=-1, keepdims=True)
    normed = gated * lax.rsqrt(var + RMS_EPS) * norm_w_ref[...]
    # TODO(synk): HIDDEN=32 -> masked partial vst; for real configs keep
    # hidden >= 128 on the lane axis (or store bf16) for lane-dense writeback.
    out_ref[...] = jnp.dot(normed.astype(bf16), w_out_ref[...],
                           preferred_element_type=f32)


# ======================= wrapper =======================
@jax.jit
def falcon_h1_ssm_decoder_layer(hidden_states, residual, params):
    """Equivalent of FalconH1SSMDecoderLayer.forward -> (output, residual)."""
    seq, hidden = hidden_states.shape
    assert seq % CHUNK == 0 and CHUNK % 8 == 0 and CHUNK >= CONV_TAIL
    n_chunks = seq // CHUNK

    tok_spec = pl.BlockSpec((CHUNK, hidden), lambda c: (c, 0))

    def resident(arr):
        # full-array block, constant index map -> loaded once, stays in VMEM.
        # TODO(synk): for real FalconH1 sizes stream in_proj/out_proj in
        # 256-wide N tiles (pl.Buffered) instead of keeping them resident,
        # and consider pipeline_mode=pl.Buffered(1) for small resident weights
        # on v7x (64 MiB VMEM).
        return pl.BlockSpec(arr.shape, lambda c: (0,) * arr.ndim)

    weights = (params['w_zdt'], params['w_x'], params['w_bc'],
               params['conv_w_x'], params['conv_b_x'],
               params['conv_w_bc'], params['conv_b_bc'],
               params['dt_bias'], params['a_heads'], params['d_vec'],
               params['norm_w'], params['w_out'])

    out = pl.pallas_call(
        _falcon_h1_ssm_kernel,
        out_shape=jax.ShapeDtypeStruct((seq, hidden), jnp.float32),
        grid=(n_chunks,),
        in_specs=[tok_spec] + [resident(w) for w in weights],
        out_specs=tok_spec,
        scratch_shapes=[
            pltpu.VMEM((D_STATE, N_HEADS * HEAD_DIM), jnp.float32),  # SSM state carry
            pltpu.VMEM((CONV_TAIL, D_SSM), jnp.float32),             # x conv halo
            pltpu.VMEM((CONV_TAIL, 2 * GSS), jnp.float32),           # B|C conv halo
        ],
        compiler_params=pltpu.CompilerParams(
            # The token-chunk axis carries state -> must stay sequential.
            # TODO(synk): to use both v7x TensorCores, add an independent
            # (batch / sequence-group) "parallel" leading grid axis with
            # per-core scratch.
            dimension_semantics=("arbitrary",),
            # v7x-safe (64 MiB physical); raise to ~64-100 MiB on v5e/v6e if
            # pushing CHUNK toward 512.
            vmem_limit_bytes=32 * 1024 * 1024,
        ),
    )(hidden_states, *weights)
    return out, residual


# ======================= parameter init (deterministic) =======================
def make_params(key):
    keys = jax.random.split(key, 7)
    w_in = jax.random.normal(keys[0], (HIDDEN, PROJ_DIM), jnp.float32) * 0.05
    conv_w = jax.random.normal(keys[1], (D_CONV, CONV_DIM), jnp.float32) * 0.2
    conv_b = jax.random.normal(keys[2], (1, CONV_DIM), jnp.float32) * 0.1
    dt_bias = jax.random.normal(keys[3], (1, N_HEADS), jnp.float32) * 0.1
    a_log = jnp.log(jnp.arange(1, N_HEADS + 1, dtype=jnp.float32))
    a_heads = -jnp.exp(a_log)                                   # (H,)
    d_heads = 1.0 + 0.1 * jax.random.normal(keys[4], (N_HEADS,), jnp.float32)
    norm_w = 1.0 + 0.1 * jax.random.normal(keys[5], (1, D_SSM), jnp.float32)
    w_out = jax.random.normal(keys[6], (D_SSM, HIDDEN), jnp.float32) * 0.05

    # FalconH1 mup vector [ z | x | B | C | dt ] (tp_size == 1), folded into the
    # in_proj weight columns offline (static weight transform, not a runtime op).
    m = SSM_MULTIPLIERS
    mup = jnp.concatenate([
        jnp.full((D_SSM,), m[0], jnp.float32),
        jnp.full((D_SSM,), m[1], jnp.float32),
        jnp.full((GSS,), m[2], jnp.float32),
        jnp.full((GSS,), m[3], jnp.float32),
        jnp.full((N_HEADS,), m[4], jnp.float32),
    ])[None, :]
    w_in = w_in * mup
    w_z = w_in[:, :D_SSM]
    w_x = w_in[:, D_SSM:2 * D_SSM]
    w_bc = w_in[:, 2 * D_SSM:2 * D_SSM + 2 * GSS]
    w_dt = w_in[:, 2 * D_SSM + 2 * GSS:]

    return dict(
        # bf16 MXU operands (f32 accumulation in kernel); softplus/decay math f32.
        w_zdt=jnp.concatenate([w_z, w_dt], axis=1).astype(jnp.bfloat16),
        w_x=w_x.astype(jnp.bfloat16),
        w_bc=w_bc.astype(jnp.bfloat16),
        w_out=w_out.astype(jnp.bfloat16),
        conv_w_x=conv_w[:, :D_SSM], conv_b_x=conv_b[:, :D_SSM],
        conv_w_bc=conv_w[:, D_SSM:], conv_b_bc=conv_b[:, D_SSM:],
        dt_bias=dt_bias,
        a_heads=a_heads[None, :],                      # (1, H)
        d_heads=d_heads,                               # (H,)  (reference only)
        d_vec=jnp.repeat(d_heads, HEAD_DIM)[None, :],  # (1, D_SSM)
        norm_w=norm_w,
    )


# ======================= pure-JAX reference (sequential recurrence) =======================
def reference_forward(hidden_states, params):
    hp = lax.Precision.HIGHEST
    f32 = jnp.float32
    T = hidden_states.shape[0]
    w_zdt = params['w_zdt'].astype(f32)
    w_z, w_dt = w_zdt[:, :D_SSM], w_zdt[:, D_SSM:]
    w_xbc = jnp.concatenate([params['w_x'].astype(f32),
                             params['w_bc'].astype(f32)], axis=1)
    w_out = params['w_out'].astype(f32)
    conv_w = jnp.concatenate([params['conv_w_x'], params['conv_w_bc']], axis=1)
    conv_b = jnp.concatenate([params['conv_b_x'], params['conv_b_bc']], axis=1)

    z = jnp.dot(hidden_states, w_z, precision=hp)
    xbc = jnp.dot(hidden_states, w_xbc, precision=hp)
    dt = jnp.dot(hidden_states, w_dt, precision=hp)

    padded = jnp.concatenate(
        [jnp.zeros((D_CONV - 1, CONV_DIM), f32), xbc], axis=0)
    conv = conv_b
    for k in range(D_CONV):
        conv = conv + padded[k:k + T, :] * conv_w[k:k + 1, :]
    xbc_act = _silu_ref(conv)

    x = xbc_act[:, :D_SSM].reshape(T, N_HEADS, HEAD_DIM)
    B = xbc_act[:, D_SSM:D_SSM + GSS].reshape(T, N_GROUPS, D_STATE)
    C = xbc_act[:, D_SSM + GSS:].reshape(T, N_GROUPS, D_STATE)

    dt_sp = _softplus(dt + params['dt_bias'])                   # (T, H)
    A = params['a_heads'][0]                                    # (H,)
    Dh = params['d_heads']                                      # (H,)
    reps = N_HEADS // N_GROUPS

    def step(state, xs):
        x_t, B_t, C_t, dt_t = xs
        dA = jnp.exp(dt_t * A)                                  # (H,)
        Bh = jnp.repeat(B_t, reps, axis=0)                      # (H, S)
        Ch = jnp.repeat(C_t, reps, axis=0)                      # (H, S)
        dBx = (dt_t[:, None] * x_t)[:, :, None] * Bh[:, None, :]
        state = state * dA[:, None, None] + dBx
        y_t = jnp.einsum('hds,hs->hd', state, Ch, precision=hp) + Dh[:, None] * x_t
        return state, y_t.reshape(D_SSM)

    state0 = jnp.zeros((N_HEADS, HEAD_DIM, D_STATE), f32)
    _, y = lax.scan(step, state0, (x, B, C, dt_sp))

    gated = y * _silu_ref(z)
    var = jnp.mean(gated * gated, axis=-1, keepdims=True)
    normed = gated * lax.rsqrt(var + RMS_EPS) * params['norm_w']
    return jnp.dot(normed, w_out, precision=hp)


if __name__ == "__main__":
    key = jax.random.PRNGKey(0)
    k_hs, k_res, k_p = jax.random.split(key, 3)
    hidden_states = jax.random.normal(k_hs, (SEQ, HIDDEN), jnp.float32)
    residual = jax.random.normal(k_res, (SEQ, HIDDEN), jnp.float32)
    params = make_params(k_p)

    out, res = falcon_h1_ssm_decoder_layer(hidden_states, residual, params)
    out = jax.block_until_ready(out)

    ref = reference_forward(hidden_states, params)
    # bf16 MXU operands + bf16 decay path + approx-reciprocal silu (all with f32
    # accumulation) -> slightly looser tolerance than pure f32.
    np.testing.assert_allclose(np.asarray(out), np.asarray(ref),
                               rtol=2.5e-2, atol=2.5e-2)
    assert out.shape == hidden_states.shape and res.shape == residual.shape
    print("KERNEL_OK")
</pallas_src>

<mosaic_0001>
module attributes {stable_mosaic.version = 11 : i64} {
  func.func @_falcon_h1_ssm_kernel(%arg0: i32, %arg1: memref<128x32xf32, #tpu.memory_space<vmem>>, %arg2: memref<32x68xbf16, #tpu.memory_space<vmem>>, %arg3: memref<32x64xbf16, #tpu.memory_space<vmem>>, %arg4: memref<32x32xbf16, #tpu.memory_space<vmem>>, %arg5: memref<4x64xf32, #tpu.memory_space<vmem>>, %arg6: memref<1x64xf32, #tpu.memory_space<vmem>>, %arg7: memref<4x32xf32, #tpu.memory_space<vmem>>, %arg8: memref<1x32xf32, #tpu.memory_space<vmem>>, %arg9: memref<1x4xf32, #tpu.memory_space<vmem>>, %arg10: memref<1x4xf32, #tpu.memory_space<vmem>>, %arg11: memref<1x64xf32, #tpu.memory_space<vmem>>, %arg12: memref<1x64xf32, #tpu.memory_space<vmem>>, %arg13: memref<64x32xbf16, #tpu.memory_space<vmem>>, %arg14: memref<128x32xf32, #tpu.memory_space<vmem>>, %arg15: memref<16x64xf32, #tpu.memory_space<vmem>>, %arg16: memref<8x64xf32, #tpu.memory_space<vmem>>, %arg17: memref<8x32xf32, #tpu.memory_space<vmem>>) attributes {dimension_semantics = [#tpu.dimension_semantics<arbitrary>], iteration_bounds = array<i64: 2>, scalar_prefetch = 0 : i64, scratch_operands = 3 : i64, tpu.core_type = #tpu.core_type<tc>, window_params = [{transform_indices = @transform_0, window_bounds = array<i64: 128, 32>}, {pipeline_mode = #tpu.pipeline_mode<synchronous>, transform_indices = @transform_1, window_bounds = array<i64: 32, 68>}, {pipeline_mode = #tpu.pipeline_mode<synchronous>, transform_indices = @transform_2, window_bounds = array<i64: 32, 64>}, {pipeline_mode = #tpu.pipeline_mode<synchronous>, transform_indices = @transform_3, window_bounds = array<i64: 32, 32>}, {pipeline_mode = #tpu.pipeline_mode<synchronous>, transform_indices = @transform_4, window_bounds = array<i64: 4, 64>}, {pipeline_mode = #tpu.pipeline_mode<synchronous>, transform_indices = @transform_5, window_bounds = array<i64: 1, 64>}, {pipeline_mode = #tpu.pipeline_mode<synchronous>, transform_indices = @transform_6, window_bounds = array<i64: 4, 32>}, {pipeline_mode = #tpu.pipeline_mode<synchronous>, transform_indices = @transform_7, window_bounds = array<i64: 1, 32>}, {pipeline_mode = #tpu.pipeline_mode<synchronous>, transform_indices = @transform_8, window_bounds = array<i64: 1, 4>}, {pipeline_mode = #tpu.pipeline_mode<synchronous>, transform_indices = @transform_9, window_bounds = array<i64: 1, 4>}, {pipeline_mode = #tpu.pipeline_mode<synchronous>, transform_indices = @transform_10, window_bounds = array<i64: 1, 64>}, {pipeline_mode = #tpu.pipeline_mode<synchronous>, transform_indices = @transform_11, window_bounds = array<i64: 1, 64>}, {pipeline_mode = #tpu.pipeline_mode<synchronous>, transform_indices = @transform_12, window_bounds = array<i64: 64, 32>}, {transform_indices = @transform_13, window_bounds = array<i64: 128, 32>}]} {
    %c0_i32 = arith.constant 0 : i32
    %0 = arith.cmpi eq, %arg0, %c0_i32 : i32
    %1 = arith.extui %0 : i1 to i32
    %c0_i32_0 = arith.constant 0 : i32
    %2 = arith.cmpi ne, %1, %c0_i32_0 : i32
    scf.if %2 {
      %cst_81 = arith.constant 0.000000e+00 : f32
      %280 = vector.broadcast %cst_81 : f32 to vector<16x64xf32>
      %c0_82 = arith.constant 0 : index
      %c0_83 = arith.constant 0 : index
      %281 = vector.load %arg15[%c0_82, %c0_83] : memref<16x64xf32, #tpu.memory_space<vmem>>, vector<16x64xf32>
      tpu.vector_store %arg15[%c0_82, %c0_83], %280 {strides = array<i32>} : memref<16x64xf32, #tpu.memory_space<vmem>>, vector<16x64xf32>,
      %cst_84 = arith.constant 0.000000e+00 : f32
      %282 = vector.broadcast %cst_84 : f32 to vector<8x64xf32>
      %c0_85 = arith.constant 0 : index
      %c0_86 = arith.constant 0 : index
      %283 = vector.load %arg16[%c0_85, %c0_86] : memref<8x64xf32, #tpu.memory_space<vmem>>, vector<8x64xf32>
      tpu.vector_store %arg16[%c0_85, %c0_86], %282 {strides = array<i32>} : memref<8x64xf32, #tpu.memory_space<vmem>>, vector<8x64xf32>,
      %cst_87 = arith.constant 0.000000e+00 : f32
      %284 = vector.broadcast %cst_87 : f32 to vector<8x32xf32>
      %c0_88 = arith.constant 0 : index
      %c0_89 = arith.constant 0 : index
      %285 = vector.load %arg17[%c0_88, %c0_89] : memref<8x32xf32, #tpu.memory_space<vmem>>, vector<8x32xf32>
      tpu.vector_store %arg17[%c0_88, %c0_89], %284 {strides = array<i32>} : memref<8x32xf32, #tpu.memory_space<vmem>>, vector<8x32xf32>,
    } else {
    }
    %c0 = arith.constant 0 : index
    %c0_1 = arith.constant 0 : index
    %3 = vector.load %arg1[%c0, %c0_1] : memref<128x32xf32, #tpu.memory_space<vmem>>, vector<128x32xf32>
    %4 = arith.truncf %3 : vector<128x32xf32> to vector<128x32xbf16>
    %c0_2 = arith.constant 0 : index
    %c0_3 = arith.constant 0 : index
    %5 = vector.load %arg2[%c0_2, %c0_3] : memref<32x68xbf16, #tpu.memory_space<vmem>>, vector<32x68xbf16>
    %cst = arith.constant dense<0.000000e+00> : vector<128x68xf32>
    %6 = tpu.matmul %4, %5, %cst {dimension_numbers = #tpu.dot_dimension_numbers<[1], [0], [0], [1], [0, 0, 1, 1], [], []>} : vector<128x32xbf16>, vector<32x68xbf16>, vector<128x68xf32> -> vector<128x68xf32>
    %7 = vector.extract_strided_slice %6 {offsets = [0, 0], sizes = [128, 64], strides = [1, 1]} : vector<128x68xf32> to vector<128x64xf32>
    %8 = vector.extract_strided_slice %6 {offsets = [0, 64], sizes = [128, 4], strides = [1, 1]} : vector<128x68xf32> to vector<128x4xf32>
    %c0_4 = arith.constant 0 : index
    %c0_5 = arith.constant 0 : index
    %9 = vector.load %arg3[%c0_4, %c0_5] : memref<32x64xbf16, #tpu.memory_space<vmem>>, vector<32x64xbf16>
    %cst_6 = arith.constant dense<0.000000e+00> : vector<128x64xf32>
    %10 = tpu.matmul %4, %9, %cst_6 {dimension_numbers = #tpu.dot_dimension_numbers<[1], [0], [0], [1], [0, 0, 1, 1], [], []>} : vector<128x32xbf16>, vector<32x64xbf16>, vector<128x64xf32> -> vector<128x64xf32>
    %c0_7 = arith.constant 0 : index
    %c0_8 = arith.constant 0 : index
    %11 = vector.load %arg4[%c0_7, %c0_8] : memref<32x32xbf16, #tpu.memory_space<vmem>>, vector<32x32xbf16>
    %cst_9 = arith.constant dense<0.000000e+00> : vector<128x32xf32>
    %12 = tpu.matmul %4, %11, %cst_9 {dimension_numbers = #tpu.dot_dimension_numbers<[1], [0], [0], [1], [0, 0, 1, 1], [], []>} : vector<128x32xbf16>, vector<32x32xbf16>, vector<128x32xf32> -> vector<128x32xf32>
    %c0_10 = arith.constant 0 : index
    %c0_11 = arith.constant 0 : index
    %13 = vector.load %arg16[%c0_10, %c0_11] : memref<8x64xf32, #tpu.memory_space<vmem>>, vector<8x64xf32>
    %14 = tpu.concatenate %13, %10 in 0 : vector<8x64xf32>, vector<128x64xf32> -> vector<136x64xf32>
    %c0_12 = arith.constant 0 : index
    %c0_13 = arith.constant 0 : index
    %15 = vector.load %arg6[%c0_12, %c0_13] : memref<1x64xf32, #tpu.memory_space<vmem>>, vector<1x64xf32>
    %16 = vector.extract_strided_slice %14 {offsets = [5, 0], sizes = [128, 64], strides = [1, 1]} : vector<136x64xf32> to vector<128x64xf32>
    %c0_14 = arith.constant 0 : index
    %c0_15 = arith.constant 0 : index
    %17 = vector.load %arg5[%c0_14, %c0_15] : memref<4x64xf32, #tpu.memory_space<vmem>>, vector<1x64xf32>
    %18 = vector.broadcast %17 : vector<1x64xf32> to vector<128x64xf32>
    %19 = arith.mulf %16, %18 : vector<128x64xf32>
    %20 = vector.broadcast %15 : vector<1x64xf32> to vector<128x64xf32>
    %21 = arith.addf %20, %19 : vector<128x64xf32>
    %22 = vector.extract_strided_slice %14 {offsets = [6, 0], sizes = [128, 64], strides = [1, 1]} : vector<136x64xf32> to vector<128x64xf32>
    %c1 = arith.constant 1 : index
    %c0_16 = arith.constant 0 : index
    %23 = vector.load %arg5[%c1, %c0_16] : memref<4x64xf32, #tpu.memory_space<vmem>>, vector<1x64xf32>
    %24 = vector.broadcast %23 : vector<1x64xf32> to vector<128x64xf32>
    %25 = arith.mulf %22, %24 : vector<128x64xf32>
    %26 = arith.addf %21, %25 : vector<128x64xf32>
    %27 = vector.extract_strided_slice %14 {offsets = [7, 0], sizes = [128, 64], strides = [1, 1]} : vector<136x64xf32> to vector<128x64xf32>
    %c2 = arith.constant 2 : index
    %c0_17 = arith.constant 0 : index
    %28 = vector.load %arg5[%c2, %c0_17] : memref<4x64xf32, #tpu.memory_space<vmem>>, vector<1x64xf32>
    %29 = vector.broadcast %28 : vector<1x64xf32> to vector<128x64xf32>
    %30 = arith.mulf %27, %29 : vector<128x64xf32>
    %31 = arith.addf %26, %30 : vector<128x64xf32>
    %32 = vector.extract_strided_slice %14 {offsets = [8, 0], sizes = [128, 64], strides = [1, 1]} : vector<136x64xf32> to vector<128x64xf32>
    %c3 = arith.constant 3 : index
    %c0_18 = arith.constant 0 : index
    %33 = vector.load %arg5[%c3, %c0_18] : memref<4x64xf32, #tpu.memory_space<vmem>>, vector<1x64xf32>
    %34 = vector.broadcast %33 : vector<1x64xf32> to vector<128x64xf32>
    %35 = arith.mulf %32, %34 : vector<128x64xf32>
    %36 = arith.addf %31, %35 : vector<128x64xf32>
    %37 = vector.extract_strided_slice %10 {offsets = [120, 0], sizes = [8, 64], strides = [1, 1]} : vector<128x64xf32> to vector<8x64xf32>
    %c0_19 = arith.constant 0 : index
    %c0_20 = arith.constant 0 : index
    %38 = vector.load %arg16[%c0_19, %c0_20] : memref<8x64xf32, #tpu.memory_space<vmem>>, vector<8x64xf32>
    tpu.vector_store %arg16[%c0_19, %c0_20], %37 {strides = array<i32>} : memref<8x64xf32, #tpu.memory_space<vmem>>, vector<8x64xf32>,
    %cst_21 = arith.constant 0.000000e+00 : f32
    %39 = vector.broadcast %cst_21 : f32 to vector<128x64xf32>
    %40 = arith.subf %39, %36 : vector<128x64xf32>
    %41 = math.exp %40 : vector<128x64xf32>
    %cst_22 = arith.constant 1.000000e+00 : f32
    %42 = vector.broadcast %cst_22 : f32 to vector<128x64xf32>
    %43 = arith.addf %42, %41 : vector<128x64xf32>
    %44 = tpu.reciprocal %43 {approx = true} : vector<128x64xf32> -> vector<128x64xf32>
    %45 = arith.mulf %36, %44 : vector<128x64xf32>
    %c0_23 = arith.constant 0 : index
    %c0_24 = arith.constant 0 : index
    %46 = vector.load %arg17[%c0_23, %c0_24] : memref<8x32xf32, #tpu.memory_space<vmem>>, vector<8x32xf32>
    %47 = tpu.concatenate %46, %12 in 0 : vector<8x32xf32>, vector<128x32xf32> -> vector<136x32xf32>
    %c0_25 = arith.constant 0 : index
    %c0_26 = arith.constant 0 : index
    %48 = vector.load %arg8[%c0_25, %c0_26] : memref<1x32xf32, #tpu.memory_space<vmem>>, vector<1x32xf32>
    %49 = vector.extract_strided_slice %47 {offsets = [5, 0], sizes = [128, 32], strides = [1, 1]} : vector<136x32xf32> to vector<128x32xf32>
    %c0_27 = arith.constant 0 : index
    %c0_28 = arith.constant 0 : index
    %50 = vector.load %arg7[%c0_27, %c0_28] : memref<4x32xf32, #tpu.memory_space<vmem>>, vector<1x32xf32>
    %51 = vector.broadcast %50 : vector<1x32xf32> to vector<128x32xf32>
    %52 = arith.mulf %49, %51 : vector<128x32xf32>
    %53 = vector.broadcast %48 : vector<1x32xf32> to vector<128x32xf32>
    %54 = arith.addf %53, %52 : vector<128x32xf32>
    %55 = vector.extract_strided_slice %47 {offsets = [6, 0], sizes = [128, 32], strides = [1, 1]} : vector<136x32xf32> to vector<128x32xf32>
    %c1_29 = arith.constant 1 : index
    %c0_30 = arith.constant 0 : index
    %56 = vector.load %arg7[%c1_29, %c0_30] : memref<4x32xf32, #tpu.memory_space<vmem>>, vector<1x32xf32>
    %57 = vector.broadcast %56 : vector<1x32xf32> to vector<128x32xf32>
    %58 = arith.mulf %55, %57 : vector<128x32xf32>
    %59 = arith.addf %54, %58 : vector<128x32xf32>
    %60 = vector.extract_strided_slice %47 {offsets = [7, 0], sizes = [128, 32], strides = [1, 1]} : vector<136x32xf32> to vector<128x32xf32>
    %c2_31 = arith.constant 2 : index
    %c0_32 = arith.constant 0 : index
    %61 = vector.load %arg7[%c2_31, %c0_32] : memref<4x32xf32, #tpu.memory_space<vmem>>, vector<1x32xf32>
    %62 = vector.broadcast %61 : vector<1x32xf32> to vector<128x32xf32>
    %63 = arith.mulf %60, %62 : vector<128x32xf32>
    %64 = arith.addf %59, %63 : vector<128x32xf32>
    %65 = vector.extract_strided_slice %47 {offsets = [8, 0], sizes = [128, 32], strides = [1, 1]} : vector<136x32xf32> to vector<128x32xf32>
    %c3_33 = arith.constant 3 : index
    %c0_34 = arith.constant 0 : index
    %66 = vector.load %arg7[%c3_33, %c0_34] : memref<4x32xf32, #tpu.memory_space<vmem>>, vector<1x32xf32>
    %67 = vector.broadcast %66 : vector<1x32xf32> to vector<128x32xf32>
    %68 = arith.mulf %65, %67 : vector<128x32xf32>
    %69 = arith.addf %64, %68 : vector<128x32xf32>
    %70 = vector.extract_strided_slice %12 {offsets = [120, 0], sizes = [8, 32], strides = [1, 1]} : vector<128x32xf32> to vector<8x32xf32>
    %c0_35 = arith.constant 0 : index
    %c0_36 = arith.constant 0 : index
    %71 = vector.load %arg17[%c0_35, %c0_36] : memref<8x32xf32, #tpu.memory_space<vmem>>, vector<8x32xf32>
    tpu.vector_store %arg17[%c0_35, %c0_36], %70 {strides = array<i32>} : memref<8x32xf32, #tpu.memory_space<vmem>>, vector<8x32xf32>,
    %cst_37 = arith.constant 0.000000e+00 : f32
    %72 = vector.broadcast %cst_37 : f32 to vector<128x32xf32>
    %73 = arith.subf %72, %69 : vector<128x32xf32>
    %74 = math.exp %73 : vector<128x32xf32>
    %cst_38 = arith.constant 1.000000e+00 : f32
    %75 = vector.broadcast %cst_38 : f32 to vector<128x32xf32>
    %76 = arith.addf %75, %74 : vector<128x32xf32>
    %77 = tpu.reciprocal %76 {approx = true} : vector<128x32xf32> -> vector<128x32xf32>
    %78 = arith.mulf %69, %77 : vector<128x32xf32>
    %79 = vector.extract_strided_slice %78 {offsets = [0, 0], sizes = [128, 16], strides = [1, 1]} : vector<128x32xf32> to vector<128x16xf32>
    %80 = vector.extract_strided_slice %78 {offsets = [0, 16], sizes = [128, 16], strides = [1, 1]} : vector<128x32xf32> to vector<128x16xf32>
    %c0_39 = arith.constant 0 : index
    %c0_40 = arith.constant 0 : index
    %81 = vector.load %arg9[%c0_39, %c0_40] : memref<1x4xf32, #tpu.memory_space<vmem>>, vector<1x4xf32>
    %82 = vector.broadcast %81 : vector<1x4xf32> to vector<128x4xf32>
    %83 = arith.addf %8, %82 : vector<128x4xf32>
    %cst_41 = arith.constant 2.000000e+01 : f32
    %84 = vector.broadcast %cst_41 : f32 to vector<128x4xf32>
    %85 = arith.cmpf ogt, %83, %84 : vector<128x4xf32>
    %86 = math.exp %83 : vector<128x4xf32>
    %cst_42 = arith.constant 1.000000e+00 : f32
    %87 = vector.broadcast %cst_42 : f32 to vector<128x4xf32>
    %88 = arith.addf %87, %86 : vector<128x4xf32>
    %89 = math.log %88 : vector<128x4xf32>
    %90 = arith.select %85, %83, %89 : vector<128x4xi1>, vector<128x4xf32>
    %c0_43 = arith.constant 0 : index
    %c0_44 = arith.constant 0 : index
    %91 = vector.load %arg10[%c0_43, %c0_44] : memref<1x4xf32, #tpu.memory_space<vmem>>, vector<1x4xf32>
    %92 = vector.broadcast %91 : vector<1x4xf32> to vector<128x4xf32>
    %93 = arith.mulf %90, %92 : vector<128x4xf32>
    %cst_45 = arith.constant 0.000000e+00 : f32
    %94 = vector.broadcast %cst_45 : f32 to vector<1x4xf32>
    %95 = tpu.concatenate %94, %93 in 0 : vector<1x4xf32>, vector<128x4xf32> -> vector<129x4xf32>
    %96 = vector.extract_strided_slice %95 {offsets = [0, 0], sizes = [128, 4], strides = [1, 1]} : vector<129x4xf32> to vector<128x4xf32>
    %97 = arith.addf %93, %96 : vector<128x4xf32>
    %cst_46 = arith.constant 0.000000e+00 : f32
    %98 = vector.broadcast %cst_46 : f32 to vector<2x4xf32>
    %99 = tpu.concatenate %98, %97 in 0 : vector<2x4xf32>, vector<128x4xf32> -> vector<130x4xf32>
    %100 = vector.extract_strided_slice %99 {offsets = [0, 0], sizes = [128, 4], strides = [1, 1]} : vector<130x4xf32> to vector<128x4xf32>
    %101 = arith.addf %97, %100 : vector<128x4xf32>
    %cst_47 = arith.constant 0.000000e+00 : f32
    %102 = vector.broadcast %cst_47 : f32 to vector<4x4xf32>
    %103 = tpu.concatenate %102, %101 in 0 : vector<4x4xf32>, vector<128x4xf32> -> vector<132x4xf32>
    %104 = vector.extract_strided_slice %103 {offsets = [0, 0], sizes = [128, 4], strides = [1, 1]} : vector<132x4xf32> to vector<128x4xf32>
    %105 = arith.addf %101, %104 : vector<128x4xf32>
    %cst_48 = arith.constant 0.000000e+00 : f32
    %106 = vector.broadcast %cst_48 : f32 to vector<8x4xf32>
    %107 = tpu.concatenate %106, %105 in 0 : vector<8x4xf32>, vector<128x4xf32> -> vector<136x4xf32>
    %108 = vector.extract_strided_slice %107 {offsets = [0, 0], sizes = [128, 4], strides = [1, 1]} : vector<136x4xf32> to vector<128x4xf32>
    %109 = arith.addf %105, %108 : vector<128x4xf32>
    %cst_49 = arith.constant 0.000000e+00 : f32
    %110 = vector.broadcast %cst_49 : f32 to vector<16x4xf32>
    %111 = tpu.concatenate %110, %109 in 0 : vector<16x4xf32>, vector<128x4xf32> -> vector<144x4xf32>
    %112 = vector.extract_strided_slice %111 {offsets = [0, 0], sizes = [128, 4], strides = [1, 1]} : vector<144x4xf32> to vector<128x4xf32>
    %113 = arith.addf %109, %112 : vector<128x4xf32>
    %cst_50 = arith.constant 0.000000e+00 : f32
    %114 = vector.broadcast %cst_50 : f32 to vector<32x4xf32>
    %115 = tpu.concatenate %114, %113 in 0 : vector<32x4xf32>, vector<128x4xf32> -> vector<160x4xf32>
    %116 = vector.extract_strided_slice %115 {offsets = [0, 0], sizes = [128, 4], strides = [1, 1]} : vector<160x4xf32> to vector<128x4xf32>
    %117 = arith.addf %113, %116 : vector<128x4xf32>
    %cst_51 = arith.constant 0.000000e+00 : f32
    %118 = vector.broadcast %cst_51 : f32 to vector<64x4xf32>
    %119 = tpu.concatenate %118, %117 in 0 : vector<64x4xf32>, vector<128x4xf32> -> vector<192x4xf32>
    %120 = vector.extract_strided_slice %119 {offsets = [0, 0], sizes = [128, 4], strides = [1, 1]} : vector<192x4xf32> to vector<128x4xf32>
    %121 = arith.addf %117, %120 : vector<128x4xf32>
    %122 = tpu.transpose %121, [1, 0] : vector<128x4xf32> -> vector<4x128xf32>
    %123 = vector.extract_strided_slice %121 {offsets = [127, 0], sizes = [1, 4], strides = [1, 1]} : vector<128x4xf32> to vector<1x4xf32>
    %124 = vector.extract_strided_slice %90 {offsets = [0, 0], sizes = [128, 1], strides = [1, 1]} : vector<128x4xf32> to vector<128x1xf32>
    %125 = vector.shape_cast %124 : vector<128x1xf32> to vector<128x1xf32>
    %126 = vector.broadcast %125 : vector<128x1xf32> to vector<128x16xf32>
    %127 = vector.extract_strided_slice %90 {offsets = [0, 1], sizes = [128, 1], strides = [1, 1]} : vector<128x4xf32> to vector<128x1xf32>
    %128 = vector.shape_cast %127 : vector<128x1xf32> to vector<128x1xf32>
    %129 = vector.broadcast %128 : vector<128x1xf32> to vector<128x16xf32>
    %130 = vector.extract_strided_slice %90 {offsets = [0, 2], sizes = [128, 1], strides = [1, 1]} : vector<128x4xf32> to vector<128x1xf32>
    %131 = vector.shape_cast %130 : vector<128x1xf32> to vector<128x1xf32>
    %132 = vector.broadcast %131 : vector<128x1xf32> to vector<128x16xf32>
    %133 = vector.extract_strided_slice %90 {offsets = [0, 3], sizes = [128, 1], strides = [1, 1]} : vector<128x4xf32> to vector<128x1xf32>
    %134 = vector.shape_cast %133 : vector<128x1xf32> to vector<128x1xf32>
    %135 = vector.broadcast %134 : vector<128x1xf32> to vector<128x16xf32>
    %136 = tpu.concatenate %126, %129, %132, %135 in 1 : vector<128x16xf32>, vector<128x16xf32>, vector<128x16xf32>, vector<128x16xf32> -> vector<128x64xf32>
    %137 = arith.mulf %45, %136 : vector<128x64xf32>
    %138 = arith.truncf %137 : vector<128x64xf32> to vector<128x64xbf16>
    %139 = vector.broadcast %123 : vector<1x4xf32> to vector<128x4xf32>
    %140 = arith.subf %139, %121 : vector<128x4xf32>
    %141 = math.exp %140 : vector<128x4xf32>
    %142 = vector.extract_strided_slice %141 {offsets = [0, 0], sizes = [128, 1], strides = [1, 1]} : vector<128x4xf32> to vector<128x1xf32>
    %143 = vector.shape_cast %142 : vector<128x1xf32> to vector<128x1xf32>
    %144 = vector.broadcast %143 : vector<128x1xf32> to vector<128x16xf32>
    %145 = vector.extract_strided_slice %141 {offsets = [0, 1], sizes = [128, 1], strides = [1, 1]} : vector<128x4xf32> to vector<128x1xf32>
    %146 = vector.shape_cast %145 : vector<128x1xf32> to vector<128x1xf32>
    %147 = vector.broadcast %146 : vector<128x1xf32> to vector<128x16xf32>
    %148 = vector.extract_strided_slice %141 {offsets = [0, 2], sizes = [128, 1], strides = [1, 1]} : vector<128x4xf32> to vector<128x1xf32>
    %149 = vector.shape_cast %148 : vector<128x1xf32> to vector<128x1xf32>
    %150 = vector.broadcast %149 : vector<128x1xf32> to vector<128x16xf32>
    %151 = vector.extract_strided_slice %141 {offsets = [0, 3], sizes = [128, 1], strides = [1, 1]} : vector<128x4xf32> to vector<128x1xf32>
    %152 = vector.shape_cast %151 : vector<128x1xf32> to vector<128x1xf32>
    %153 = vector.broadcast %152 : vector<128x1xf32> to vector<128x16xf32>
    %154 = tpu.concatenate %144, %147, %150, %153 in 1 : vector<128x16xf32>, vector<128x16xf32>, vector<128x16xf32>, vector<128x16xf32> -> vector<128x64xf32>
    %155 = arith.mulf %137, %154 : vector<128x64xf32>
    %156 = arith.truncf %155 : vector<128x64xf32> to vector<128x64xbf16>
    %157 = math.exp %121 : vector<128x4xf32>
    %158 = vector.extract_strided_slice %157 {offsets = [0, 0], sizes = [128, 1], strides = [1, 1]} : vector<128x4xf32> to vector<128x1xf32>
    %159 = vector.shape_cast %158 : vector<128x1xf32> to vector<128x1xf32>
    %160 = vector.broadcast %159 : vector<128x1xf32> to vector<128x16xf32>
    %161 = vector.extract_strided_slice %157 {offsets = [0, 1], sizes = [128, 1], strides = [1, 1]} : vector<128x4xf32> to vector<128x1xf32>
    %162 = vector.shape_cast %161 : vector<128x1xf32> to vector<128x1xf32>
    %163 = vector.broadcast %162 : vector<128x1xf32> to vector<128x16xf32>
    %164 = vector.extract_strided_slice %157 {offsets = [0, 2], sizes = [128, 1], strides = [1, 1]} : vector<128x4xf32> to vector<128x1xf32>
    %165 = vector.shape_cast %164 : vector<128x1xf32> to vector<128x1xf32>
    %166 = vector.broadcast %165 : vector<128x1xf32> to vector<128x16xf32>
    %167 = vector.extract_strided_slice %157 {offsets = [0, 3], sizes = [128, 1], strides = [1, 1]} : vector<128x4xf32> to vector<128x1xf32>
    %168 = vector.shape_cast %167 : vector<128x1xf32> to vector<128x1xf32>
    %169 = vector.broadcast %168 : vector<128x1xf32> to vector<128x16xf32>
    %170 = tpu.concatenate %160, %163, %166, %169 in 1 : vector<128x16xf32>, vector<128x16xf32>, vector<128x16xf32>, vector<128x16xf32> -> vector<128x64xf32>
    %171 = tpu.iota {dimensions = array<i32: 0>} : vector<128x128xi32>
    %172 = tpu.iota {dimensions = array<i32: 1>} : vector<128x128xi32>
    %173 = arith.cmpi sle, %172, %171 : vector<128x128xi32>
    %c0_52 = arith.constant 0 : index
    %c0_53 = arith.constant 0 : index
    %174 = vector.load %arg15[%c0_52, %c0_53] : memref<16x64xf32, #tpu.memory_space<vmem>>, vector<16x64xf32>
    %175 = arith.truncf %79 : vector<128x16xf32> to vector<128x16xbf16>
    %176 = arith.truncf %80 : vector<128x16xf32> to vector<128x16xbf16>
    %cst_54 = arith.constant dense<0.000000e+00> : vector<128x128xf32>
    %177 = tpu.matmul %176, %175, %cst_54 {dimension_numbers = #tpu.dot_dimension_numbers<[1], [1], [0], [0], [0, 0, 1, 0], [], []>} : vector<128x16xbf16>, vector<128x16xbf16>, vector<128x128xf32> -> vector<128x128xf32>
    %178 = arith.truncf %177 : vector<128x128xf32> to vector<128x128xbf16>
    %179 = arith.truncf %174 : vector<16x64xf32> to vector<16x64xbf16>
    %cst_55 = arith.constant dense<0.000000e+00> : vector<128x64xf32>
    %180 = tpu.matmul %176, %179, %cst_55 {dimension_numbers = #tpu.dot_dimension_numbers<[1], [0], [0], [1], [0, 0, 1, 1], [], []>} : vector<128x16xbf16>, vector<16x64xbf16>, vector<128x64xf32> -> vector<128x64xf32>
    %cst_56 = arith.constant dense<0.000000e+00> : vector<16x64xf32>
    %181 = tpu.matmul %175, %156, %cst_56 {dimension_numbers = #tpu.dot_dimension_numbers<[0], [0], [1], [1], [0, 1, 1, 1], [], []>} : vector<128x16xbf16>, vector<128x64xbf16>, vector<16x64xf32> -> vector<16x64xf32>
    %182 = vector.extract_strided_slice %121 {offsets = [0, 0], sizes = [128, 1], strides = [1, 1]} : vector<128x4xf32> to vector<128x1xf32>
    %183 = vector.extract_strided_slice %122 {offsets = [0, 0], sizes = [1, 128], strides = [1, 1]} : vector<4x128xf32> to vector<1x128xf32>
    %184 = vector.broadcast %182 : vector<128x1xf32> to vector<128x128xf32>
    %185 = vector.broadcast %183 : vector<1x128xf32> to vector<128x128xf32>
    %186 = arith.subf %184, %185 : vector<128x128xf32>
    %cst_57 = arith.constant -1.000000e+30 : f32
    %187 = vector.broadcast %cst_57 : f32 to vector<128x128xf32>
    %188 = arith.select %173, %186, %187 : vector<128x128xi1>, vector<128x128xf32>
    %189 = arith.truncf %188 : vector<128x128xf32> to vector<128x128xbf16>
    %190 = math.exp %189 : vector<128x128xbf16>
    %191 = arith.mulf %178, %190 : vector<128x128xbf16>
    %192 = vector.extract_strided_slice %138 {offsets = [0, 0], sizes = [128, 16], strides = [1, 1]} : vector<128x64xbf16> to vector<128x16xbf16>
    %cst_58 = arith.constant dense<0.000000e+00> : vector<128x16xf32>
    %193 = tpu.matmul %191, %192, %cst_58 {dimension_numbers = #tpu.dot_dimension_numbers<[1], [0], [0], [1], [0, 0, 1, 1], [], []>} : vector<128x128xbf16>, vector<128x16xbf16>, vector<128x16xf32> -> vector<128x16xf32>
    %194 = vector.extract_strided_slice %121 {offsets = [0, 1], sizes = [128, 1], strides = [1, 1]} : vector<128x4xf32> to vector<128x1xf32>
    %195 = vector.extract_strided_slice %122 {offsets = [1, 0], sizes = [1, 128], strides = [1, 1]} : vector<4x128xf32> to vector<1x128xf32>
    %196 = vector.broadcast %194 : vector<128x1xf32> to vector<128x128xf32>
    %197 = vector.broadcast %195 : vector<1x128xf32> to vector<128x128xf32>
    %198 = arith.subf %196, %197 : vector<128x128xf32>
    %cst_59 = arith.constant -1.000000e+30 : f32
    %199 = vector.broadcast %cst_59 : f32 to vector<128x128xf32>
    %200 = arith.select %173, %198, %199 : vector<128x128xi1>, vector<128x128xf32>
    %201 = arith.truncf %200 : vector<128x128xf32> to vector<128x128xbf16>
    %202 = math.exp %201 : vector<128x128xbf16>
    %203 = arith.mulf %178, %202 : vector<128x128xbf16>
    %204 = vector.extract_strided_slice %138 {offsets = [0, 16], sizes = [128, 16], strides = [1, 1]} : vector<128x64xbf16> to vector<128x16xbf16>
    %cst_60 = arith.constant dense<0.000000e+00> : vector<128x16xf32>
    %205 = tpu.matmul %203, %204, %cst_60 {dimension_numbers = #tpu.dot_dimension_numbers<[1], [0], [0], [1], [0, 0, 1, 1], [], []>} : vector<128x128xbf16>, vector<128x16xbf16>, vector<128x16xf32> -> vector<128x16xf32>
    %206 = vector.extract_strided_slice %121 {offsets = [0, 2], sizes = [128, 1], strides = [1, 1]} : vector<128x4xf32> to vector<128x1xf32>
    %207 = vector.extract_strided_slice %122 {offsets = [2, 0], sizes = [1, 128], strides = [1, 1]} : vector<4x128xf32> to vector<1x128xf32>
    %208 = vector.broadcast %206 : vector<128x1xf32> to vector<128x128xf32>
    %209 = vector.broadcast %207 : vector<1x128xf32> to vector<128x128xf32>
    %210 = arith.subf %208, %209 : vector<128x128xf32>
    %cst_61 = arith.constant -1.000000e+30 : f32
    %211 = vector.broadcast %cst_61 : f32 to vector<128x128xf32>
    %212 = arith.select %173, %210, %211 : vector<128x128xi1>, vector<128x128xf32>
    %213 = arith.truncf %212 : vector<128x128xf32> to vector<128x128xbf16>
    %214 = math.exp %213 : vector<128x128xbf16>
    %215 = arith.mulf %178, %214 : vector<128x128xbf16>
    %216 = vector.extract_strided_slice %138 {offsets = [0, 32], sizes = [128, 16], strides = [1, 1]} : vector<128x64xbf16> to vector<128x16xbf16>
    %cst_62 = arith.constant dense<0.000000e+00> : vector<128x16xf32>
    %217 = tpu.matmul %215, %216, %cst_62 {dimension_numbers = #tpu.dot_dimension_numbers<[1], [0], [0], [1], [0, 0, 1, 1], [], []>} : vector<128x128xbf16>, vector<128x16xbf16>, vector<128x16xf32> -> vector<128x16xf32>
    %218 = vector.extract_strided_slice %121 {offsets = [0, 3], sizes = [128, 1], strides = [1, 1]} : vector<128x4xf32> to vector<128x1xf32>
    %219 = vector.extract_strided_slice %122 {offsets = [3, 0], sizes = [1, 128], strides = [1, 1]} : vector<4x128xf32> to vector<1x128xf32>
    %220 = vector.broadcast %218 : vector<128x1xf32> to vector<128x128xf32>
    %221 = vector.broadcast %219 : vector<1x128xf32> to vector<128x128xf32>
    %222 = arith.subf %220, %221 : vector<128x128xf32>
    %cst_63 = arith.constant -1.000000e+30 : f32
    %223 = vector.broadcast %cst_63 : f32 to vector<128x128xf32>
    %224 = arith.select %173, %222, %223 : vector<128x128xi1>, vector<128x128xf32>
    %225 = arith.truncf %224 : vector<128x128xf32> to vector<128x128xbf16>
    %226 = math.exp %225 : vector<128x128xbf16>
    %227 = arith.mulf %178, %226 : vector<128x128xbf16>
    %228 = vector.extract_strided_slice %138 {offsets = [0, 48], sizes = [128, 16], strides = [1, 1]} : vector<128x64xbf16> to vector<128x16xbf16>
    %cst_64 = arith.constant dense<0.000000e+00> : vector<128x16xf32>
    %229 = tpu.matmul %227, %228, %cst_64 {dimension_numbers = #tpu.dot_dimension_numbers<[1], [0], [0], [1], [0, 0, 1, 1], [], []>} : vector<128x128xbf16>, vector<128x16xbf16>, vector<128x16xf32> -> vector<128x16xf32>
    %230 = math.exp %123 : vector<1x4xf32>
    %231 = vector.extract_strided_slice %230 {offsets = [0, 0], sizes = [1, 1], strides = [1, 1]} : vector<1x4xf32> to vector<1x1xf32>
    %232 = vector.shape_cast %231 : vector<1x1xf32> to vector<1x1xf32>
    %233 = vector.broadcast %232 : vector<1x1xf32> to vector<1x16xf32>
    %234 = vector.extract_strided_slice %230 {offsets = [0, 1], sizes = [1, 1], strides = [1, 1]} : vector<1x4xf32> to vector<1x1xf32>
    %235 = vector.shape_cast %234 : vector<1x1xf32> to vector<1x1xf32>
    %236 = vector.broadcast %235 : vector<1x1xf32> to vector<1x16xf32>
    %237 = vector.extract_strided_slice %230 {offsets = [0, 2], sizes = [1, 1], strides = [1, 1]} : vector<1x4xf32> to vector<1x1xf32>
    %238 = vector.shape_cast %237 : vector<1x1xf32> to vector<1x1xf32>
    %239 = vector.broadcast %238 : vector<1x1xf32> to vector<1x16xf32>
    %240 = vector.extract_strided_slice %230 {offsets = [0, 3], sizes = [1, 1], strides = [1, 1]} : vector<1x4xf32> to vector<1x1xf32>
    %241 = vector.shape_cast %240 : vector<1x1xf32> to vector<1x1xf32>
    %242 = vector.broadcast %241 : vector<1x1xf32> to vector<1x16xf32>
    %243 = tpu.concatenate %233, %236, %239, %242 in 1 : vector<1x16xf32>, vector<1x16xf32>, vector<1x16xf32>, vector<1x16xf32> -> vector<1x64xf32>
    %244 = vector.broadcast %243 : vector<1x64xf32> to vector<16x64xf32>
    %245 = arith.mulf %244, %174 : vector<16x64xf32>
    %246 = arith.addf %245, %181 : vector<16x64xf32>
    %c0_65 = arith.constant 0 : index
    %c0_66 = arith.constant 0 : index
    %247 = vector.load %arg15[%c0_65, %c0_66] : memref<16x64xf32, #tpu.memory_space<vmem>>, vector<16x64xf32>
    tpu.vector_store %arg15[%c0_65, %c0_66], %246 {strides = array<i32>} : memref<16x64xf32, #tpu.memory_space<vmem>>, vector<16x64xf32>,
    %248 = tpu.concatenate %193, %205, %217, %229 in 1 : vector<128x16xf32>, vector<128x16xf32>, vector<128x16xf32>, vector<128x16xf32> -> vector<128x64xf32>
    %249 = arith.mulf %170, %180 : vector<128x64xf32>
    %250 = arith.addf %248, %249 : vector<128x64xf32>
    %c0_67 = arith.constant 0 : index
    %c0_68 = arith.constant 0 : index
    %251 = vector.load %arg11[%c0_67, %c0_68] : memref<1x64xf32, #tpu.memory_space<vmem>>, vector<1x64xf32>
    %252 = vector.broadcast %251 : vector<1x64xf32> to vector<128x64xf32>
    %253 = arith.mulf %252, %45 : vector<128x64xf32>
    %254 = arith.addf %250, %253 : vector<128x64xf32>
    %cst_69 = arith.constant 0.000000e+00 : f32
    %255 = vector.broadcast %cst_69 : f32 to vector<128x64xf32>
    %256 = arith.subf %255, %7 : vector<128x64xf32>
    %257 = math.exp %256 : vector<128x64xf32>
    %cst_70 = arith.constant 1.000000e+00 : f32
    %258 = vector.broadcast %cst_70 : f32 to vector<128x64xf32>
    %259 = arith.addf %258, %257 : vector<128x64xf32>
    %260 = tpu.reciprocal %259 {approx = true} : vector<128x64xf32> -> vector<128x64xf32>
    %261 = arith.mulf %7, %260 : vector<128x64xf32>
    %262 = arith.mulf %254, %261 : vector<128x64xf32>
    %263 = arith.mulf %262, %262 : vector<128x64xf32>
    %cst_71 = arith.constant dense<0.000000e+00> : vector<128xf32>
    %264 = vector.multi_reduction <add>, %263, %cst_71 [1] : vector<128x64xf32> to vector<128xf32>
    %265 = vector.shape_cast %264 : vector<128xf32> to vector<128x1xf32>
    %cst_72 = arith.constant 6.400000e+01 : f32
    %266 = vector.broadcast %cst_72 : f32 to vector<128x1xf32>
    %267 = arith.divf %265, %266 : vector<128x1xf32>
    %cst_73 = arith.constant 9.99999974E-6 : f32
    %268 = vector.broadcast %cst_73 : f32 to vector<128x1xf32>
    %269 = arith.addf %267, %268 : vector<128x1xf32>
    %270 = math.rsqrt %269 : vector<128x1xf32>
    %271 = vector.broadcast %270 : vector<128x1xf32> to vector<128x64xf32>
    %272 = arith.mulf %262, %271 : vector<128x64xf32>
    %c0_74 = arith.constant 0 : index
    %c0_75 = arith.constant 0 : index
    %273 = vector.load %arg12[%c0_74, %c0_75] : memref<1x64xf32, #tpu.memory_space<vmem>>, vector<1x64xf32>
    %274 = vector.broadcast %273 : vector<1x64xf32> to vector<128x64xf32>
    %275 = arith.mulf %272, %274 : vector<128x64xf32>
    %276 = arith.truncf %275 : vector<128x64xf32> to vector<128x64xbf16>
    %c0_76 = arith.constant 0 : index
    %c0_77 = arith.constant 0 : index
    %277 = vector.load %arg13[%c0_76, %c0_77] : memref<64x32xbf16, #tpu.memory_space<vmem>>, vector<64x32xbf16>
    %cst_78 = arith.constant dense<0.000000e+00> : vector<128x32xf32>
    %278 = tpu.matmul %276, %277, %cst_78 {dimension_numbers = #tpu.dot_dimension_numbers<[1], [0], [0], [1], [0, 0, 1, 1], [], []>} : vector<128x64xbf16>, vector<64x32xbf16>, vector<128x32xf32> -> vector<128x32xf32>
    %c0_79 = arith.constant 0 : index
    %c0_80 = arith.constant 0 : index
    %279 = vector.load %arg14[%c0_79, %c0_80] : memref<128x32xf32, #tpu.memory_space<vmem>>, vector<128x32xf32>
    tpu.vector_store %arg14[%c0_79, %c0_80], %278 {strides = array<i32>} : memref<128x32xf32, #tpu.memory_space<vmem>>, vector<128x32xf32>,
    return
  }
  func.func @transform_0(%arg0: i32) -> (i32, i32) {
    %c0_i32 = arith.constant 0 : i32
    %c0_i32_0 = arith.constant 0 : i32
    return %arg0, %c0_i32 : i32, i32
  }
  func.func @transform_1(%arg0: i32) -> (i32, i32) {
    %c0_i32 = arith.constant 0 : i32
    %c0_i32_0 = arith.constant 0 : i32
    %c0_i32_1 = arith.constant 0 : i32
    return %c0_i32, %c0_i32_0 : i32, i32
  }
  func.func @transform_2(%arg0: i32) -> (i32, i32) {
    %c0_i32 = arith.constant 0 : i32
    %c0_i32_0 = arith.constant 0 : i32
    %c0_i32_1 = arith.constant 0 : i32
    return %c0_i32, %c0_i32_0 : i32, i32
  }
  func.func @transform_3(%arg0: i32) -> (i32, i32) {
    %c0_i32 = arith.constant 0 : i32
    %c0_i32_0 = arith.constant 0 : i32
    %c0_i32_1 = arith.constant 0 : i32
    return %c0_i32, %c0_i32_0 : i32, i32
  }
  func.func @transform_4(%arg0: i32) -> (i32, i32) {
    %c0_i32 = arith.constant 0 : i32
    %c0_i32_0 = arith.constant 0 : i32
    %c0_i32_1 = arith.constant 0 : i32
    return %c0_i32, %c0_i32_0 : i32, i32
  }
  func.func @transform_5(%arg0: i32) -> (i32, i32) {
    %c0_i32 = arith.constant 0 : i32
    %c0_i32_0 = arith.constant 0 : i32
    %c0_i32_1 = arith.constant 0 : i32
    return %c0_i32, %c0_i32_0 : i32, i32
  }
  func.func @transform_6(%arg0: i32) -> (i32, i32) {
    %c0_i32 = arith.constant 0 : i32
    %c0_i32_0 = arith.constant 0 : i32
    %c0_i32_1 = arith.constant 0 : i32
    return %c0_i32, %c0_i32_0 : i32, i32
  }
  func.func @transform_7(%arg0: i32) -> (i32, i32) {
    %c0_i32 = arith.constant 0 : i32
    %c0_i32_0 = arith.constant 0 : i32
    %c0_i32_1 = arith.constant 0 : i32
    return %c0_i32, %c0_i32_0 : i32, i32
  }
  func.func @transform_8(%arg0: i32) -> (i32, i32) {
    %c0_i32 = arith.constant 0 : i32
    %c0_i32_0 = arith.constant 0 : i32
    %c0_i32_1 = arith.constant 0 : i32
    return %c0_i32, %c0_i32_0 : i32, i32
  }
  func.func @transform_9(%arg0: i32) -> (i32, i32) {
    %c0_i32 = arith.constant 0 : i32
    %c0_i32_0 = arith.constant 0 : i32
    %c0_i32_1 = arith.constant 0 : i32
    return %c0_i32, %c0_i32_0 : i32, i32
  }
  func.func @transform_10(%arg0: i32) -> (i32, i32) {
    %c0_i32 = arith.constant 0 : i32
    %c0_i32_0 = arith.constant 0 : i32
    %c0_i32_1 = arith.constant 0 : i32
    return %c0_i32, %c0_i32_0 : i32, i32
  }
  func.func @transform_11(%arg0: i32) -> (i32, i32) {
    %c0_i32 = arith.constant 0 : i32
    %c0_i32_0 = arith.constant 0 : i32
    %c0_i32_1 = arith.constant 0 : i32
    return %c0_i32, %c0_i32_0 : i32, i32
  }
  func.func @transform_12(%arg0: i32) -> (i32, i32) {
    %c0_i32 = arith.constant 0 : i32
    %c0_i32_0 = arith.constant 0 : i32
    %c0_i32_1 = arith.constant 0 : i32
    return %c0_i32, %c0_i32_0 : i32, i32
  }
  func.func @transform_13(%arg0: i32) -> (i32, i32) {
    %c0_i32 = arith.constant 0 : i32
    %c0_i32_0 = arith.constant 0 : i32
    return %arg0, %c0_i32 : i32, i32
  }
}

</mosaic_0001>

<llo_original>
// kernel: falcon_h1_ssm_decoder_layer.1
$region0: #{falcon_h1_ssm_decoder_layer.1}
  #allocation0 [shape = 'u32[]', space=smem, size = 0x4, offset = 0x4, fixed_abs, tag = 'smem constant byte address 0x4 - core index']
  #allocation1 [shape = 'u32[144,128]{1,0:T(1,128)}', space=vmem, size = 0x12000, scoped, tag = 'internal scratch']
  #allocation2 [shape = 'f32[16,64]{1,0:T(8,128)}', space=vmem, size = 0x2000, scoped, tag = 'scratch operand']
  #allocation3 [shape = 'f32[8,64]{1,0:T(8,128)}', space=vmem, size = 0x1000, scoped, tag = 'scratch operand']
  #allocation4 [shape = 'f32[8,32]{1,0:T(8,128)}', space=vmem, size = 0x1000, scoped, tag = 'scratch operand']
  %s0 = inlined_call_operand.vmem [shape: f32[256,32], index: 0, kind: input, shape index: {}]
  %s1 = inlined_call_operand.vmem [shape: bf16[32,68], index: 1, kind: input, shape index: {}]
  %s2 = inlined_call_operand.vmem [shape: bf16[32,64], index: 2, kind: input, shape index: {}]
  %s3 = inlined_call_operand.vmem [shape: bf16[32,32], index: 3, kind: input, shape index: {}]
  %s4 = inlined_call_operand.vmem [shape: f32[4,64], index: 4, kind: input, shape index: {}]
  %s5 = inlined_call_operand.vmem [shape: f32[1,64], index: 5, kind: input, shape index: {}]
  %s6 = inlined_call_operand.vmem [shape: f32[4,32], index: 6, kind: input, shape index: {}]
  %s7 = inlined_call_operand.vmem [shape: f32[1,32], index: 7, kind: input, shape index: {}]
  %s8 = inlined_call_operand.vmem [shape: f32[1,4], index: 8, kind: input, shape index: {}]
  %s9 = inlined_call_operand.vmem [shape: f32[1,4], index: 9, kind: input, shape index: {}]
  %s10 = inlined_call_operand.vmem [shape: f32[1,64], index: 10, kind: input, shape index: {}]
  %s11 = inlined_call_operand.vmem [shape: f32[1,64], index: 11, kind: input, shape index: {}]
  %s12 = inlined_call_operand.vmem [shape: bf16[64,32], index: 12, kind: input, shape index: {}]
  %s13 = inlined_call_operand.vmem [shape: f32[256,32], index: 13, kind: output, shape index: {}]
  %s14 = sld [smem:[#allocation0]]
  $region89: #{falcon_h1_ssm_decoder_layer.1} parent=0
    _
  %s16 = ssub.s32 1, %s14
  %s17 = scalar_select 0, %s16, %s14
  loop: start=0, step=1, limit=4
  $region2: #{falcon_h1_ssm_decoder_layer.1} parent=0 // loop_pre_header
    _
  $region3: #{falcon_h1_ssm_decoder_layer.1} parent=0 // loop_header
    %s19 = sphi 0, %s23
    %p20 = scmp.ge.s32.totalorder %s19, 4
    %s29 = sphi 0, %s31
    %s32 = sphi 0, %s29
    %s33 = sphi 0, %s32
    %s49 = sphi 0, %s33
    %s53 = sphi 0, %s53
    %s55 = sphi 0, %s53
    %s56 = sphi 0, %s55
    %s70 = sphi 0, %s56
    %s74 = sphi 0, %s74
    %s76 = sphi 0, %s74
    %s77 = sphi 0, %s76
    %s91 = sphi 0, %s77
    %s95 = sphi 0, %s95
    %s97 = sphi 0, %s95
    %s98 = sphi 0, %s97
    %s112 = sphi 0, %s98
    %s116 = sphi 0, %s116
    %s118 = sphi 0, %s116
    %s119 = sphi 0, %s118
    %s133 = sphi 0, %s119
    %s137 = sphi 0, %s137
    %s139 = sphi 0, %s137
    %s140 = sphi 0, %s139
    %s154 = sphi 0, %s140
    %s158 = sphi 0, %s158
    %s160 = sphi 0, %s158
    %s161 = sphi 0, %s160
    %s175 = sphi 0, %s161
    %s179 = sphi 0, %s179
    %s181 = sphi 0, %s179
    %s182 = sphi 0, %s181
    %s196 = sphi 0, %s182
    %s200 = sphi 0, %s200
    %s202 = sphi 0, %s200
    %s203 = sphi 0, %s202
    %s217 = sphi 0, %s203
    %s221 = sphi 0, %s221
    %s223 = sphi 0, %s221
    %s224 = sphi 0, %s223
    %s238 = sphi 0, %s224
    %s242 = sphi 0, %s242
    %s244 = sphi 0, %s242
    %s245 = sphi 0, %s244
    %s259 = sphi 0, %s245
    %s263 = sphi 0, %s263
    %s265 = sphi 0, %s263
    %s266 = sphi 0, %s265
    %s280 = sphi 0, %s266
    %s284 = sphi 0, %s284
    %s286 = sphi 0, %s284
    %s287 = sphi 0, %s286
    %s301 = sphi 0, %s287
    %s307 = sphi 0, %s309
    %s310 = sphi 0, %s307
    %s311 = sphi 0, %s310
    %s327 = sphi 0, %s311
  $region4: #{falcon_h1_ssm_decoder_layer.1} parent=0 // loop_header_branch
    %22 = sbr.rel (%p20) target = $region8
  $region5: #{falcon_h1_ssm_decoder_layer.1} parent=0 // loop_body
    %s24 = ssub.s32 %s19, 1
    %s25 = ssub.s32 %s19, 2
    %s26 = sadd.s32 %s19, 1
    %s27 = ssub.s32 %s19, %s26
    %p28 = scmp.eq.s32.totalorder %s27, 0
    %s30 = sadd.s32 %s29, 1
    %s31 = scalar_select %p28, %s29, %s30
    %p34 = pneg %p28
    %p35 = scmp.eq.s32.totalorder %s19, 1
    %p36 = por %p34, %p35
    %p37 = scmp.ne.s32.totalorder %s29, %s32
    %p38 = scmp.eq.s32.totalorder %s19, 0
    %p39 = por %p37, %p38
    %p40 = scmp.ne.s32.totalorder %s29, %s32
    %p41 = scmp.eq.s32.totalorder %s24, 1
    %p42 = por %p40, %p41
    %p43 = scmp.ne.s32.totalorder %s32, %s33
    %p44 = scmp.eq.s32.totalorder %s24, 0
    %p45 = por %p43, %p44
    %p46 = scmp.ne.s32.totalorder %s32, %s33
    %p47 = scmp.eq.s32.totalorder %s25, 1
    %p48 = por %p46, %p47
    %p50 = scmp.ne.s32.totalorder %s33, %s49
    %p51 = scmp.eq.s32.totalorder %s25, 0
    %p52 = por %p50, %p51
    %s54 = sadd.s32 %s53, 1
    %p57 = scmp.eq.s32.totalorder %s19, 1
    %p58 = scmp.ne.s32.totalorder %s53, %s55
    %p59 = scmp.eq.s32.totalorder %s19, 0
    %p60 = por %p58, %p59
    %p61 = scmp.ne.s32.totalorder %s53, %s55
    %p62 = scmp.eq.s32.totalorder %s24, 1
    %p63 = por %p61, %p62
    %p64 = scmp.ne.s32.totalorder %s55, %s56
    %p65 = scmp.eq.s32.totalorder %s24, 0
    %p66 = por %p64, %p65
    %p67 = scmp.ne.s32.totalorder %s55, %s56
    %p68 = scmp.eq.s32.totalorder %s25, 1
    %p69 = por %p67, %p68
    %p71 = scmp.ne.s32.totalorder %s56, %s70
    %p72 = scmp.eq.s32.totalorder %s25, 0
    %p73 = por %p71, %p72
    %s75 = sadd.s32 %s74, 1
    %p78 = scmp.eq.s32.totalorder %s19, 1
    %p79 = scmp.ne.s32.totalorder %s74, %s76
    %p80 = scmp.eq.s32.totalorder %s19, 0
    %p81 = por %p79, %p80
    %p82 = scmp.ne.s32.totalorder %s74, %s76
    %p83 = scmp.eq.s32.totalorder %s24, 1
    %p84 = por %p82, %p83
    %p85 = scmp.ne.s32.totalorder %s76, %s77
    %p86 = scmp.eq.s32.totalorder %s24, 0
    %p87 = por %p85, %p86
    %p88 = scmp.ne.s32.totalorder %s76, %s77
    %p89 = scmp.eq.s32.totalorder %s25, 1
    %p90 = por %p88, %p89
    %p92 = scmp.ne.s32.totalorder %s77, %s91
    %p93 = scmp.eq.s32.totalorder %s25, 0
    %p94 = por %p92, %p93
    %s96 = sadd.s32 %s95, 1
    %p99 = scmp.eq.s32.totalorder %s19, 1
    %p100 = scmp.ne.s32.totalorder %s95, %s97
    %p101 = scmp.eq.s32.totalorder %s19, 0
    %p102 = por %p100, %p101
    %p103 = scmp.ne.s32.totalorder %s95, %s97
    %p104 = scmp.eq.s32.totalorder %s24, 1
    %p105 = por %p103, %p104
    %p106 = scmp.ne.s32.totalorder %s97, %s98
    %p107 = scmp.eq.s32.totalorder %s24, 0
    %p108 = por %p106, %p107
    %p109 = scmp.ne.s32.totalorder %s97, %s98
    %p110 = scmp.eq.s32.totalorder %s25, 1
    %p111 = por %p109, %p110
    %p113 = scmp.ne.s32.totalorder %s98, %s112
    %p114 = scmp.eq.s32.totalorder %s25, 0
    %p115 = por %p113, %p114
    %s117 = sadd.s32 %s116, 1
    %p120 = scmp.eq.s32.totalorder %s19, 1
    %p121 = scmp.ne.s32.totalorder %s116, %s118
    %p122 = scmp.eq.s32.totalorder %s19, 0
    %p123 = por %p121, %p122
    %p124 = scmp.ne.s32.totalorder %s116, %s118
    %p125 = scmp.eq.s32.totalorder %s24, 1
    %p126 = por %p124, %p125
    %p127 = scmp.ne.s32.totalorder %s118, %s119
    %p128 = scmp.eq.s32.totalorder %s24, 0
    %p129 = por %p127, %p128
    %p130 = scmp.ne.s32.totalorder %s118, %s119
    %p131 = scmp.eq.s32.totalorder %s25, 1
    %p132 = por %p130, %p131
    %p134 = scmp.ne.s32.totalorder %s119, %s133
    %p135 = scmp.eq.s32.totalorder %s25, 0
    %p136 = por %p134, %p135
    %s138 = sadd.s32 %s137, 1
    %p141 = scmp.eq.s32.totalorder %s19, 1
    %p142 = scmp.ne.s32.totalorder %s137, %s139
    %p143 = scmp.eq.s32.totalorder %s19, 0
    %p144 = por %p142, %p143
    %p145 = scmp.ne.s32.totalorder %s137, %s139
    %p146 = scmp.eq.s32.totalorder %s24, 1
    %p147 = por %p145, %p146
    %p148 = scmp.ne.s32.totalorder %s139, %s140
    %p149 = scmp.eq.s32.totalorder %s24, 0
    %p150 = por %p148, %p149
    %p151 = scmp.ne.s32.totalorder %s139, %s140
    %p152 = scmp.eq.s32.totalorder %s25, 1
    %p153 = por %p151, %p152
    %p155 = scmp.ne.s32.totalorder %s140, %s154
    %p156 = scmp.eq.s32.totalorder %s25, 0
    %p157 = por %p155, %p156
    %s159 = sadd.s32 %s158, 1
    %p162 = scmp.eq.s32.totalorder %s19, 1
    %p163 = scmp.ne.s32.totalorder %s158, %s160
    %p164 = scmp.eq.s32.totalorder %s19, 0
    %p165 = por %p163, %p164
    %p166 = scmp.ne.s32.totalorder %s158, %s160
    %p167 = scmp.eq.s32.totalorder %s24, 1
    %p168 = por %p166, %p167
    %p169 = scmp.ne.s32.totalorder %s160, %s161
    %p170 = scmp.eq.s32.totalorder %s24, 0
    %p171 = por %p169, %p170
    %p172 = scmp.ne.s32.totalorder %s160, %s161
    %p173 = scmp.eq.s32.totalorder %s25, 1
    %p174 = por %p172, %p173
    %p176 = scmp.ne.s32.totalorder %s161, %s175
    %p177 = scmp.eq.s32.totalorder %s25, 0
    %p178 = por %p176, %p177
    %s180 = sadd.s32 %s179, 1
    %p183 = scmp.eq.s32.totalorder %s19, 1
    %p184 = scmp.ne.s32.totalorder %s179, %s181
    %p185 = scmp.eq.s32.totalorder %s19, 0
    %p186 = por %p184, %p185
    %p187 = scmp.ne.s32.totalorder %s179, %s181
    %p188 = scmp.eq.s32.totalorder %s24, 1
    %p189 = por %p187, %p188
    %p190 = scmp.ne.s32.totalorder %s181, %s182
    %p191 = scmp.eq.s32.totalorder %s24, 0
    %p192 = por %p190, %p191
    %p193 = scmp.ne.s32.totalorder %s181, %s182
    %p194 = scmp.eq.s32.totalorder %s25, 1
    %p195 = por %p193, %p194
    %p197 = scmp.ne.s32.totalorder %s182, %s196
    %p198 = scmp.eq.s32.totalorder %s25, 0
    %p199 = por %p197, %p198
    %s201 = sadd.s32 %s200, 1
    %p204 = scmp.eq.s32.totalorder %s19, 1
    %p205 = scmp.ne.s32.totalorder %s200, %s202
    %p206 = scmp.eq.s32.totalorder %s19, 0
    %p207 = por %p205, %p206
    %p208 = scmp.ne.s32.totalorder %s200, %s202
    %p209 = scmp.eq.s32.totalorder %s24, 1
    %p210 = por %p208, %p209
    %p211 = scmp.ne.s32.totalorder %s202, %s203
    %p212 = scmp.eq.s32.totalorder %s24, 0
    %p213 = por %p211, %p212
    %p214 = scmp.ne.s32.totalorder %s202, %s203
    %p215 = scmp.eq.s32.totalorder %s25, 1
    %p216 = por %p214, %p215
    %p218 = scmp.ne.s32.totalorder %s203, %s217
    %p219 = scmp.eq.s32.totalorder %s25, 0
    %p220 = por %p218, %p219
    %s222 = sadd.s32 %s221, 1
    %p225 = scmp.eq.s32.totalorder %s19, 1
    %p226 = scmp.ne.s32.totalorder %s221, %s223
    %p227 = scmp.eq.s32.totalorder %s19, 0
    %p228 = por %p226, %p227
    %p229 = scmp.ne.s32.totalorder %s221, %s223
    %p230 = scmp.eq.s32.totalorder %s24, 1
    %p231 = por %p229, %p230
    %p232 = scmp.ne.s32.totalorder %s223, %s224
    %p233 = scmp.eq.s32.totalorder %s24, 0
    %p234 = por %p232, %p233
    %p235 = scmp.ne.s32.totalorder %s223, %s224
    %p236 = scmp.eq.s32.totalorder %s25, 1
    %p237 = por %p235, %p236
    %p239 = scmp.ne.s32.totalorder %s224, %s238
    %p240 = scmp.eq.s32.totalorder %s25, 0
    %p241 = por %p239, %p240
    %s243 = sadd.s32 %s242, 1
    %p246 = scmp.eq.s32.totalorder %s19, 1
    %p247 = scmp.ne.s32.totalorder %s242, %s244
    %p248 = scmp.eq.s32.totalorder %s19, 0
    %p249 = por %p247, %p248
    %p250 = scmp.ne.s32.totalorder %s242, %s244
    %p251 = scmp.eq.s32.totalorder %s24, 1
    %p252 = por %p250, %p251
    %p253 = scmp.ne.s32.totalorder %s244, %s245
    %p254 = scmp.eq.s32.totalorder %s24, 0
    %p255 = por %p253, %p254
    %p256 = scmp.ne.s32.totalorder %s244, %s245
    %p257 = scmp.eq.s32.totalorder %s25, 1
    %p258 = por %p256, %p257
    %p260 = scmp.ne.s32.totalorder %s245, %s259
    %p261 = scmp.eq.s32.totalorder %s25, 0
    %p262 = por %p260, %p261
    %s264 = sadd.s32 %s263, 1
    %p267 = scmp.eq.s32.totalorder %s19, 1
    %p268 = scmp.ne.s32.totalorder %s263, %s265
    %p269 = scmp.eq.s32.totalorder %s19, 0
    %p270 = por %p268, %p269
    %p271 = scmp.ne.s32.totalorder %s263, %s265
    %p272 = scmp.eq.s32.totalorder %s24, 1
    %p273 = por %p271, %p272
    %p274 = scmp.ne.s32.totalorder %s265, %s266
    %p275 = scmp.eq.s32.totalorder %s24, 0
    %p276 = por %p274, %p275
    %p277 = scmp.ne.s32.totalorder %s265, %s266
    %p278 = scmp.eq.s32.totalorder %s25, 1
    %p279 = por %p277, %p278
    %p281 = scmp.ne.s32.totalorder %s266, %s280
    %p282 = scmp.eq.s32.totalorder %s25, 0
    %p283 = por %p281, %p282
    %s285 = sadd.s32 %s284, 1
    %p288 = scmp.eq.s32.totalorder %s19, 1
    %p289 = scmp.ne.s32.totalorder %s284, %s286
    %p290 = scmp.eq.s32.totalorder %s19, 0
    %p291 = por %p289, %p290
    %p292 = scmp.ne.s32.totalorder %s284, %s286
    %p293 = scmp.eq.s32.totalorder %s24, 1
    %p294 = por %p292, %p293
    %p295 = scmp.ne.s32.totalorder %s286, %s287
    %p296 = scmp.eq.s32.totalorder %s24, 0
    %p297 = por %p295, %p296
    %p298 = scmp.ne.s32.totalorder %s286, %s287
    %p299 = scmp.eq.s32.totalorder %s25, 1
    %p300 = por %p298, %p299
    %p302 = scmp.ne.s32.totalorder %s287, %s301
    %p303 = scmp.eq.s32.totalorder %s25, 0
    %p304 = por %p302, %p303
    %s305 = ssub.s32 %s19, %s26
    %p306 = scmp.eq.s32.totalorder %s305, 0
    %s308 = sadd.s32 %s307, 1
    %s309 = scalar_select %p306, %s307, %s308
    %p312 = pneg %p306
    %p313 = scmp.eq.s32.totalorder %s19, 1
    %p314 = por %p312, %p313
    %p315 = scmp.ne.s32.totalorder %s307, %s310
    %p316 = scmp.eq.s32.totalorder %s19, 0
    %p317 = por %p315, %p316
    %p318 = scmp.ne.s32.totalorder %s307, %s310
    %p319 = scmp.eq.s32.totalorder %s24, 1
    %p320 = por %p318, %p319
    %p321 = scmp.ne.s32.totalorder %s310, %s311
    %p322 = scmp.eq.s32.totalorder %s24, 0
    %p323 = por %p321, %p322
    %p324 = scmp.ne.s32.totalorder %s310, %s311
    %p325 = scmp.eq.s32.totalorder %s25, 1
    %p326 = por %p324, %p325
    %p328 = scmp.ne.s32.totalorder %s311, %s327
    %p329 = scmp.eq.s32.totalorder %s25, 0
    %p330 = por %p328, %p329
    %p331 = scmp.le.s32.totalorder 1, %s19
    %p332 = scmp.lt.s32.totalorder %s19, 3
    %p333 = pnand %p331, %p332
    %p334 = pneg %p333
    // Predicated region
    $region9: #{falcon_h1_ssm_decoder_layer.1} parent=5 // pred_check
      _
    $region10: #{falcon_h1_ssm_decoder_layer.1} parent=5 // pred_check_branch
      %336 = sbr.rel (%p333) target = $region12
    $region11: #{falcon_h1_ssm_decoder_layer.1} parent=5 // pred_region
      %s337 = ssub.s32 %s19, 1
      // Predicated region
      $region13: #{falcon_h1_ssm_decoder_layer.1} parent=11 // pred_check
        %p338 = pneg %p66
      $region14: #{falcon_h1_ssm_decoder_layer.1} parent=11 // pred_check_branch
        %340 = sbr.rel (%p338) target = $region16
      $region15: #{falcon_h1_ssm_decoder_layer.1} parent=11 // pred_region
        _
      $region16: #{falcon_h1_ssm_decoder_layer.1} parent=11 // pred_fallthru
        _
      // Predicated region
      $region17: #{falcon_h1_ssm_decoder_layer.1} parent=11 // pred_check
        %p341 = pneg %p87
      $region18: #{falcon_h1_ssm_decoder_layer.1} parent=11 // pred_check_branch
        %343 = sbr.rel (%p341) target = $region20
      $region19: #{falcon_h1_ssm_decoder_layer.1} parent=11 // pred_region
        _
      $region20: #{falcon_h1_ssm_decoder_layer.1} parent=11 // pred_fallthru
        _
      // Predicated region
      $region21: #{falcon_h1_ssm_decoder_layer.1} parent=11 // pred_check
        %p344 = pneg %p108
      $region22: #{falcon_h1_ssm_decoder_layer.1} parent=11 // pred_check_branch
        %346 = sbr.rel (%p344) target = $region24
      $region23: #{falcon_h1_ssm_decoder_layer.1} parent=11 // pred_region
        _
      $region24: #{falcon_h1_ssm_decoder_layer.1} parent=11 // pred_fallthru
        _
      // Predicated region
      $region25: #{falcon_h1_ssm_decoder_layer.1} parent=11 // pred_check
        %p347 = pneg %p129
      $region26: #{falcon_h1_ssm_decoder_layer.1} parent=11 // pred_check_branch
        %349 = sbr.rel (%p347) target = $region28
      $region27: #{falcon_h1_ssm_decoder_layer.1} parent=11 // pred_region
        _
      $region28: #{falcon_h1_ssm_decoder_layer.1} parent=11 // pred_fallthru
        _
      // Predicated region
      $region29: #{falcon_h1_ssm_decoder_layer.1} parent=11 // pred_check
        %p350 = pneg %p150
      $region30: #{falcon_h1_ssm_decoder_layer.1} parent=11 // pred_check_branch
        %352 = sbr.rel (%p350) target = $region32
      $region31: #{falcon_h1_ssm_decoder_layer.1} parent=11 // pred_region
        _
      $region32: #{falcon_h1_ssm_decoder_layer.1} parent=11 // pred_fallthru
        _
      // Predicated region
      $region33: #{falcon_h1_ssm_decoder_layer.1} parent=11 // pred_check
        %p353 = pneg %p171
      $region34: #{falcon_h1_ssm_decoder_layer.1} parent=11 // pred_check_branch
        %355 = sbr.rel (%p353) target = $region36
      $region35: #{falcon_h1_ssm_decoder_layer.1} parent=11 // pred_region
        _
      $region36: #{falcon_h1_ssm_decoder_layer.1} parent=11 // pred_fallthru
        _
      // Predicated region
      $region37: #{falcon_h1_ssm_decoder_layer.1} parent=11 // pred_check
        %p356 = pneg %p192
      $region38: #{falcon_h1_ssm_decoder_layer.1} parent=11 // pred_check_branch
        %358 = sbr.rel (%p356) target = $region40
      $region39: #{falcon_h1_ssm_decoder_layer.1} parent=11 // pred_region
        _
      $region40: #{falcon_h1_ssm_decoder_layer.1} parent=11 // pred_fallthru
        _
      // Predicated region
      $region41: #{falcon_h1_ssm_decoder_layer.1} parent=11 // pred_check
        %p359 = pneg %p213
      $region42: #{falcon_h1_ssm_decoder_layer.1} parent=11 // pred_check_branch
        %361 = sbr.rel (%p359) target = $region44
      $region43: #{falcon_h1_ssm_decoder_layer.1} parent=11 // pred_region
        _
      $region44: #{falcon_h1_ssm_decoder_layer.1} parent=11 // pred_fallthru
        _
      // Predicated region
      $region45: #{falcon_h1_ssm_decoder_layer.1} parent=11 // pred_check
        %p362 = pneg %p234
      $region46: #{falcon_h1_ssm_decoder_layer.1} parent=11 // pred_check_branch
        %364 = sbr.rel (%p362) target = $region48
      $region47: #{falcon_h1_ssm_decoder_layer.1} parent=11 // pred_region
        _
      $region48: #{falcon_h1_ssm_decoder_layer.1} parent=11 // pred_fallthru
        _
      // Predicated region
      $region49: #{falcon_h1_ssm_decoder_layer.1} parent=11 // pred_check
        %p365 = pneg %p255
      $region50: #{falcon_h1_ssm_decoder_layer.1} parent=11 // pred_check_branch
        %367 = sbr.rel (%p365) target = $region52
      $region51: #{falcon_h1_ssm_decoder_layer.1} parent=11 // pred_region
        _
      $region52: #{falcon_h1_ssm_decoder_layer.1} parent=11 // pred_fallthru
        _
      // Predicated region
      $region53: #{falcon_h1_ssm_decoder_layer.1} parent=11 // pred_check
        %p368 = pneg %p276
      $region54: #{falcon_h1_ssm_decoder_layer.1} parent=11 // pred_check_branch
        %370 = sbr.rel (%p368) target = $region56
      $region55: #{falcon_h1_ssm_decoder_layer.1} parent=11 // pred_region
        _
      $region56: #{falcon_h1_ssm_decoder_layer.1} parent=11 // pred_fallthru
        _
      // Predicated region
      $region57: #{falcon_h1_ssm_decoder_layer.1} parent=11 // pred_check
        %p371 = pneg %p297
      $region58: #{falcon_h1_ssm_decoder_layer.1} parent=11 // pred_check_branch
        %373 = sbr.rel (%p371) target = $region60
      $region59: #{falcon_h1_ssm_decoder_layer.1} parent=11 // pred_region
        _
      $region60: #{falcon_h1_ssm_decoder_layer.1} parent=11 // pred_fallthru
        _
    $region12: #{falcon_h1_ssm_decoder_layer.1} parent=5 // pred_fallthru
      _
    %p374 = scmp.lt.s32.totalorder %s19, 2
    // Predicated region
    $region61: #{falcon_h1_ssm_decoder_layer.1} parent=5 // pred_check
      %p375 = pneg %p374
    $region62: #{falcon_h1_ssm_decoder_layer.1} parent=5 // pred_check_branch
      %377 = sbr.rel (%p375) target = $region64
    $region63: #{falcon_h1_ssm_decoder_layer.1} parent=5 // pred_region
      // Predicated region
      $region65: #{falcon_h1_ssm_decoder_layer.1} parent=63 // pred_check
        %p378 = pneg %p39
      $region66: #{falcon_h1_ssm_decoder_layer.1} parent=63 // pred_check_branch
        %380 = sbr.rel (%p378) target = $region68
      $region67: #{falcon_h1_ssm_decoder_layer.1} parent=63 // pred_region
        %s381 = smul.u32 16, %s19
        %p382 = scmp.lt.s32.totalorder %s381, 31
        %s383 = scalar_select %p382, %s381, 31
        %s384 = smul.addr %s383, 8
        %s385 = scalar_lea.vmem %s0, %s384
        %s386 = smul.u32 16, %s19
      $region68: #{falcon_h1_ssm_decoder_layer.1} parent=63 // pred_fallthru
        _
    $region64: #{falcon_h1_ssm_decoder_layer.1} parent=5 // pred_fallthru
      _
    %p387 = scmp.le.s32.totalorder 1, %s19
    %p388 = scmp.lt.s32.totalorder %s19, 3
    %p389 = pnand %p387, %p388
    %p390 = pneg %p389
    // Predicated region
    $region69: #{falcon_h1_ssm_decoder_layer.1} parent=5 // pred_check
      _
    $region70: #{falcon_h1_ssm_decoder_layer.1} parent=5 // pred_check_branch
      %392 = sbr.rel (%p389) target = $region72
    $region71: #{falcon_h1_ssm_decoder_layer.1} parent=5 // pred_region
      %s393 = ssub.s32 %s19, 1
      %s394 = smul.u32 16, %s24
      %p395 = scmp.lt.s32.totalorder %s394, 31
      %s396 = scalar_select %p395, %s394, 31
      %s397 = smul.addr %s396, 8
      %s398 = scalar_lea.vmem %s0, %s397
      %p399 = pneg %p45
      %p400 = pneg %p42
      %p401 = pneg %p66
      %p402 = pneg %p63
      %p403 = pneg %p87
      %p404 = pneg %p84
      %p405 = pneg %p108
      %p406 = pneg %p105
      %p407 = pneg %p129
      %p408 = pneg %p126
      %p409 = pneg %p150
      %p410 = pneg %p147
      %p411 = pneg %p171
      %p412 = pneg %p168
      %p413 = pneg %p192
      %p414 = pneg %p189
      %p415 = pneg %p213
      %p416 = pneg %p210
      %p417 = pneg %p234
      %p418 = pneg %p231
      %p419 = pneg %p255
      %p420 = pneg %p252
      %p421 = pneg %p276
      %p422 = pneg %p273
      %p423 = pneg %p297
      %p424 = pneg %p294
      %p425 = pneg %p323
      %p426 = pneg %p320
      %s427 = smul.u32 16, %s24
      %p428 = scmp.lt.s32.totalorder %s427, 31
      %s429 = scalar_select %p428, %s427, 31
      %s430 = smul.addr %s429, 8
      %s431 = scalar_lea.vmem %s13, %s430
      %s432 = smul.u32 16, %s24
      %p433 = scmp.lt.s32.totalorder %s432, 31
      %s434 = scalar_select %p433, %s432, 31
      %s435 = smul.addr %s434, 8
      %s436 = scalar_lea.vmem %s0, %s435
      %s437 = smul.u32 16, %s24
      %s438 = smul.u32 16, %s24
      %p439 = scmp.lt.s32.totalorder %s438, 31
      %s440 = scalar_select %p439, %s438, 31
      %s441 = smul.addr %s440, 8
      %s442 = scalar_lea.vmem %s13, %s441
      %s443 = smul.u32 16, %s24
      %p445 = scmp.eq.s32.totalorder %s24, 0
      // Predicated region
      $region73: #{falcon_h1_ssm_decoder_layer.1} parent=71 // pred_check
        %p446 = pneg %p445
      $region74: #{falcon_h1_ssm_decoder_layer.1} parent=71 // pred_check_branch
        %448 = sbr.rel (%p446) target = $region76
      $region75: #{falcon_h1_ssm_decoder_layer.1} parent=71 // pred_region
        %vm449 = vcmask 523264
        %450 = vst.msk [vmem:[#allocation2] sm:$0xff] %vm449, 0.0
        %451 = vst.msk [vmem:[#allocation2 + $0x8] sm:$0xff] %vm449, 0.0
        %452 = vst.msk [vmem:[#allocation3] sm:$0xff] %vm449, 0.0
        %vm453 = vcmask 261120
        %454 = vst.msk [vmem:[#allocation4] sm:$0xff] %vm453, 0.0
      $region76: #{falcon_h1_ssm_decoder_layer.1} parent=71 // pred_fallthru
        _
      %v455 = vld [vmem:[%s436] sm:$0xff]
      %v456 = vld [vmem:[%s436 + $0x8] sm:$0xff]
      %v457 = vld [vmem:[%s436 + $0x10] sm:$0xff]
      %v458 = vld [vmem:[%s436 + $0x18] sm:$0xff]
      %v459 = vld [vmem:[%s436 + $0x20] sm:$0xff]
      %v460 = vld [vmem:[%s436 + $0x28] sm:$0xff]
      %v461 = vld [vmem:[%s436 + $0x30] sm:$0xff]
      %v462 = vld [vmem:[%s436 + $0x38] sm:$0xff]
      %v463 = vld [vmem:[%s436 + $0x40] sm:$0xff]
      %v464 = vld [vmem:[%s436 + $0x48] sm:$0xff]
      %v465 = vld [vmem:[%s436 + $0x50] sm:$0xff]
      %v466 = vld [vmem:[%s436 + $0x58] sm:$0xff]
      %v467 = vld [vmem:[%s436 + $0x60] sm:$0xff]
      %v468 = vld [vmem:[%s436 + $0x68] sm:$0xff]
      %v469 = vld [vmem:[%s436 + $0x70] sm:$0xff]
      %v470 = vld [vmem:[%s436 + $0x78] sm:$0xff]
      %v471 = vpack.c.bf16 %v456, %v455
      %v472 = vpack.c.bf16 %v458, %v457
      %v473 = vpack.c.bf16 %v460, %v459
      %v474 = vpack.c.bf16 %v462, %v461
      %v475 = vpack.c.bf16 %v464, %v463
      %v476 = vpack.c.bf16 %v466, %v465
      %v477 = vpack.c.bf16 %v468, %v467
      %v478 = vpack.c.bf16 %v470, %v469
      %v479 = vld [vmem:[%s1] sm:$0xf]
      %v480 = vld [vmem:[%s1 + $0x4] sm:$0xf]
      %v481 = vld [vmem:[%s1 + $0x8] sm:$0xf]
      %v482 = vld [vmem:[%s1 + $0xc] sm:$0xf]
      %v487 = vunpack.c.l.b16 %v479
      %v488 = vunpack.c.l.b16 %v480
      %v489 = vunpack.c.l.b16 %v481
      %v490 = vunpack.c.l.b16 %v482
      %v491 = vpack.c.b16 %v488, %v487
      %v492 = vpack.c.b16 %v490, %v489
      %vm495 = vcmask 261120
      %v497 = vsel %vm495, %v471, 0
      %v500 = vsel %vm495, %v472, 0
      %v503 = vsel %vm495, %v473, 0
      %v506 = vsel %vm495, %v474, 0
      %v509 = vsel %vm495, %v475, 0
      %v512 = vsel %vm495, %v476, 0
      %v515 = vsel %vm495, %v477, 0
      %v518 = vsel %vm495, %v478, 0
      %520 = vmatprep.subr.bf16.mxu0 0
      %521 = vmatpush1.bf16.msra.mxu0 0
      %522 = vmatprep.subr.bf16.mxu0 0
      %523 = vmatpush1.bf16.msra.mxu0 0
      %524 = vmatprep.subr.bf16.mxu0 0
      %525 = vmatpush1.bf16.msra.mxu0 0
      %526 = vmatprep.subr.bf16.mxu0 0
      %527 = vmatpush1.bf16.msra.mxu0 0
      %528 = vmatprep.subr.bf16.mxu0 0
      %529 = vmatpush1.bf16.msra.mxu0 0
      %530 = vmatprep.subr.bf16.mxu0 0
      %531 = vmatpush1.bf16.msra.mxu0 0
      %532 = vmatprep.subr.bf16.mxu0 0
      %533 = vmatpush1.bf16.msra.mxu0 %v492
      %534 = vmatprep.subr.bf16.mxu0 0
      %535 = vmatpush1.bf16.msra.mxu0 %v491
      %536 = vmatprep.subr.bf16.mxu0 0
      %537 = vmatpush2.bf16.msra.mxu0 0
      %538 = vmatprep.subr.bf16.mxu0 0
      %539 = vmatpush2.bf16.msra.mxu0 0
      %540 = vmatprep.subr.bf16.mxu0 0
      %541 = vmatpush2.bf16.msra.mxu0 0
      %542 = vmatprep.subr.bf16.mxu0 0
      %543 = vmatpush2.bf16.msra.mxu0 0
      %544 = vmatprep.subr.bf16.mxu0 0
      %545 = vmatpush2.bf16.msra.mxu0 0
      %546 = vmatprep.subr.bf16.mxu0 0
      %547 = vmatpush2.bf16.msra.mxu0 0
      %548 = vmatprep.subr.bf16.mxu0 0
      %549 = vmatpush2.bf16.msra.mxu0 0
      %550 = vmatprep.subr.bf16.mxu0 0
      %551 = vmatpush2.bf16.msra.mxu0 0
      %552 = vmatprep.mubr.bf16.mxu0 0
      %553 = vmatmul.mubr.bf16.gmra.mxu0 %v497
      %v554 = vpop.f32.mrf.mxu0
      %v555 = vadd.f32 0.0, %v554
      %v556 = vpop.f32.mrf.mxu0
      %v557 = vpop.f32.mrf.mxu0
      %v558 = vadd.f32 0.0, %v557
      %v559 = vpop.f32.mrf.mxu0
      %560 = vmatprep.mubr.bf16.mxu0 0
      %561 = vmatmul.mubr.bf16.gmra.mxu0 %v500
      %v562 = vpop.f32.mrf.mxu0
      %v563 = vadd.f32 0.0, %v562
      %v564 = vpop.f32.mrf.mxu0
      %v565 = vpop.f32.mrf.mxu0
      %v566 = vadd.f32 0.0, %v565
      %v567 = vpop.f32.mrf.mxu0
      %568 = vmatprep.mubr.bf16.mxu0 0
      %569 = vmatmul.mubr.bf16.gmra.mxu0 %v503
      %v570 = vpop.f32.mrf.mxu0
      %v571 = vadd.f32 0.0, %v570
      %v572 = vpop.f32.mrf.mxu0
      %v573 = vpop.f32.mrf.mxu0
      %v574 = vadd.f32 0.0, %v573
      %v575 = vpop.f32.mrf.mxu0
      %576 = vmatprep.mubr.bf16.mxu0 0
      %577 = vmatmul.mubr.bf16.gmra.mxu0 %v506
      %v578 = vpop.f32.mrf.mxu0
      %v579 = vadd.f32 0.0, %v578
      %v580 = vpop.f32.mrf.mxu0
      %v581 = vpop.f32.mrf.mxu0
      %v582 = vadd.f32 0.0, %v581
      %v583 = vpop.f32.mrf.mxu0
      %584 = vmatprep.mubr.bf16.mxu0 0
      %585 = vmatmul.mubr.bf16.gmra.mxu0 %v509
      %v586 = vpop.f32.mrf.mxu0
      %v587 = vadd.f32 0.0, %v586
      %v588 = vpop.f32.mrf.mxu0
      %v589 = vpop.f32.mrf.mxu0
      %v590 = vadd.f32 0.0, %v589
      %v591 = vpop.f32.mrf.mxu0
      %592 = vmatprep.mubr.bf16.mxu0 0
      %593 = vmatmul.mubr.bf16.gmra.mxu0 %v512
      %v594 = vpop.f32.mrf.mxu0
      %v595 = vadd.f32 0.0, %v594
      %v596 = vpop.f32.mrf.mxu0
      %v597 = vpop.f32.mrf.mxu0
      %v598 = vadd.f32 0.0, %v597
      %v599 = vpop.f32.mrf.mxu0
      %600 = vmatprep.mubr.bf16.mxu0 0
      %601 = vmatmul.mubr.bf16.gmra.mxu0 %v515
      %v602 = vpop.f32.mrf.mxu0
      %v603 = vadd.f32 0.0, %v602
      %v604 = vpop.f32.mrf.mxu0
      %v605 = vpop.f32.mrf.mxu0
      %v606 = vadd.f32 0.0, %v605
      %v607 = vpop.f32.mrf.mxu0
      %608 = vmatprep.mubr.bf16.mxu0 0
      %609 = vmatmul.mubr.bf16.gmra.mxu0 %v518
      %v610 = vpop.f32.mrf.mxu0
      %v611 = vadd.f32 0.0, %v610
      %v612 = vpop.f32.mrf.mxu0
      %v613 = vpop.f32.mrf.mxu0
      %v614 = vadd.f32 0.0, %v613
      %v615 = vpop.f32.mrf.mxu0
      %616 = vdwg.mxu0
      %v617 = vld [vmem:[%s2] sm:$0xf]
      %v618 = vld [vmem:[%s2 + $0x4] sm:$0xf]
      %v619 = vld [vmem:[%s2 + $0x8] sm:$0xf]
      %v620 = vld [vmem:[%s2 + $0xc] sm:$0xf]
      %v625 = vunpack.c.l.b16 %v617
      %v626 = vunpack.c.l.b16 %v618
      %v627 = vunpack.c.l.b16 %v619
      %v628 = vunpack.c.l.b16 %v620
      %v629 = vpack.c.b16 %v626, %v625
      %v630 = vpack.c.b16 %v628, %v627
      %633 = vmatprep.subr.bf16.mxu0 0
      %634 = vmatpush1.bf16.msra.mxu0 0
      %635 = vmatprep.subr.bf16.mxu0 0
      %636 = vmatpush1.bf16.msra.mxu0 0
      %637 = vmatprep.subr.bf16.mxu0 0
      %638 = vmatpush1.bf16.msra.mxu0 0
      %639 = vmatprep.subr.bf16.mxu0 0
      %640 = vmatpush1.bf16.msra.mxu0 0
      %641 = vmatprep.subr.bf16.mxu0 0
      %642 = vmatpush1.bf16.msra.mxu0 0
      %643 = vmatprep.subr.bf16.mxu0 0
      %644 = vmatpush1.bf16.msra.mxu0 0
      %645 = vmatprep.subr.bf16.mxu0 0
      %646 = vmatpush1.bf16.msra.mxu0 %v630
      %647 = vmatprep.subr.bf16.mxu0 0
      %648 = vmatpush1.bf16.msra.mxu0 %v629
      %649 = vmatprep.subr.bf16.mxu0 0
      %650 = vmatpush2.bf16.msra.mxu0 0
      %651 = vmatprep.subr.bf16.mxu0 0
      %652 = vmatpush2.bf16.msra.mxu0 0
      %653 = vmatprep.subr.bf16.mxu0 0
      %654 = vmatpush2.bf16.msra.mxu0 0
      %655 = vmatprep.subr.bf16.mxu0 0
      %656 = vmatpush2.bf16.msra.mxu0 0
      %657 = vmatprep.subr.bf16.mxu0 0
      %658 = vmatpush2.bf16.msra.mxu0 0
      %659 = vmatprep.subr.bf16.mxu0 0
      %660 = vmatpush2.bf16.msra.mxu0 0
      %661 = vmatprep.subr.bf16.mxu0 0
      %662 = vmatpush2.bf16.msra.mxu0 0
      %663 = vmatprep.subr.bf16.mxu0 0
      %664 = vmatpush2.bf16.msra.mxu0 0
      %665 = vmatprep.mubr.bf16.mxu0 0
      %666 = vmatmul.mubr.bf16.gmra.mxu0 %v497
      %v667 = vpop.f32.mrf.mxu0
      %v668 = vadd.f32 0.0, %v667
      %v669 = vpop.f32.mrf.mxu0
      %v670 = vpop.f32.mrf.mxu0
      %v671 = vadd.f32 0.0, %v670
      %v672 = vpop.f32.mrf.mxu0
      %673 = vmatprep.mubr.bf16.mxu0 0
      %674 = vmatmul.mubr.bf16.gmra.mxu0 %v500
      %v675 = vpop.f32.mrf.mxu0
      %v676 = vadd.f32 0.0, %v675
      %v677 = vpop.f32.mrf.mxu0
      %v678 = vpop.f32.mrf.mxu0
      %v679 = vadd.f32 0.0, %v678
      %v680 = vpop.f32.mrf.mxu0
      %681 = vmatprep.mubr.bf16.mxu0 0
      %682 = vmatmul.mubr.bf16.gmra.mxu0 %v503
      %v683 = vpop.f32.mrf.mxu0
      %v684 = vadd.f32 0.0, %v683
      %v685 = vpop.f32.mrf.mxu0
      %v686 = vpop.f32.mrf.mxu0
      %v687 = vadd.f32 0.0, %v686
      %v688 = vpop.f32.mrf.mxu0
      %689 = vmatprep.mubr.bf16.mxu0 0
      %690 = vmatmul.mubr.bf16.gmra.mxu0 %v506
      %v691 = vpop.f32.mrf.mxu0
      %v692 = vadd.f32 0.0, %v691
      %v693 = vpop.f32.mrf.mxu0
      %v694 = vpop.f32.mrf.mxu0
      %v695 = vadd.f32 0.0, %v694
      %v696 = vpop.f32.mrf.mxu0
      %697 = vmatprep.mubr.bf16.mxu0 0
      %698 = vmatmul.mubr.bf16.gmra.mxu0 %v509
      %v699 = vpop.f32.mrf.mxu0
      %v700 = vadd.f32 0.0, %v699
      %v701 = vpop.f32.mrf.mxu0
      %v702 = vpop.f32.mrf.mxu0
      %v703 = vadd.f32 0.0, %v702
      %v704 = vpop.f32.mrf.mxu0
      %705 = vmatprep.mubr.bf16.mxu0 0
      %706 = vmatmul.mubr.bf16.gmra.mxu0 %v512
      %v707 = vpop.f32.mrf.mxu0
      %v708 = vadd.f32 0.0, %v707
      %v709 = vpop.f32.mrf.mxu0
      %v710 = vpop.f32.mrf.mxu0
      %v711 = vadd.f32 0.0, %v710
      %v712 = vpop.f32.mrf.mxu0
      %713 = vmatprep.mubr.bf16.mxu0 0
      %714 = vmatmul.mubr.bf16.gmra.mxu0 %v515
      %v715 = vpop.f32.mrf.mxu0
      %v716 = vadd.f32 0.0, %v715
      %v717 = vpop.f32.mrf.mxu0
      %v718 = vpop.f32.mrf.mxu0
      %v719 = vadd.f32 0.0, %v718
      %v720 = vpop.f32.mrf.mxu0
      %721 = vmatprep.mubr.bf16.mxu0 0
      %722 = vmatmul.mubr.bf16.gmra.mxu0 %v518
      %v723 = vpop.f32.mrf.mxu0
      %v724 = vadd.f32 0.0, %v723
      %v725 = vpop.f32.mrf.mxu0
      %v726 = vpop.f32.mrf.mxu0
      %v727 = vadd.f32 0.0, %v726
      %v728 = vpop.f32.mrf.mxu0
      %729 = vdwg.mxu0
      %v730 = vld [vmem:[%s3] sm:$0xf]
      %v731 = vld [vmem:[%s3 + $0x4] sm:$0xf]
      %v732 = vld [vmem:[%s3 + $0x8] sm:$0xf]
      %v733 = vld [vmem:[%s3 + $0xc] sm:$0xf]
      %v738 = vunpack.c.l.b16 %v730
      %v739 = vunpack.c.l.b16 %v731
      %v740 = vunpack.c.l.b16 %v732
      %v741 = vunpack.c.l.b16 %v733
      %v742 = vpack.c.b16 %v739, %v738
      %v743 = vpack.c.b16 %v741, %v740
      %746 = vmatprep.subr.bf16.mxu0 0
      %747 = vmatpush1.bf16.msra.mxu0 0
      %748 = vmatprep.subr.bf16.mxu0 0
      %749 = vmatpush1.bf16.msra.mxu0 0
      %750 = vmatprep.subr.bf16.mxu0 0
      %751 = vmatpush1.bf16.msra.mxu0 0
      %752 = vmatprep.subr.bf16.mxu0 0
      %753 = vmatpush1.bf16.msra.mxu0 0
      %754 = vmatprep.subr.bf16.mxu0 0
      %755 = vmatpush1.bf16.msra.mxu0 0
      %756 = vmatprep.subr.bf16.mxu0 0
      %757 = vmatpush1.bf16.msra.mxu0 0
      %758 = vmatprep.subr.bf16.mxu0 0
      %759 = vmatpush1.bf16.msra.mxu0 %v743
      %760 = vmatprep.subr.bf16.mxu0 0
      %761 = vmatpush1.bf16.msra.mxu0 %v742
      %762 = vmatprep.subr.bf16.mxu0 0
      %763 = vmatpush2.bf16.msra.mxu0 0
      %764 = vmatprep.subr.bf16.mxu0 0
      %765 = vmatpush2.bf16.msra.mxu0 0
      %766 = vmatprep.subr.bf16.mxu0 0
      %767 = vmatpush2.bf16.msra.mxu0 0
      %768 = vmatprep.subr.bf16.mxu0 0
      %769 = vmatpush2.bf16.msra.mxu0 0
      %770 = vmatprep.subr.bf16.mxu0 0
      %771 = vmatpush2.bf16.msra.mxu0 0
      %772 = vmatprep.subr.bf16.mxu0 0
      %773 = vmatpush2.bf16.msra.mxu0 0
      %774 = vmatprep.subr.bf16.mxu0 0
      %775 = vmatpush2.bf16.msra.mxu0 0
      %776 = vmatprep.subr.bf16.mxu0 0
      %777 = vmatpush2.bf16.msra.mxu0 0
      %778 = vmatprep.mubr.bf16.mxu0 0
      %779 = vmatmul.mubr.bf16.gmra.mxu0 %v497
      %v780 = vpop.f32.mrf.mxu0
      %v781 = vadd.f32 0.0, %v780
      %v782 = vpop.f32.mrf.mxu0
      %v783 = vpop.f32.mrf.mxu0
      %v784 = vadd.f32 0.0, %v783
      %v785 = vpop.f32.mrf.mxu0
      %786 = vmatprep.mubr.bf16.mxu0 0
      %787 = vmatmul.mubr.bf16.gmra.mxu0 %v500
      %v788 = vpop.f32.mrf.mxu0
      %v789 = vadd.f32 0.0, %v788
      %v790 = vpop.f32.mrf.mxu0
      %v791 = vpop.f32.mrf.mxu0
      %v792 = vadd.f32 0.0, %v791
      %v793 = vpop.f32.mrf.mxu0
      %794 = vmatprep.mubr.bf16.mxu0 0
      %795 = vmatmul.mubr.bf16.gmra.mxu0 %v503
      %v796 = vpop.f32.mrf.mxu0
      %v797 = vadd.f32 0.0, %v796
      %v798 = vpop.f32.mrf.mxu0
      %v799 = vpop.f32.mrf.mxu0
      %v800 = vadd.f32 0.0, %v799
      %v801 = vpop.f32.mrf.mxu0
      %802 = vmatprep.mubr.bf16.mxu0 0
      %803 = vmatmul.mubr.bf16.gmra.mxu0 %v506
      %v804 = vpop.f32.mrf.mxu0
      %v805 = vadd.f32 0.0, %v804
      %v806 = vpop.f32.mrf.mxu0
      %v807 = vpop.f32.mrf.mxu0
      %v808 = vadd.f32 0.0, %v807
      %v809 = vpop.f32.mrf.mxu0
      %810 = vmatprep.mubr.bf16.mxu0 0
      %811 = vmatmul.mubr.bf16.gmra.mxu0 %v509
      %v812 = vpop.f32.mrf.mxu0
      %v813 = vadd.f32 0.0, %v812
      %v814 = vpop.f32.mrf.mxu0
      %v815 = vpop.f32.mrf.mxu0
      %v816 = vadd.f32 0.0, %v815
      %v817 = vpop.f32.mrf.mxu0
      %818 = vmatprep.mubr.bf16.mxu0 0
      %819 = vmatmul.mubr.bf16.gmra.mxu0 %v512
      %v820 = vpop.f32.mrf.mxu0
      %v821 = vadd.f32 0.0, %v820
      %v822 = vpop.f32.mrf.mxu0
      %v823 = vpop.f32.mrf.mxu0
      %v824 = vadd.f32 0.0, %v823
      %v825 = vpop.f32.mrf.mxu0
      %826 = vmatprep.mubr.bf16.mxu0 0
      %827 = vmatmul.mubr.bf16.gmra.mxu0 %v515
      %v828 = vpop.f32.mrf.mxu0
      %v829 = vadd.f32 0.0, %v828
      %v830 = vpop.f32.mrf.mxu0
      %v831 = vpop.f32.mrf.mxu0
      %v832 = vadd.f32 0.0, %v831
      %v833 = vpop.f32.mrf.mxu0
      %834 = vmatprep.mubr.bf16.mxu0 0
      %835 = vmatmul.mubr.bf16.gmra.mxu0 %v518
      %v836 = vpop.f32.mrf.mxu0
      %v837 = vadd.f32 0.0, %v836
      %v838 = vpop.f32.mrf.mxu0
      %v839 = vpop.f32.mrf.mxu0
      %v840 = vadd.f32 0.0, %v839
      %v841 = vpop.f32.mrf.mxu0
      %842 = vdwg.mxu0
      %v843 = vld [vmem:[#allocation3] sm:$0xff]
      %v844 = vld [vmem:[%s5] sm:$0x1]
      %v845 = vld [vmem:[%s4] sm:$0x1]
      %v846 = vlaneseq
      %v847 = vshrl.u32 %v846, 7
      %v848 = vsub.s32 0, %v847
      %v849 = vrot.slane %v845, %v848
      %v850 = vmul.f32 %v843, %v849
      %v851 = vmul.f32 %v668, %v849
      %v852 = vmul.f32 %v671, %v849
      %v853 = vmul.f32 %v676, %v849
      %v854 = vmul.f32 %v679, %v849
      %v855 = vmul.f32 %v684, %v849
      %v856 = vmul.f32 %v687, %v849
      %v857 = vmul.f32 %v692, %v849
      %v858 = vmul.f32 %v695, %v849
      %v859 = vmul.f32 %v700, %v849
      %v860 = vmul.f32 %v703, %v849
      %v861 = vmul.f32 %v708, %v849
      %v862 = vmul.f32 %v711, %v849
      %v863 = vmul.f32 %v716, %v849
      %v864 = vmul.f32 %v719, %v849
      %v865 = vmul.f32 %v724, %v849
      %v866 = vmul.f32 %v727, %v849
      %v868 = vlaneseq
      %v869 = vshrl.u32 %v868, 7
      %v870 = vsub.s32 0, %v869
      %v871 = vrot.slane %v844, %v870
      %v873 = vadd.f32 %v871, %v850
      %v874 = vadd.f32 %v871, %v851
      %v875 = vadd.f32 %v871, %v852
      %v876 = vadd.f32 %v871, %v853
      %v877 = vadd.f32 %v871, %v854
      %v878 = vadd.f32 %v871, %v855
      %v879 = vadd.f32 %v871, %v856
      %v880 = vadd.f32 %v871, %v857
      %v881 = vadd.f32 %v871, %v858
      %v882 = vadd.f32 %v871, %v859
      %v883 = vadd.f32 %v871, %v860
      %v884 = vadd.f32 %v871, %v861
      %v885 = vadd.f32 %v871, %v862
      %v886 = vadd.f32 %v871, %v863
      %v887 = vadd.f32 %v871, %v864
      %v888 = vadd.f32 %v871, %v865
      %v889 = vadd.f32 %v871, %v866
      %v890 = vld [vmem:[%s4 + $0x1] sm:$0x1]
      %v891 = vlaneseq
      %v892 = vshrl.u32 %v891, 7
      %v893 = vsub.s32 0, %v892
      %v894 = vrot.slane %v890, %v893
      %v895 = vmul.f32 %v843, %v894
      %v896 = vmul.f32 %v668, %v894
      %v897 = vmul.f32 %v671, %v894
      %v898 = vmul.f32 %v676, %v894
      %v899 = vmul.f32 %v679, %v894
      %v900 = vmul.f32 %v684, %v894
      %v901 = vmul.f32 %v687, %v894
      %v902 = vmul.f32 %v692, %v894
      %v903 = vmul.f32 %v695, %v894
      %v904 = vmul.f32 %v700, %v894
      %v905 = vmul.f32 %v703, %v894
      %v906 = vmul.f32 %v708, %v894
      %v907 = vmul.f32 %v711, %v894
      %v908 = vmul.f32 %v716, %v894
      %v909 = vmul.f32 %v719, %v894
      %v910 = vmul.f32 %v724, %v894
      %v911 = vmul.f32 %v727, %v894
      %vm929 = vcmask 1046528
      %v930 = vrot.slane %v895, 1
      %v931 = vrot.slane %v896, 1
      %v932 = vsel %vm929, %v930, %v931
      %v933 = vrot.slane %v897, 1
      %v934 = vsel %vm929, %v931, %v933
      %v935 = vrot.slane %v898, 1
      %v936 = vsel %vm929, %v933, %v935
      %v937 = vrot.slane %v899, 1
      %v938 = vsel %vm929, %v935, %v937
      %v939 = vrot.slane %v900, 1
      %v940 = vsel %vm929, %v937, %v939
      %v941 = vrot.slane %v901, 1
      %v942 = vsel %vm929, %v939, %v941
      %v943 = vrot.slane %v902, 1
      %v944 = vsel %vm929, %v941, %v943
      %v945 = vrot.slane %v903, 1
      %v946 = vsel %vm929, %v943, %v945
      %v947 = vrot.slane %v904, 1
      %v948 = vsel %vm929, %v945, %v947
      %v949 = vrot.slane %v905, 1
      %v950 = vsel %vm929, %v947, %v949
      %v951 = vrot.slane %v906, 1
      %v952 = vsel %vm929, %v949, %v951
      %v953 = vrot.slane %v907, 1
      %v954 = vsel %vm929, %v951, %v953
      %v955 = vrot.slane %v908, 1
      %v956 = vsel %vm929, %v953, %v955
      %v957 = vrot.slane %v909, 1
      %v958 = vsel %vm929, %v955, %v957
      %v959 = vrot.slane %v910, 1
      %v960 = vsel %vm929, %v957, %v959
      %v961 = vrot.slane %v911, 1
      %v962 = vsel %vm929, %v959, %v961
      %v980 = vadd.f32 %v873, %v932
      %v981 = vadd.f32 %v874, %v934
      %v982 = vadd.f32 %v875, %v936
      %v983 = vadd.f32 %v876, %v938
      %v984 = vadd.f32 %v877, %v940
      %v985 = vadd.f32 %v878, %v942
      %v986 = vadd.f32 %v879, %v944
      %v987 = vadd.f32 %v880, %v946
      %v988 = vadd.f32 %v881, %v948
      %v989 = vadd.f32 %v882, %v950
      %v990 = vadd.f32 %v883, %v952
      %v991 = vadd.f32 %v884, %v954
      %v992 = vadd.f32 %v885, %v956
      %v993 = vadd.f32 %v886, %v958
      %v994 = vadd.f32 %v887, %v960
      %v995 = vadd.f32 %v888, %v962
      %v996 = vadd.f32 %v889, %v961
      %v997 = vld [vmem:[%s4 + $0x2] sm:$0x1]
      %v998 = vlaneseq
      %v999 = vshrl.u32 %v998, 7
      %v1000 = vsub.s32 0, %v999
      %v1001 = vrot.slane %v997, %v1000
      %v1002 = vmul.f32 %v843, %v1001
      %v1003 = vmul.f32 %v668, %v1001
      %v1004 = vmul.f32 %v671, %v1001
      %v1005 = vmul.f32 %v676, %v1001
      %v1006 = vmul.f32 %v679, %v1001
      %v1007 = vmul.f32 %v684, %v1001
      %v1008 = vmul.f32 %v687, %v1001
      %v1009 = vmul.f32 %v692, %v1001
      %v1010 = vmul.f32 %v695, %v1001
      %v1011 = vmul.f32 %v700, %v1001
      %v1012 = vmul.f32 %v703, %v1001
      %v1013 = vmul.f32 %v708, %v1001
      %v1014 = vmul.f32 %v711, %v1001
      %v1015 = vmul.f32 %v716, %v1001
      %v1016 = vmul.f32 %v719, %v1001
      %v1017 = vmul.f32 %v724, %v1001
      %v1018 = vmul.f32 %v727, %v1001
      %vm1036 = vcmask 1045504
      %v1037 = vrot.slane %v1002, 2
      %v1038 = vrot.slane %v1003, 2
      %v1039 = vsel %vm1036, %v1037, %v1038
      %v1040 = vrot.slane %v1004, 2
      %v1041 = vsel %vm1036, %v1038, %v1040
      %v1042 = vrot.slane %v1005, 2
      %v1043 = vsel %vm1036, %v1040, %v1042
      %v1044 = vrot.slane %v1006, 2
      %v1045 = vsel %vm1036, %v1042, %v1044
      %v1046 = vrot.slane %v1007, 2
      %v1047 = vsel %vm1036, %v1044, %v1046
      %v1048 = vrot.slane %v1008, 2
      %v1049 = vsel %vm1036, %v1046, %v1048
      %v1050 = vrot.slane %v1009, 2
      %v1051 = vsel %vm1036, %v1048, %v1050
      %v1052 = vrot.slane %v1010, 2
      %v1053 = vsel %vm1036, %v1050, %v1052
      %v1054 = vrot.slane %v1011, 2
      %v1055 = vsel %vm1036, %v1052, %v1054
      %v1056 = vrot.slane %v1012, 2
      %v1057 = vsel %vm1036, %v1054, %v1056
      %v1058 = vrot.slane %v1013, 2
      %v1059 = vsel %vm1036, %v1056, %v1058
      %v1060 = vrot.slane %v1014, 2
      %v1061 = vsel %vm1036, %v1058, %v1060
      %v1062 = vrot.slane %v1015, 2
      %v1063 = vsel %vm1036, %v1060, %v1062
      %v1064 = vrot.slane %v1016, 2
      %v1065 = vsel %vm1036, %v1062, %v1064
      %v1066 = vrot.slane %v1017, 2
      %v1067 = vsel %vm1036, %v1064, %v1066
      %v1068 = vrot.slane %v1018, 2
      %v1069 = vsel %vm1036, %v1066, %v1068
      %v1087 = vadd.f32 %v980, %v1039
      %v1088 = vadd.f32 %v981, %v1041
      %v1089 = vadd.f32 %v982, %v1043
      %v1090 = vadd.f32 %v983, %v1045
      %v1091 = vadd.f32 %v984, %v1047
      %v1092 = vadd.f32 %v985, %v1049
      %v1093 = vadd.f32 %v986, %v1051
      %v1094 = vadd.f32 %v987, %v1053
      %v1095 = vadd.f32 %v988, %v1055
      %v1096 = vadd.f32 %v989, %v1057
      %v1097 = vadd.f32 %v990, %v1059
      %v1098 = vadd.f32 %v991, %v1061
      %v1099 = vadd.f32 %v992, %v1063
      %v1100 = vadd.f32 %v993, %v1065
      %v1101 = vadd.f32 %v994, %v1067
      %v1102 = vadd.f32 %v995, %v1069
      %v1103 = vadd.f32 %v996, %v1068
      %v1104 = vld [vmem:[%s4 + $0x3] sm:$0x1]
      %v1105 = vlaneseq
      %v1106 = vshrl.u32 %v1105, 7
      %v1107 = vsub.s32 0, %v1106
      %v1108 = vrot.slane %v1104, %v1107
      %v1109 = vmul.f32 %v668, %v1108
      %v1110 = vmul.f32 %v671, %v1108
      %v1111 = vmul.f32 %v676, %v1108
      %v1112 = vmul.f32 %v679, %v1108
      %v1113 = vmul.f32 %v684, %v1108
      %v1114 = vmul.f32 %v687, %v1108
      %v1115 = vmul.f32 %v692, %v1108
      %v1116 = vmul.f32 %v695, %v1108
      %v1117 = vmul.f32 %v700, %v1108
      %v1118 = vmul.f32 %v703, %v1108
      %v1119 = vmul.f32 %v708, %v1108
      %v1120 = vmul.f32 %v711, %v1108
      %v1121 = vmul.f32 %v716, %v1108
      %v1122 = vmul.f32 %v719, %v1108
      %v1123 = vmul.f32 %v724, %v1108
      %v1124 = vmul.f32 %v727, %v1108
      %vm1141 = vcmask 1044480
      %v1142 = vrot.slane %v1109, 3
      %v1143 = vrot.slane %v1110, 3
      %v1144 = vsel %vm1141, %v1142, %v1143
      %v1145 = vrot.slane %v1111, 3
      %v1146 = vsel %vm1141, %v1143, %v1145
      %v1147 = vrot.slane %v1112, 3
      %v1148 = vsel %vm1141, %v1145, %v1147
      %v1149 = vrot.slane %v1113, 3
      %v1150 = vsel %vm1141, %v1147, %v1149
      %v1151 = vrot.slane %v1114, 3
      %v1152 = vsel %vm1141, %v1149, %v1151
      %v1153 = vrot.slane %v1115, 3
      %v1154 = vsel %vm1141, %v1151, %v1153
      %v1155 = vrot.slane %v1116, 3
      %v1156 = vsel %vm1141, %v1153, %v1155
      %v1157 = vrot.slane %v1117, 3
      %v1158 = vsel %vm1141, %v1155, %v1157
      %v1159 = vrot.slane %v1118, 3
      %v1160 = vsel %vm1141, %v1157, %v1159
      %v1161 = vrot.slane %v1119, 3
      %v1162 = vsel %vm1141, %v1159, %v1161
      %v1163 = vrot.slane %v1120, 3
      %v1164 = vsel %vm1141, %v1161, %v1163
      %v1165 = vrot.slane %v1121, 3
      %v1166 = vsel %vm1141, %v1163, %v1165
      %v1167 = vrot.slane %v1122, 3
      %v1168 = vsel %vm1141, %v1165, %v1167
      %v1169 = vrot.slane %v1123, 3
      %v1170 = vsel %vm1141, %v1167, %v1169
      %v1171 = vrot.slane %v1124, 3
      %v1172 = vsel %vm1141, %v1169, %v1171
      %v1190 = vadd.f32 %v1087, %v1142
      %v1191 = vadd.f32 %v1088, %v1144
      %v1192 = vadd.f32 %v1089, %v1146
      %v1193 = vadd.f32 %v1090, %v1148
      %v1194 = vadd.f32 %v1091, %v1150
      %v1195 = vadd.f32 %v1092, %v1152
      %v1196 = vadd.f32 %v1093, %v1154
      %v1197 = vadd.f32 %v1094, %v1156
      %v1198 = vadd.f32 %v1095, %v1158
      %v1199 = vadd.f32 %v1096, %v1160
      %v1200 = vadd.f32 %v1097, %v1162
      %v1201 = vadd.f32 %v1098, %v1164
      %v1202 = vadd.f32 %v1099, %v1166
      %v1203 = vadd.f32 %v1100, %v1168
      %v1204 = vadd.f32 %v1101, %v1170
      %v1205 = vadd.f32 %v1102, %v1172
      %v1206 = vadd.f32 %v1103, %v1171
      %vm1207 = vcmask 523264
      %1208 = vst.msk [vmem:[#allocation3] sm:$0xff] %vm1207, %v727
      %v1209 = vsub.f32 0.0, %v1190
      %v1210 = vsub.f32 0.0, %v1191
      %v1211 = vsub.f32 0.0, %v1192
      %v1212 = vsub.f32 0.0, %v1193
      %v1213 = vsub.f32 0.0, %v1194
      %v1214 = vsub.f32 0.0, %v1195
      %v1215 = vsub.f32 0.0, %v1196
      %v1216 = vsub.f32 0.0, %v1197
      %v1217 = vsub.f32 0.0, %v1198
      %v1218 = vsub.f32 0.0, %v1199
      %v1219 = vsub.f32 0.0, %v1200
      %v1220 = vsub.f32 0.0, %v1201
      %v1221 = vsub.f32 0.0, %v1202
      %v1222 = vsub.f32 0.0, %v1203
      %v1223 = vsub.f32 0.0, %v1204
      %v1224 = vsub.f32 0.0, %v1205
      %v1225 = vsub.f32 0.0, %v1206
      %v1226 = vmul.f32 %v1209, 1.442695
      %v1227 = vpow.pop %v1226
      %v1228 = vmul.f32 %v1210, 1.442695
      %v1229 = vpow.pop %v1228
      %v1230 = vmul.f32 %v1211, 1.442695
      %v1231 = vpow.pop %v1230
      %v1232 = vmul.f32 %v1212, 1.442695
      %v1233 = vpow.pop %v1232
      %v1234 = vmul.f32 %v1213, 1.442695
      %v1235 = vpow.pop %v1234
      %v1236 = vmul.f32 %v1214, 1.442695
      %v1237 = vpow.pop %v1236
      %v1238 = vmul.f32 %v1215, 1.442695
      %v1239 = vpow.pop %v1238
      %v1240 = vmul.f32 %v1216, 1.442695
      %v1241 = vpow.pop %v1240
      %v1242 = vmul.f32 %v1217, 1.442695
      %v1243 = vpow.pop %v1242
      %v1244 = vmul.f32 %v1218, 1.442695
      %v1245 = vpow.pop %v1244
      %v1246 = vmul.f32 %v1219, 1.442695
      %v1247 = vpow.pop %v1246
      %v1248 = vmul.f32 %v1220, 1.442695
      %v1249 = vpow.pop %v1248
      %v1250 = vmul.f32 %v1221, 1.442695
      %v1251 = vpow.pop %v1250
      %v1252 = vmul.f32 %v1222, 1.442695
      %v1253 = vpow.pop %v1252
      %v1254 = vmul.f32 %v1223, 1.442695
      %v1255 = vpow.pop %v1254
      %v1256 = vmul.f32 %v1224, 1.442695
      %v1257 = vpow.pop %v1256
      %v1258 = vmul.f32 %v1225, 1.442695
      %v1259 = vpow.pop %v1258
      %v1260 = vadd.f32 %v1227, 1.0
      %v1261 = vadd.f32 %v1229, 1.0
      %v1262 = vadd.f32 %v1231, 1.0
      %v1263 = vadd.f32 %v1233, 1.0
      %v1264 = vadd.f32 %v1235, 1.0
      %v1265 = vadd.f32 %v1237, 1.0
      %v1266 = vadd.f32 %v1239, 1.0
      %v1267 = vadd.f32 %v1241, 1.0
      %v1268 = vadd.f32 %v1243, 1.0
      %v1269 = vadd.f32 %v1245, 1.0
      %v1270 = vadd.f32 %v1247, 1.0
      %v1271 = vadd.f32 %v1249, 1.0
      %v1272 = vadd.f32 %v1251, 1.0
      %v1273 = vadd.f32 %v1253, 1.0
      %v1274 = vadd.f32 %v1255, 1.0
      %v1275 = vadd.f32 %v1257, 1.0
      %v1276 = vadd.f32 %v1259, 1.0
      %v1277 = vrcp.pop %v1260
      %v1278 = vrcp.pop %v1261
      %v1279 = vrcp.pop %v1262
      %v1280 = vrcp.pop %v1263
      %v1281 = vrcp.pop %v1264
      %v1282 = vrcp.pop %v1265
      %v1283 = vrcp.pop %v1266
      %v1284 = vrcp.pop %v1267
      %v1285 = vrcp.pop %v1268
      %v1286 = vrcp.pop %v1269
      %v1287 = vrcp.pop %v1270
      %v1288 = vrcp.pop %v1271
      %v1289 = vrcp.pop %v1272
      %v1290 = vrcp.pop %v1273
      %v1291 = vrcp.pop %v1274
      %v1292 = vrcp.pop %v1275
      %v1293 = vrcp.pop %v1276
      %v1294 = vmul.f32 %v1190, %v1277
      %v1295 = vmul.f32 %v1191, %v1278
      %v1296 = vmul.f32 %v1192, %v1279
      %v1297 = vmul.f32 %v1193, %v1280
      %v1298 = vmul.f32 %v1194, %v1281
      %v1299 = vmul.f32 %v1195, %v1282
      %v1300 = vmul.f32 %v1196, %v1283
      %v1301 = vmul.f32 %v1197, %v1284
      %v1302 = vmul.f32 %v1198, %v1285
      %v1303 = vmul.f32 %v1199, %v1286
      %v1304 = vmul.f32 %v1200, %v1287
      %v1305 = vmul.f32 %v1201, %v1288
      %v1306 = vmul.f32 %v1202, %v1289
      %v1307 = vmul.f32 %v1203, %v1290
      %v1308 = vmul.f32 %v1204, %v1291
      %v1309 = vmul.f32 %v1205, %v1292
      %v1310 = vmul.f32 %v1206, %v1293
      %v1311 = vld [vmem:[#allocation4] sm:$0xff]
      %v1312 = vld [vmem:[%s7] sm:$0x1]
      %v1313 = vld [vmem:[%s6] sm:$0x1]
      %v1314 = vlaneseq
      %v1315 = vshrl.u32 %v1314, 7
      %v1316 = vsub.s32 0, %v1315
      %v1317 = vrot.slane %v1313, %v1316
      %v1318 = vmul.f32 %v1311, %v1317
      %v1319 = vmul.f32 %v781, %v1317
      %v1320 = vmul.f32 %v784, %v1317
      %v1321 = vmul.f32 %v789, %v1317
      %v1322 = vmul.f32 %v792, %v1317
      %v1323 = vmul.f32 %v797, %v1317
      %v1324 = vmul.f32 %v800, %v1317
      %v1325 = vmul.f32 %v805, %v1317
      %v1326 = vmul.f32 %v808, %v1317
      %v1327 = vmul.f32 %v813, %v1317
      %v1328 = vmul.f32 %v816, %v1317
      %v1329 = vmul.f32 %v821, %v1317
      %v1330 = vmul.f32 %v824, %v1317
      %v1331 = vmul.f32 %v829, %v1317
      %v1332 = vmul.f32 %v832, %v1317
      %v1333 = vmul.f32 %v837, %v1317
      %v1334 = vmul.f32 %v840, %v1317
      %v1336 = vlaneseq
      %v1337 = vshrl.u32 %v1336, 7
      %v1338 = vsub.s32 0, %v1337
      %v1339 = vrot.slane %v1312, %v1338
      %v1341 = vadd.f32 %v1339, %v1318
      %v1342 = vadd.f32 %v1339, %v1319
      %v1343 = vadd.f32 %v1339, %v1320
      %v1344 = vadd.f32 %v1339, %v1321
      %v1345 = vadd.f32 %v1339, %v1322
      %v1346 = vadd.f32 %v1339, %v1323
      %v1347 = vadd.f32 %v1339, %v1324
      %v1348 = vadd.f32 %v1339, %v1325
      %v1349 = vadd.f32 %v1339, %v1326
      %v1350 = vadd.f32 %v1339, %v1327
      %v1351 = vadd.f32 %v1339, %v1328
      %v1352 = vadd.f32 %v1339, %v1329
      %v1353 = vadd.f32 %v1339, %v1330
      %v1354 = vadd.f32 %v1339, %v1331
      %v1355 = vadd.f32 %v1339, %v1332
      %v1356 = vadd.f32 %v1339, %v1333
      %v1357 = vadd.f32 %v1339, %v1334
      %v1358 = vld [vmem:[%s6 + $0x1] sm:$0x1]
      %v1359 = vlaneseq
      %v1360 = vshrl.u32 %v1359, 7
      %v1361 = vsub.s32 0, %v1360
      %v1362 = vrot.slane %v1358, %v1361
      %v1363 = vmul.f32 %v1311, %v1362
      %v1364 = vmul.f32 %v781, %v1362
      %v1365 = vmul.f32 %v784, %v1362
      %v1366 = vmul.f32 %v789, %v1362
      %v1367 = vmul.f32 %v792, %v1362
      %v1368 = vmul.f32 %v797, %v1362
      %v1369 = vmul.f32 %v800, %v1362
      %v1370 = vmul.f32 %v805, %v1362
      %v1371 = vmul.f32 %v808, %v1362
      %v1372 = vmul.f32 %v813, %v1362
      %v1373 = vmul.f32 %v816, %v1362
      %v1374 = vmul.f32 %v821, %v1362
      %v1375 = vmul.f32 %v824, %v1362
      %v1376 = vmul.f32 %v829, %v1362
      %v1377 = vmul.f32 %v832, %v1362
      %v1378 = vmul.f32 %v837, %v1362
      %v1379 = vmul.f32 %v840, %v1362
      %v1397 = vrot.slane %v1363, 1
      %v1398 = vrot.slane %v1364, 1
      %v1399 = vsel %vm929, %v1397, %v1398
      %v1400 = vrot.slane %v1365, 1
      %v1401 = vsel %vm929, %v1398, %v1400
      %v1402 = vrot.slane %v1366, 1
      %v1403 = vsel %vm929, %v1400, %v1402
      %v1404 = vrot.slane %v1367, 1
      %v1405 = vsel %vm929, %v1402, %v1404
      %v1406 = vrot.slane %v1368, 1
      %v1407 = vsel %vm929, %v1404, %v1406
      %v1408 = vrot.slane %v1369, 1
      %v1409 = vsel %vm929, %v1406, %v1408
      %v1410 = vrot.slane %v1370, 1
      %v1411 = vsel %vm929, %v1408, %v1410
      %v1412 = vrot.slane %v1371, 1
      %v1413 = vsel %vm929, %v1410, %v1412
      %v1414 = vrot.slane %v1372, 1
      %v1415 = vsel %vm929, %v1412, %v1414
      %v1416 = vrot.slane %v1373, 1
      %v1417 = vsel %vm929, %v1414, %v1416
      %v1418 = vrot.slane %v1374, 1
      %v1419 = vsel %vm929, %v1416, %v1418
      %v1420 = vrot.slane %v1375, 1
      %v1421 = vsel %vm929, %v1418, %v1420
      %v1422 = vrot.slane %v1376, 1
      %v1423 = vsel %vm929, %v1420, %v1422
      %v1424 = vrot.slane %v1377, 1
      %v1425 = vsel %vm929, %v1422, %v1424
      %v1426 = vrot.slane %v1378, 1
      %v1427 = vsel %vm929, %v1424, %v1426
      %v1428 = vrot.slane %v1379, 1
      %v1429 = vsel %vm929, %v1426, %v1428
      %v1447 = vadd.f32 %v1341, %v1399
      %v1448 = vadd.f32 %v1342, %v1401
      %v1449 = vadd.f32 %v1343, %v1403
      %v1450 = vadd.f32 %v1344, %v1405
      %v1451 = vadd.f32 %v1345, %v1407
      %v1452 = vadd.f32 %v1346, %v1409
      %v1453 = vadd.f32 %v1347, %v1411
      %v1454 = vadd.f32 %v1348, %v1413
      %v1455 = vadd.f32 %v1349, %v1415
      %v1456 = vadd.f32 %v1350, %v1417
      %v1457 = vadd.f32 %v1351, %v1419
      %v1458 = vadd.f32 %v1352, %v1421
      %v1459 = vadd.f32 %v1353, %v1423
      %v1460 = vadd.f32 %v1354, %v1425
      %v1461 = vadd.f32 %v1355, %v1427
      %v1462 = vadd.f32 %v1356, %v1429
      %v1463 = vadd.f32 %v1357, %v1428
      %v1464 = vld [vmem:[%s6 + $0x2] sm:$0x1]
      %v1465 = vlaneseq
      %v1466 = vshrl.u32 %v1465, 7
      %v1467 = vsub.s32 0, %v1466
      %v1468 = vrot.slane %v1464, %v1467
      %v1469 = vmul.f32 %v1311, %v1468
      %v1470 = vmul.f32 %v781, %v1468
      %v1471 = vmul.f32 %v784, %v1468
      %v1472 = vmul.f32 %v789, %v1468
      %v1473 = vmul.f32 %v792, %v1468
      %v1474 = vmul.f32 %v797, %v1468
      %v1475 = vmul.f32 %v800, %v1468
      %v1476 = vmul.f32 %v805, %v1468
      %v1477 = vmul.f32 %v808, %v1468
      %v1478 = vmul.f32 %v813, %v1468
      %v1479 = vmul.f32 %v816, %v1468
      %v1480 = vmul.f32 %v821, %v1468
      %v1481 = vmul.f32 %v824, %v1468
      %v1482 = vmul.f32 %v829, %v1468
      %v1483 = vmul.f32 %v832, %v1468
      %v1484 = vmul.f32 %v837, %v1468
      %v1485 = vmul.f32 %v840, %v1468
      %v1503 = vrot.slane %v1469, 2
      %v1504 = vrot.slane %v1470, 2
      %v1505 = vsel %vm1036, %v1503, %v1504
      %v1506 = vrot.slane %v1471, 2
      %v1507 = vsel %vm1036, %v1504, %v1506
      %v1508 = vrot.slane %v1472, 2
      %v1509 = vsel %vm1036, %v1506, %v1508
      %v1510 = vrot.slane %v1473, 2
      %v1511 = vsel %vm1036, %v1508, %v1510
      %v1512 = vrot.slane %v1474, 2
      %v1513 = vsel %vm1036, %v1510, %v1512
      %v1514 = vrot.slane %v1475, 2
      %v1515 = vsel %vm1036, %v1512, %v1514
      %v1516 = vrot.slane %v1476, 2
      %v1517 = vsel %vm1036, %v1514, %v1516
      %v1518 = vrot.slane %v1477, 2
      %v1519 = vsel %vm1036, %v1516, %v1518
      %v1520 = vrot.slane %v1478, 2
      %v1521 = vsel %vm1036, %v1518, %v1520
      %v1522 = vrot.slane %v1479, 2
      %v1523 = vsel %vm1036, %v1520, %v1522
      %v1524 = vrot.slane %v1480, 2
      %v1525 = vsel %vm1036, %v1522, %v1524
      %v1526 = vrot.slane %v1481, 2
      %v1527 = vsel %vm1036, %v1524, %v1526
      %v1528 = vrot.slane %v1482, 2
      %v1529 = vsel %vm1036, %v1526, %v1528
      %v1530 = vrot.slane %v1483, 2
      %v1531 = vsel %vm1036, %v1528, %v1530
      %v1532 = vrot.slane %v1484, 2
      %v1533 = vsel %vm1036, %v1530, %v1532
      %v1534 = vrot.slane %v1485, 2
      %v1535 = vsel %vm1036, %v1532, %v1534
      %v1553 = vadd.f32 %v1447, %v1505
      %v1554 = vadd.f32 %v1448, %v1507
      %v1555 = vadd.f32 %v1449, %v1509
      %v1556 = vadd.f32 %v1450, %v1511
      %v1557 = vadd.f32 %v1451, %v1513
      %v1558 = vadd.f32 %v1452, %v1515
      %v1559 = vadd.f32 %v1453, %v1517
      %v1560 = vadd.f32 %v1454, %v1519
      %v1561 = vadd.f32 %v1455, %v1521
      %v1562 = vadd.f32 %v1456, %v1523
      %v1563 = vadd.f32 %v1457, %v1525
      %v1564 = vadd.f32 %v1458, %v1527
      %v1565 = vadd.f32 %v1459, %v1529
      %v1566 = vadd.f32 %v1460, %v1531
      %v1567 = vadd.f32 %v1461, %v1533
      %v1568 = vadd.f32 %v1462, %v1535
      %v1569 = vadd.f32 %v1463, %v1534
      %v1570 = vld [vmem:[%s6 + $0x3] sm:$0x1]
      %v1571 = vlaneseq
      %v1572 = vshrl.u32 %v1571, 7
      %v1573 = vsub.s32 0, %v1572
      %v1574 = vrot.slane %v1570, %v1573
      %v1575 = vmul.f32 %v781, %v1574
      %v1576 = vmul.f32 %v784, %v1574
      %v1577 = vmul.f32 %v789, %v1574
      %v1578 = vmul.f32 %v792, %v1574
      %v1579 = vmul.f32 %v797, %v1574
      %v1580 = vmul.f32 %v800, %v1574
      %v1581 = vmul.f32 %v805, %v1574
      %v1582 = vmul.f32 %v808, %v1574
      %v1583 = vmul.f32 %v813, %v1574
      %v1584 = vmul.f32 %v816, %v1574
      %v1585 = vmul.f32 %v821, %v1574
      %v1586 = vmul.f32 %v824, %v1574
      %v1587 = vmul.f32 %v829, %v1574
      %v1588 = vmul.f32 %v832, %v1574
      %v1589 = vmul.f32 %v837, %v1574
      %v1590 = vmul.f32 %v840, %v1574
      %v1607 = vrot.slane %v1575, 3
      %v1608 = vrot.slane %v1576, 3
      %v1609 = vsel %vm1141, %v1607, %v1608
      %v1610 = vrot.slane %v1577, 3
      %v1611 = vsel %vm1141, %v1608, %v1610
      %v1612 = vrot.slane %v1578, 3
      %v1613 = vsel %vm1141, %v1610, %v1612
      %v1614 = vrot.slane %v1579, 3
      %v1615 = vsel %vm1141, %v1612, %v1614
      %v1616 = vrot.slane %v1580, 3
      %v1617 = vsel %vm1141, %v1614, %v1616
      %v1618 = vrot.slane %v1581, 3
      %v1619 = vsel %vm1141, %v1616, %v1618
      %v1620 = vrot.slane %v1582, 3
      %v1621 = vsel %vm1141, %v1618, %v1620
      %v1622 = vrot.slane %v1583, 3
      %v1623 = vsel %vm1141, %v1620, %v1622
      %v1624 = vrot.slane %v1584, 3
      %v1625 = vsel %vm1141, %v1622, %v1624
      %v1626 = vrot.slane %v1585, 3
      %v1627 = vsel %vm1141, %v1624, %v1626
      %v1628 = vrot.slane %v1586, 3
      %v1629 = vsel %vm1141, %v1626, %v1628
      %v1630 = vrot.slane %v1587, 3
      %v1631 = vsel %vm1141, %v1628, %v1630
      %v1632 = vrot.slane %v1588, 3
      %v1633 = vsel %vm1141, %v1630, %v1632
      %v1634 = vrot.slane %v1589, 3
      %v1635 = vsel %vm1141, %v1632, %v1634
      %v1636 = vrot.slane %v1590, 3
      %v1637 = vsel %vm1141, %v1634, %v1636
      %v1655 = vadd.f32 %v1553, %v1607
      %v1656 = vadd.f32 %v1554, %v1609
      %v1657 = vadd.f32 %v1555, %v1611
      %v1658 = vadd.f32 %v1556, %v1613
      %v1659 = vadd.f32 %v1557, %v1615
      %v1660 = vadd.f32 %v1558, %v1617
      %v1661 = vadd.f32 %v1559, %v1619
      %v1662 = vadd.f32 %v1560, %v1621
      %v1663 = vadd.f32 %v1561, %v1623
      %v1664 = vadd.f32 %v1562, %v1625
      %v1665 = vadd.f32 %v1563, %v1627
      %v1666 = vadd.f32 %v1564, %v1629
      %v1667 = vadd.f32 %v1565, %v1631
      %v1668 = vadd.f32 %v1566, %v1633
      %v1669 = vadd.f32 %v1567, %v1635
      %v1670 = vadd.f32 %v1568, %v1637
      %v1671 = vadd.f32 %v1569, %v1636
      %1672 = vst.msk [vmem:[#allocation4] sm:$0xff] %vm495, %v840
      %v1673 = vsub.f32 0.0, %v1655
      %v1674 = vsub.f32 0.0, %v1656
      %v1675 = vsub.f32 0.0, %v1657
      %v1676 = vsub.f32 0.0, %v1658
      %v1677 = vsub.f32 0.0, %v1659
      %v1678 = vsub.f32 0.0, %v1660
      %v1679 = vsub.f32 0.0, %v1661
      %v1680 = vsub.f32 0.0, %v1662
      %v1681 = vsub.f32 0.0, %v1663
      %v1682 = vsub.f32 0.0, %v1664
      %v1683 = vsub.f32 0.0, %v1665
      %v1684 = vsub.f32 0.0, %v1666
      %v1685 = vsub.f32 0.0, %v1667
      %v1686 = vsub.f32 0.0, %v1668
      %v1687 = vsub.f32 0.0, %v1669
      %v1688 = vsub.f32 0.0, %v1670
      %v1689 = vsub.f32 0.0, %v1671
      %v1690 = vmul.f32 %v1673, 1.442695
      %v1691 = vpow.pop %v1690
      %v1692 = vmul.f32 %v1674, 1.442695
      %v1693 = vpow.pop %v1692
      %v1694 = vmul.f32 %v1675, 1.442695
      %v1695 = vpow.pop %v1694
      %v1696 = vmul.f32 %v1676, 1.442695
      %v1697 = vpow.pop %v1696
      %v1698 = vmul.f32 %v1677, 1.442695
      %v1699 = vpow.pop %v1698
      %v1700 = vmul.f32 %v1678, 1.442695
      %v1701 = vpow.pop %v1700
      %v1702 = vmul.f32 %v1679, 1.442695
      %v1703 = vpow.pop %v1702
      %v1704 = vmul.f32 %v1680, 1.442695
      %v1705 = vpow.pop %v1704
      %v1706 = vmul.f32 %v1681, 1.442695
      %v1707 = vpow.pop %v1706
      %v1708 = vmul.f32 %v1682, 1.442695
      %v1709 = vpow.pop %v1708
      %v1710 = vmul.f32 %v1683, 1.442695
      %v1711 = vpow.pop %v1710
      %v1712 = vmul.f32 %v1684, 1.442695
      %v1713 = vpow.pop %v1712
      %v1714 = vmul.f32 %v1685, 1.442695
      %v1715 = vpow.pop %v1714
      %v1716 = vmul.f32 %v1686, 1.442695
      %v1717 = vpow.pop %v1716
      %v1718 = vmul.f32 %v1687, 1.442695
      %v1719 = vpow.pop %v1718
      %v1720 = vmul.f32 %v1688, 1.442695
      %v1721 = vpow.pop %v1720
      %v1722 = vmul.f32 %v1689, 1.442695
      %v1723 = vpow.pop %v1722
      %v1724 = vadd.f32 %v1691, 1.0
      %v1725 = vadd.f32 %v1693, 1.0
      %v1726 = vadd.f32 %v1695, 1.0
      %v1727 = vadd.f32 %v1697, 1.0
      %v1728 = vadd.f32 %v1699, 1.0
      %v1729 = vadd.f32 %v1701, 1.0
      %v1730 = vadd.f32 %v1703, 1.0
      %v1731 = vadd.f32 %v1705, 1.0
      %v1732 = vadd.f32 %v1707, 1.0
      %v1733 = vadd.f32 %v1709, 1.0
      %v1734 = vadd.f32 %v1711, 1.0
      %v1735 = vadd.f32 %v1713, 1.0
      %v1736 = vadd.f32 %v1715, 1.0
      %v1737 = vadd.f32 %v1717, 1.0
      %v1738 = vadd.f32 %v1719, 1.0
      %v1739 = vadd.f32 %v1721, 1.0
      %v1740 = vadd.f32 %v1723, 1.0
      %v1741 = vrcp.pop %v1724
      %v1742 = vrcp.pop %v1725
      %v1743 = vrcp.pop %v1726
      %v1744 = vrcp.pop %v1727
      %v1745 = vrcp.pop %v1728
      %v1746 = vrcp.pop %v1729
      %v1747 = vrcp.pop %v1730
      %v1748 = vrcp.pop %v1731
      %v1749 = vrcp.pop %v1732
      %v1750 = vrcp.pop %v1733
      %v1751 = vrcp.pop %v1734
      %v1752 = vrcp.pop %v1735
      %v1753 = vrcp.pop %v1736
      %v1754 = vrcp.pop %v1737
      %v1755 = vrcp.pop %v1738
      %v1756 = vrcp.pop %v1739
      %v1757 = vrcp.pop %v1740
      %v1758 = vmul.f32 %v1655, %v1741
      %v1759 = vmul.f32 %v1656, %v1742
      %v1760 = vmul.f32 %v1657, %v1743
      %v1761 = vmul.f32 %v1658, %v1744
      %v1762 = vmul.f32 %v1659, %v1745
      %v1763 = vmul.f32 %v1660, %v1746
      %v1764 = vmul.f32 %v1661, %v1747
      %v1765 = vmul.f32 %v1662, %v1748
      %v1766 = vmul.f32 %v1663, %v1749
      %v1767 = vmul.f32 %v1664, %v1750
      %v1768 = vmul.f32 %v1665, %v1751
      %v1769 = vmul.f32 %v1666, %v1752
      %v1770 = vmul.f32 %v1667, %v1753
      %v1771 = vmul.f32 %v1668, %v1754
      %v1772 = vmul.f32 %v1669, %v1755
      %v1773 = vmul.f32 %v1670, %v1756
      %v1774 = vmul.f32 %v1671, %v1757
      %v1775 = vld [vmem:[%s8] sm:$0x1]
      %v1777 = vlaneseq
      %v1778 = vshrl.u32 %v1777, 7
      %v1779 = vsub.s32 0, %v1778
      %v1780 = vrot.slane %v1775, %v1779
      %1781 = vrot.lane.b32.xlu0 %v1780, 64
      %v1782 = vpop.permute.xlu0 %1781
      %v1784 = vadd.f32 %v555, %v1782
      %v1785 = vadd.f32 %v558, %v1782
      %v1786 = vadd.f32 %v563, %v1782
      %v1787 = vadd.f32 %v566, %v1782
      %v1788 = vadd.f32 %v571, %v1782
      %v1789 = vadd.f32 %v574, %v1782
      %v1790 = vadd.f32 %v579, %v1782
      %v1791 = vadd.f32 %v582, %v1782
      %v1792 = vadd.f32 %v587, %v1782
      %v1793 = vadd.f32 %v590, %v1782
      %v1794 = vadd.f32 %v595, %v1782
      %v1795 = vadd.f32 %v598, %v1782
      %v1796 = vadd.f32 %v603, %v1782
      %v1797 = vadd.f32 %v606, %v1782
      %v1798 = vadd.f32 %v611, %v1782
      %v1799 = vadd.f32 %v614, %v1782
      %vm1800 = vcmp.gt.f32.partialorder %v1784, 20.0
      %vm1801 = vcmp.gt.f32.partialorder %v1785, 20.0
      %vm1802 = vcmp.gt.f32.partialorder %v1786, 20.0
      %vm1803 = vcmp.gt.f32.partialorder %v1787, 20.0
      %vm1804 = vcmp.gt.f32.partialorder %v1788, 20.0
      %vm1805 = vcmp.gt.f32.partialorder %v1789, 20.0
      %vm1806 = vcmp.gt.f32.partialorder %v1790, 20.0
      %vm1807 = vcmp.gt.f32.partialorder %v1791, 20.0
      %vm1808 = vcmp.gt.f32.partialorder %v1792, 20.0
      %vm1809 = vcmp.gt.f32.partialorder %v1793, 20.0
      %vm1810 = vcmp.gt.f32.partialorder %v1794, 20.0
      %vm1811 = vcmp.gt.f32.partialorder %v1795, 20.0
      %vm1812 = vcmp.gt.f32.partialorder %v1796, 20.0
      %vm1813 = vcmp.gt.f32.partialorder %v1797, 20.0
      %vm1814 = vcmp.gt.f32.partialorder %v1798, 20.0
      %vm1815 = vcmp.gt.f32.partialorder %v1799, 20.0
      %v1816 = vmul.f32 %v1784, 1.442695
      %v1817 = vpow.pop %v1816
      %v1818 = vmul.f32 %v1785, 1.442695
      %v1819 = vpow.pop %v1818
      %v1820 = vmul.f32 %v1786, 1.442695
      %v1821 = vpow.pop %v1820
      %v1822 = vmul.f32 %v1787, 1.442695
      %v1823 = vpow.pop %v1822
      %v1824 = vmul.f32 %v1788, 1.442695
      %v1825 = vpow.pop %v1824
      %v1826 = vmul.f32 %v1789, 1.442695
      %v1827 = vpow.pop %v1826
      %v1828 = vmul.f32 %v1790, 1.442695
      %v1829 = vpow.pop %v1828
      %v1830 = vmul.f32 %v1791, 1.442695
      %v1831 = vpow.pop %v1830
      %v1832 = vmul.f32 %v1792, 1.442695
      %v1833 = vpow.pop %v1832
      %v1834 = vmul.f32 %v1793, 1.442695
      %v1835 = vpow.pop %v1834
      %v1836 = vmul.f32 %v1794, 1.442695
      %v1837 = vpow.pop %v1836
      %v1838 = vmul.f32 %v1795, 1.442695
      %v1839 = vpow.pop %v1838
      %v1840 = vmul.f32 %v1796, 1.442695
      %v1841 = vpow.pop %v1840
      %v1842 = vmul.f32 %v1797, 1.442695
      %v1843 = vpow.pop %v1842
      %v1844 = vmul.f32 %v1798, 1.442695
      %v1845 = vpow.pop %v1844
      %v1846 = vmul.f32 %v1799, 1.442695
      %v1847 = vpow.pop %v1846
      %v1848 = vadd.f32 %v1817, 1.0
      %v1849 = vadd.f32 %v1819, 1.0
      %v1850 = vadd.f32 %v1821, 1.0
      %v1851 = vadd.f32 %v1823, 1.0
      %v1852 = vadd.f32 %v1825, 1.0
      %v1853 = vadd.f32 %v1827, 1.0
      %v1854 = vadd.f32 %v1829, 1.0
      %v1855 = vadd.f32 %v1831, 1.0
      %v1856 = vadd.f32 %v1833, 1.0
      %v1857 = vadd.f32 %v1835, 1.0
      %v1858 = vadd.f32 %v1837, 1.0
      %v1859 = vadd.f32 %v1839, 1.0
      %v1860 = vadd.f32 %v1841, 1.0
      %v1861 = vadd.f32 %v1843, 1.0
      %v1862 = vadd.f32 %v1845, 1.0
      %v1863 = vadd.f32 %v1847, 1.0
      %v1864 = vlog2.pop %v1848
      %v1865 = vmul.f32 %v1864, 0.6931472
      %v1866 = vlog2.pop %v1849
      %v1867 = vmul.f32 %v1866, 0.6931472
      %v1868 = vlog2.pop %v1850
      %v1869 = vmul.f32 %v1868, 0.6931472
      %v1870 = vlog2.pop %v1851
      %v1871 = vmul.f32 %v1870, 0.6931472
      %v1872 = vlog2.pop %v1852
      %v1873 = vmul.f32 %v1872, 0.6931472
      %v1874 = vlog2.pop %v1853
      %v1875 = vmul.f32 %v1874, 0.6931472
      %v1876 = vlog2.pop %v1854
      %v1877 = vmul.f32 %v1876, 0.6931472
      %v1878 = vlog2.pop %v1855
      %v1879 = vmul.f32 %v1878, 0.6931472
      %v1880 = vlog2.pop %v1856
      %v1881 = vmul.f32 %v1880, 0.6931472
      %v1882 = vlog2.pop %v1857
      %v1883 = vmul.f32 %v1882, 0.6931472
      %v1884 = vlog2.pop %v1858
      %v1885 = vmul.f32 %v1884, 0.6931472
      %v1886 = vlog2.pop %v1859
      %v1887 = vmul.f32 %v1886, 0.6931472
      %v1888 = vlog2.pop %v1860
      %v1889 = vmul.f32 %v1888, 0.6931472
      %v1890 = vlog2.pop %v1861
      %v1891 = vmul.f32 %v1890, 0.6931472
      %v1892 = vlog2.pop %v1862
      %v1893 = vmul.f32 %v1892, 0.6931472
      %v1894 = vlog2.pop %v1863
      %v1895 = vmul.f32 %v1894, 0.6931472
      %v1896 = vsel %vm1800, %v1784, %v1865
      %v1897 = vsel %vm1801, %v1785, %v1867
      %v1898 = vsel %vm1802, %v1786, %v1869
      %v1899 = vsel %vm1803, %v1787, %v1871
      %v1900 = vsel %vm1804, %v1788, %v1873
      %v1901 = vsel %vm1805, %v1789, %v1875
      %v1902 = vsel %vm1806, %v1790, %v1877
      %v1903 = vsel %vm1807, %v1791, %v1879
      %v1904 = vsel %vm1808, %v1792, %v1881
      %v1905 = vsel %vm1809, %v1793, %v1883
      %v1906 = vsel %vm1810, %v1794, %v1885
      %v1907 = vsel %vm1811, %v1795, %v1887
      %v1908 = vsel %vm1812, %v1796, %v1889
      %v1909 = vsel %vm1813, %v1797, %v1891
      %v1910 = vsel %vm1814, %v1798, %v1893
      %v1911 = vsel %vm1815, %v1799, %v1895
      %v1912 = vld [vmem:[%s9] sm:$0x1]
      %v1914 = vlaneseq
      %v1915 = vshrl.u32 %v1914, 7
      %v1916 = vsub.s32 0, %v1915
      %v1917 = vrot.slane %v1912, %v1916
      %1918 = vrot.lane.b32.xlu0 %v1917, 64
      %v1919 = vpop.permute.xlu0 %1918
      %v1921 = vmul.f32 %v1896, %v1919
      %v1922 = vmul.f32 %v1897, %v1919
      %v1923 = vmul.f32 %v1898, %v1919
      %v1924 = vmul.f32 %v1899, %v1919
      %v1925 = vmul.f32 %v1900, %v1919
      %v1926 = vmul.f32 %v1901, %v1919
      %v1927 = vmul.f32 %v1902, %v1919
      %v1928 = vmul.f32 %v1903, %v1919
      %v1929 = vmul.f32 %v1904, %v1919
      %v1930 = vmul.f32 %v1905, %v1919
      %v1931 = vmul.f32 %v1906, %v1919
      %v1932 = vmul.f32 %v1907, %v1919
      %v1933 = vmul.f32 %v1908, %v1919
      %v1934 = vmul.f32 %v1909, %v1919
      %v1935 = vmul.f32 %v1910, %v1919
      %v1936 = vmul.f32 %v1911, %v1919
      %vm1953 = vcmask 1040384
      %v1954 = vrot.slane %v1921, 7
      %v1955 = vrot.slane %v1922, 7
      %v1956 = vsel %vm1953, %v1954, %v1955
      %v1957 = vrot.slane %v1923, 7
      %v1958 = vsel %vm1953, %v1955, %v1957
      %v1959 = vrot.slane %v1924, 7
      %v1960 = vsel %vm1953, %v1957, %v1959
      %v1961 = vrot.slane %v1925, 7
      %v1962 = vsel %vm1953, %v1959, %v1961
      %v1963 = vrot.slane %v1926, 7
      %v1964 = vsel %vm1953, %v1961, %v1963
      %v1965 = vrot.slane %v1927, 7
      %v1966 = vsel %vm1953, %v1963, %v1965
      %v1967 = vrot.slane %v1928, 7
      %v1968 = vsel %vm1953, %v1965, %v1967
      %v1969 = vrot.slane %v1929, 7
      %v1970 = vsel %vm1953, %v1967, %v1969
      %v1971 = vrot.slane %v1930, 7
      %v1972 = vsel %vm1953, %v1969, %v1971
      %v1973 = vrot.slane %v1931, 7
      %v1974 = vsel %vm1953, %v1971, %v1973
      %v1975 = vrot.slane %v1932, 7
      %v1976 = vsel %vm1953, %v1973, %v1975
      %v1977 = vrot.slane %v1933, 7
      %v1978 = vsel %vm1953, %v1975, %v1977
      %v1979 = vrot.slane %v1934, 7
      %v1980 = vsel %vm1953, %v1977, %v1979
      %v1981 = vrot.slane %v1935, 7
      %v1982 = vsel %vm1953, %v1979, %v1981
      %v1983 = vrot.slane %v1936, 7
      %v1984 = vsel %vm1953, %v1981, %v1983
      %1985 = vrot.lane.b32.xlu0 %v1954, 64
      %v1986 = vpop.permute.xlu0 %1985
      %1987 = vrot.lane.b32.xlu0 %v1956, 64
      %v1988 = vpop.permute.xlu0 %1987
      %1989 = vrot.lane.b32.xlu0 %v1958, 64
      %v1990 = vpop.permute.xlu0 %1989
      %1991 = vrot.lane.b32.xlu0 %v1960, 64
      %v1992 = vpop.permute.xlu0 %1991
      %1993 = vrot.lane.b32.xlu0 %v1962, 64
      %v1994 = vpop.permute.xlu0 %1993
      %1995 = vrot.lane.b32.xlu0 %v1964, 64
      %v1996 = vpop.permute.xlu0 %1995
      %1997 = vrot.lane.b32.xlu0 %v1966, 64
      %v1998 = vpop.permute.xlu0 %1997
      %1999 = vrot.lane.b32.xlu0 %v1968, 64
      %v2000 = vpop.permute.xlu0 %1999
      %2001 = vrot.lane.b32.xlu0 %v1970, 64
      %v2002 = vpop.permute.xlu0 %2001
      %2003 = vrot.lane.b32.xlu0 %v1972, 64
      %v2004 = vpop.permute.xlu0 %2003
      %2005 = vrot.lane.b32.xlu0 %v1974, 64
      %v2006 = vpop.permute.xlu0 %2005
      %2007 = vrot.lane.b32.xlu0 %v1976, 64
      %v2008 = vpop.permute.xlu0 %2007
      %2009 = vrot.lane.b32.xlu0 %v1978, 64
      %v2010 = vpop.permute.xlu0 %2009
      %2011 = vrot.lane.b32.xlu0 %v1980, 64
      %v2012 = vpop.permute.xlu0 %2011
      %2013 = vrot.lane.b32.xlu0 %v1982, 64
      %v2014 = vpop.permute.xlu0 %2013
      %2015 = vrot.lane.b32.xlu0 %v1984, 64
      %v2016 = vpop.permute.xlu0 %2015
      %v2018 = vsel %vm1953, 0.0, %v1986
      %2020 = vrot.lane.b32.xlu0 %v2018, 64
      %v2021 = vpop.permute.xlu0 %2020
      %2022 = vrot.lane.b32.xlu0 %v1988, 64
      %v2023 = vpop.permute.xlu0 %2022
      %2024 = vrot.lane.b32.xlu0 %v1990, 64
      %v2025 = vpop.permute.xlu0 %2024
      %2026 = vrot.lane.b32.xlu0 %v1992, 64
      %v2027 = vpop.permute.xlu0 %2026
      %2028 = vrot.lane.b32.xlu0 %v1994, 64
      %v2029 = vpop.permute.xlu0 %2028
      %2030 = vrot.lane.b32.xlu0 %v1996, 64
      %v2031 = vpop.permute.xlu0 %2030
      %2032 = vrot.lane.b32.xlu0 %v1998, 64
      %v2033 = vpop.permute.xlu0 %2032
      %2034 = vrot.lane.b32.xlu0 %v2000, 64
      %v2035 = vpop.permute.xlu0 %2034
      %2036 = vrot.lane.b32.xlu0 %v2002, 64
      %v2037 = vpop.permute.xlu0 %2036
      %2038 = vrot.lane.b32.xlu0 %v2004, 64
      %v2039 = vpop.permute.xlu0 %2038
      %2040 = vrot.lane.b32.xlu0 %v2006, 64
      %v2041 = vpop.permute.xlu0 %2040
      %2042 = vrot.lane.b32.xlu0 %v2008, 64
      %v2043 = vpop.permute.xlu0 %2042
      %2044 = vrot.lane.b32.xlu0 %v2010, 64
      %v2045 = vpop.permute.xlu0 %2044
      %2046 = vrot.lane.b32.xlu0 %v2012, 64
      %v2047 = vpop.permute.xlu0 %2046
      %2048 = vrot.lane.b32.xlu0 %v2014, 64
      %v2049 = vpop.permute.xlu0 %2048
      %2050 = vrot.lane.b32.xlu0 %v2016, 64
      %v2051 = vpop.permute.xlu0 %2050
      %v2068 = vadd.f32 %v1921, %v2021
      %v2069 = vadd.f32 %v1922, %v2023
      %v2070 = vadd.f32 %v1923, %v2025
      %v2071 = vadd.f32 %v1924, %v2027
      %v2072 = vadd.f32 %v1925, %v2029
      %v2073 = vadd.f32 %v1926, %v2031
      %v2074 = vadd.f32 %v1927, %v2033
      %v2075 = vadd.f32 %v1928, %v2035
      %v2076 = vadd.f32 %v1929, %v2037
      %v2077 = vadd.f32 %v1930, %v2039
      %v2078 = vadd.f32 %v1931, %v2041
      %v2079 = vadd.f32 %v1932, %v2043
      %v2080 = vadd.f32 %v1933, %v2045
      %v2081 = vadd.f32 %v1934, %v2047
      %v2082 = vadd.f32 %v1935, %v2049
      %v2083 = vadd.f32 %v1936, %v2051
      %vm2100 = vcmask 1041408
      %v2101 = vrot.slane %v2068, 6
      %v2102 = vrot.slane %v2069, 6
      %v2103 = vsel %vm2100, %v2101, %v2102
      %v2104 = vrot.slane %v2070, 6
      %v2105 = vsel %vm2100, %v2102, %v2104
      %v2106 = vrot.slane %v2071, 6
      %v2107 = vsel %vm2100, %v2104, %v2106
      %v2108 = vrot.slane %v2072, 6
      %v2109 = vsel %vm2100, %v2106, %v2108
      %v2110 = vrot.slane %v2073, 6
      %v2111 = vsel %vm2100, %v2108, %v2110
      %v2112 = vrot.slane %v2074, 6
      %v2113 = vsel %vm2100, %v2110, %v2112
      %v2114 = vrot.slane %v2075, 6
      %v2115 = vsel %vm2100, %v2112, %v2114
      %v2116 = vrot.slane %v2076, 6
      %v2117 = vsel %vm2100, %v2114, %v2116
      %v2118 = vrot.slane %v2077, 6
      %v2119 = vsel %vm2100, %v2116, %v2118
      %v2120 = vrot.slane %v2078, 6
      %v2121 = vsel %vm2100, %v2118, %v2120
      %v2122 = vrot.slane %v2079, 6
      %v2123 = vsel %vm2100, %v2120, %v2122
      %v2124 = vrot.slane %v2080, 6
      %v2125 = vsel %vm2100, %v2122, %v2124
      %v2126 = vrot.slane %v2081, 6
      %v2127 = vsel %vm2100, %v2124, %v2126
      %v2128 = vrot.slane %v2082, 6
      %v2129 = vsel %vm2100, %v2126, %v2128
      %v2130 = vrot.slane %v2083, 6
      %v2131 = vsel %vm2100, %v2128, %v2130
      %2132 = vrot.lane.b32.xlu0 %v2101, 64
      %v2133 = vpop.permute.xlu0 %2132
      %2134 = vrot.lane.b32.xlu0 %v2103, 64
      %v2135 = vpop.permute.xlu0 %2134
      %2136 = vrot.lane.b32.xlu0 %v2105, 64
      %v2137 = vpop.permute.xlu0 %2136
      %2138 = vrot.lane.b32.xlu0 %v2107, 64
      %v2139 = vpop.permute.xlu0 %2138
      %2140 = vrot.lane.b32.xlu0 %v2109, 64
      %v2141 = vpop.permute.xlu0 %2140
      %2142 = vrot.lane.b32.xlu0 %v2111, 64
      %v2143 = vpop.permute.xlu0 %2142
      %2144 = vrot.lane.b32.xlu0 %v2113, 64
      %v2145 = vpop.permute.xlu0 %2144
      %2146 = vrot.lane.b32.xlu0 %v2115, 64
      %v2147 = vpop.permute.xlu0 %2146
      %2148 = vrot.lane.b32.xlu0 %v2117, 64
      %v2149 = vpop.permute.xlu0 %2148
      %2150 = vrot.lane.b32.xlu0 %v2119, 64
      %v2151 = vpop.permute.xlu0 %2150
      %2152 = vrot.lane.b32.xlu0 %v2121, 64
      %v2153 = vpop.permute.xlu0 %2152
      %2154 = vrot.lane.b32.xlu0 %v2123, 64
      %v2155 = vpop.permute.xlu0 %2154
      %2156 = vrot.lane.b32.xlu0 %v2125, 64
      %v2157 = vpop.permute.xlu0 %2156
      %2158 = vrot.lane.b32.xlu0 %v2127, 64
      %v2159 = vpop.permute.xlu0 %2158
      %2160 = vrot.lane.b32.xlu0 %v2129, 64
      %v2161 = vpop.permute.xlu0 %2160
      %2162 = vrot.lane.b32.xlu0 %v2131, 64
      %v2163 = vpop.permute.xlu0 %2162
      %v2165 = vsel %vm2100, 0.0, %v2133
      %2167 = vrot.lane.b32.xlu0 %v2165, 64
      %v2168 = vpop.permute.xlu0 %2167
      %2169 = vrot.lane.b32.xlu0 %v2135, 64
      %v2170 = vpop.permute.xlu0 %2169
      %2171 = vrot.lane.b32.xlu0 %v2137, 64
      %v2172 = vpop.permute.xlu0 %2171
      %2173 = vrot.lane.b32.xlu0 %v2139, 64
      %v2174 = vpop.permute.xlu0 %2173
      %2175 = vrot.lane.b32.xlu0 %v2141, 64
      %v2176 = vpop.permute.xlu0 %2175
      %2177 = vrot.lane.b32.xlu0 %v2143, 64
      %v2178 = vpop.permute.xlu0 %2177
      %2179 = vrot.lane.b32.xlu0 %v2145, 64
      %v2180 = vpop.permute.xlu0 %2179
      %2181 = vrot.lane.b32.xlu0 %v2147, 64
      %v2182 = vpop.permute.xlu0 %2181
      %2183 = vrot.lane.b32.xlu0 %v2149, 64
      %v2184 = vpop.permute.xlu0 %2183
      %2185 = vrot.lane.b32.xlu0 %v2151, 64
      %v2186 = vpop.permute.xlu0 %2185
      %2187 = vrot.lane.b32.xlu0 %v2153, 64
      %v2188 = vpop.permute.xlu0 %2187
      %2189 = vrot.lane.b32.xlu0 %v2155, 64
      %v2190 = vpop.permute.xlu0 %2189
      %2191 = vrot.lane.b32.xlu0 %v2157, 64
      %v2192 = vpop.permute.xlu0 %2191
      %2193 = vrot.lane.b32.xlu0 %v2159, 64
      %v2194 = vpop.permute.xlu0 %2193
      %2195 = vrot.lane.b32.xlu0 %v2161, 64
      %v2196 = vpop.permute.xlu0 %2195
      %2197 = vrot.lane.b32.xlu0 %v2163, 64
      %v2198 = vpop.permute.xlu0 %2197
      %v2215 = vadd.f32 %v2068, %v2168
      %v2216 = vadd.f32 %v2069, %v2170
      %v2217 = vadd.f32 %v2070, %v2172
      %v2218 = vadd.f32 %v2071, %v2174
      %v2219 = vadd.f32 %v2072, %v2176
      %v2220 = vadd.f32 %v2073, %v2178
      %v2221 = vadd.f32 %v2074, %v2180
      %v2222 = vadd.f32 %v2075, %v2182
      %v2223 = vadd.f32 %v2076, %v2184
      %v2224 = vadd.f32 %v2077, %v2186
      %v2225 = vadd.f32 %v2078, %v2188
      %v2226 = vadd.f32 %v2079, %v2190
      %v2227 = vadd.f32 %v2080, %v2192
      %v2228 = vadd.f32 %v2081, %v2194
      %v2229 = vadd.f32 %v2082, %v2196
      %v2230 = vadd.f32 %v2083, %v2198
      %vm2247 = vcmask 1043456
      %v2248 = vrot.slane %v2215, 4
      %v2249 = vrot.slane %v2216, 4
      %v2250 = vsel %vm2247, %v2248, %v2249
      %v2251 = vrot.slane %v2217, 4
      %v2252 = vsel %vm2247, %v2249, %v2251
      %v2253 = vrot.slane %v2218, 4
      %v2254 = vsel %vm2247, %v2251, %v2253
      %v2255 = vrot.slane %v2219, 4
      %v2256 = vsel %vm2247, %v2253, %v2255
      %v2257 = vrot.slane %v2220, 4
      %v2258 = vsel %vm2247, %v2255, %v2257
      %v2259 = vrot.slane %v2221, 4
      %v2260 = vsel %vm2247, %v2257, %v2259
      %v2261 = vrot.slane %v2222, 4
      %v2262 = vsel %vm2247, %v2259, %v2261
      %v2263 = vrot.slane %v2223, 4
      %v2264 = vsel %vm2247, %v2261, %v2263
      %v2265 = vrot.slane %v2224, 4
      %v2266 = vsel %vm2247, %v2263, %v2265
      %v2267 = vrot.slane %v2225, 4
      %v2268 = vsel %vm2247, %v2265, %v2267
      %v2269 = vrot.slane %v2226, 4
      %v2270 = vsel %vm2247, %v2267, %v2269
      %v2271 = vrot.slane %v2227, 4
      %v2272 = vsel %vm2247, %v2269, %v2271
      %v2273 = vrot.slane %v2228, 4
      %v2274 = vsel %vm2247, %v2271, %v2273
      %v2275 = vrot.slane %v2229, 4
      %v2276 = vsel %vm2247, %v2273, %v2275
      %v2277 = vrot.slane %v2230, 4
      %v2278 = vsel %vm2247, %v2275, %v2277
      %2279 = vrot.lane.b32.xlu0 %v2248, 64
      %v2280 = vpop.permute.xlu0 %2279
      %2281 = vrot.lane.b32.xlu0 %v2250, 64
      %v2282 = vpop.permute.xlu0 %2281
      %2283 = vrot.lane.b32.xlu0 %v2252, 64
      %v2284 = vpop.permute.xlu0 %2283
      %2285 = vrot.lane.b32.xlu0 %v2254, 64
      %v2286 = vpop.permute.xlu0 %2285
      %2287 = vrot.lane.b32.xlu0 %v2256, 64
      %v2288 = vpop.permute.xlu0 %2287
      %2289 = vrot.lane.b32.xlu0 %v2258, 64
      %v2290 = vpop.permute.xlu0 %2289
      %2291 = vrot.lane.b32.xlu0 %v2260, 64
      %v2292 = vpop.permute.xlu0 %2291
      %2293 = vrot.lane.b32.xlu0 %v2262, 64
      %v2294 = vpop.permute.xlu0 %2293
      %2295 = vrot.lane.b32.xlu0 %v2264, 64
      %v2296 = vpop.permute.xlu0 %2295
      %2297 = vrot.lane.b32.xlu0 %v2266, 64
      %v2298 = vpop.permute.xlu0 %2297
      %2299 = vrot.lane.b32.xlu0 %v2268, 64
      %v2300 = vpop.permute.xlu0 %2299
      %2301 = vrot.lane.b32.xlu0 %v2270, 64
      %v2302 = vpop.permute.xlu0 %2301
      %2303 = vrot.lane.b32.xlu0 %v2272, 64
      %v2304 = vpop.permute.xlu0 %2303
      %2305 = vrot.lane.b32.xlu0 %v2274, 64
      %v2306 = vpop.permute.xlu0 %2305
      %2307 = vrot.lane.b32.xlu0 %v2276, 64
      %v2308 = vpop.permute.xlu0 %2307
      %2309 = vrot.lane.b32.xlu0 %v2278, 64
      %v2310 = vpop.permute.xlu0 %2309
      %v2312 = vsel %vm2247, 0.0, %v2280
      %2314 = vrot.lane.b32.xlu0 %v2312, 64
      %v2315 = vpop.permute.xlu0 %2314
      %2316 = vrot.lane.b32.xlu0 %v2282, 64
      %v2317 = vpop.permute.xlu0 %2316
      %2318 = vrot.lane.b32.xlu0 %v2284, 64
      %v2319 = vpop.permute.xlu0 %2318
      %2320 = vrot.lane.b32.xlu0 %v2286, 64
      %v2321 = vpop.permute.xlu0 %2320
      %2322 = vrot.lane.b32.xlu0 %v2288, 64
      %v2323 = vpop.permute.xlu0 %2322
      %2324 = vrot.lane.b32.xlu0 %v2290, 64
      %v2325 = vpop.permute.xlu0 %2324
      %2326 = vrot.lane.b32.xlu0 %v2292, 64
      %v2327 = vpop.permute.xlu0 %2326
      %2328 = vrot.lane.b32.xlu0 %v2294, 64
      %v2329 = vpop.permute.xlu0 %2328
      %2330 = vrot.lane.b32.xlu0 %v2296, 64
      %v2331 = vpop.permute.xlu0 %2330
      %2332 = vrot.lane.b32.xlu0 %v2298, 64
      %v2333 = vpop.permute.xlu0 %2332
      %2334 = vrot.lane.b32.xlu0 %v2300, 64
      %v2335 = vpop.permute.xlu0 %2334
      %2336 = vrot.lane.b32.xlu0 %v2302, 64
      %v2337 = vpop.permute.xlu0 %2336
      %2338 = vrot.lane.b32.xlu0 %v2304, 64
      %v2339 = vpop.permute.xlu0 %2338
      %2340 = vrot.lane.b32.xlu0 %v2306, 64
      %v2341 = vpop.permute.xlu0 %2340
      %2342 = vrot.lane.b32.xlu0 %v2308, 64
      %v2343 = vpop.permute.xlu0 %2342
      %2344 = vrot.lane.b32.xlu0 %v2310, 64
      %v2345 = vpop.permute.xlu0 %2344
      %v2362 = vadd.f32 %v2215, %v2315
      %v2363 = vadd.f32 %v2216, %v2317
      %v2364 = vadd.f32 %v2217, %v2319
      %v2365 = vadd.f32 %v2218, %v2321
      %v2366 = vadd.f32 %v2219, %v2323
      %v2367 = vadd.f32 %v2220, %v2325
      %v2368 = vadd.f32 %v2221, %v2327
      %v2369 = vadd.f32 %v2222, %v2329
      %v2370 = vadd.f32 %v2223, %v2331
      %v2371 = vadd.f32 %v2224, %v2333
      %v2372 = vadd.f32 %v2225, %v2335
      %v2373 = vadd.f32 %v2226, %v2337
      %v2374 = vadd.f32 %v2227, %v2339
      %v2375 = vadd.f32 %v2228, %v2341
      %v2376 = vadd.f32 %v2229, %v2343
      %v2377 = vadd.f32 %v2230, %v2345
      %2393 = vrot.lane.b32.xlu0 %v2362, 64
      %v2394 = vpop.permute.xlu0 %2393
      %2395 = vrot.lane.b32.xlu0 %v2363, 64
      %v2396 = vpop.permute.xlu0 %2395
      %2397 = vrot.lane.b32.xlu0 %v2364, 64
      %v2398 = vpop.permute.xlu0 %2397
      %2399 = vrot.lane.b32.xlu0 %v2365, 64
      %v2400 = vpop.permute.xlu0 %2399
      %2401 = vrot.lane.b32.xlu0 %v2366, 64
      %v2402 = vpop.permute.xlu0 %2401
      %2403 = vrot.lane.b32.xlu0 %v2367, 64
      %v2404 = vpop.permute.xlu0 %2403
      %2405 = vrot.lane.b32.xlu0 %v2368, 64
      %v2406 = vpop.permute.xlu0 %2405
      %2407 = vrot.lane.b32.xlu0 %v2369, 64
      %v2408 = vpop.permute.xlu0 %2407
      %2409 = vrot.lane.b32.xlu0 %v2370, 64
      %v2410 = vpop.permute.xlu0 %2409
      %2411 = vrot.lane.b32.xlu0 %v2371, 64
      %v2412 = vpop.permute.xlu0 %2411
      %2413 = vrot.lane.b32.xlu0 %v2372, 64
      %v2414 = vpop.permute.xlu0 %2413
      %2415 = vrot.lane.b32.xlu0 %v2373, 64
      %v2416 = vpop.permute.xlu0 %2415
      %2417 = vrot.lane.b32.xlu0 %v2374, 64
      %v2418 = vpop.permute.xlu0 %2417
      %2419 = vrot.lane.b32.xlu0 %v2375, 64
      %v2420 = vpop.permute.xlu0 %2419
      %2421 = vrot.lane.b32.xlu0 %v2376, 64
      %v2422 = vpop.permute.xlu0 %2421
      %2424 = vrot.lane.b32.xlu0 0.0, 64
      %v2425 = vpop.permute.xlu0 %2424
      %2426 = vrot.lane.b32.xlu0 %v2394, 64
      %v2427 = vpop.permute.xlu0 %2426
      %2428 = vrot.lane.b32.xlu0 %v2396, 64
      %v2429 = vpop.permute.xlu0 %2428
      %2430 = vrot.lane.b32.xlu0 %v2398, 64
      %v2431 = vpop.permute.xlu0 %2430
      %2432 = vrot.lane.b32.xlu0 %v2400, 64
      %v2433 = vpop.permute.xlu0 %2432
      %2434 = vrot.lane.b32.xlu0 %v2402, 64
      %v2435 = vpop.permute.xlu0 %2434
      %2436 = vrot.lane.b32.xlu0 %v2404, 64
      %v2437 = vpop.permute.xlu0 %2436
      %2438 = vrot.lane.b32.xlu0 %v2406, 64
      %v2439 = vpop.permute.xlu0 %2438
      %2440 = vrot.lane.b32.xlu0 %v2408, 64
      %v2441 = vpop.permute.xlu0 %2440
      %2442 = vrot.lane.b32.xlu0 %v2410, 64
      %v2443 = vpop.permute.xlu0 %2442
      %2444 = vrot.lane.b32.xlu0 %v2412, 64
      %v2445 = vpop.permute.xlu0 %2444
      %2446 = vrot.lane.b32.xlu0 %v2414, 64
      %v2447 = vpop.permute.xlu0 %2446
      %2448 = vrot.lane.b32.xlu0 %v2416, 64
      %v2449 = vpop.permute.xlu0 %2448
      %2450 = vrot.lane.b32.xlu0 %v2418, 64
      %v2451 = vpop.permute.xlu0 %2450
      %2452 = vrot.lane.b32.xlu0 %v2420, 64
      %v2453 = vpop.permute.xlu0 %2452
      %2454 = vrot.lane.b32.xlu0 %v2422, 64
      %v2455 = vpop.permute.xlu0 %2454
      %v2472 = vadd.f32 %v2362, %v2425
      %v2473 = vadd.f32 %v2363, %v2427
      %v2474 = vadd.f32 %v2364, %v2429
      %v2475 = vadd.f32 %v2365, %v2431
      %v2476 = vadd.f32 %v2366, %v2433
      %v2477 = vadd.f32 %v2367, %v2435
      %v2478 = vadd.f32 %v2368, %v2437
      %v2479 = vadd.f32 %v2369, %v2439
      %v2480 = vadd.f32 %v2370, %v2441
      %v2481 = vadd.f32 %v2371, %v2443
      %v2482 = vadd.f32 %v2372, %v2445
      %v2483 = vadd.f32 %v2373, %v2447
      %v2484 = vadd.f32 %v2374, %v2449
      %v2485 = vadd.f32 %v2375, %v2451
      %v2486 = vadd.f32 %v2376, %v2453
      %v2487 = vadd.f32 %v2377, %v2455
      %2502 = vrot.lane.b32.xlu0 %v2472, 64
      %v2503 = vpop.permute.xlu0 %2502
      %2504 = vrot.lane.b32.xlu0 %v2473, 64
      %v2505 = vpop.permute.xlu0 %2504
      %2506 = vrot.lane.b32.xlu0 %v2474, 64
      %v2507 = vpop.permute.xlu0 %2506
      %2508 = vrot.lane.b32.xlu0 %v2475, 64
      %v2509 = vpop.permute.xlu0 %2508
      %2510 = vrot.lane.b32.xlu0 %v2476, 64
      %v2511 = vpop.permute.xlu0 %2510
      %2512 = vrot.lane.b32.xlu0 %v2477, 64
      %v2513 = vpop.permute.xlu0 %2512
      %2514 = vrot.lane.b32.xlu0 %v2478, 64
      %v2515 = vpop.permute.xlu0 %2514
      %2516 = vrot.lane.b32.xlu0 %v2479, 64
      %v2517 = vpop.permute.xlu0 %2516
      %2518 = vrot.lane.b32.xlu0 %v2480, 64
      %v2519 = vpop.permute.xlu0 %2518
      %2520 = vrot.lane.b32.xlu0 %v2481, 64
      %v2521 = vpop.permute.xlu0 %2520
      %2522 = vrot.lane.b32.xlu0 %v2482, 64
      %v2523 = vpop.permute.xlu0 %2522
      %2524 = vrot.lane.b32.xlu0 %v2483, 64
      %v2525 = vpop.permute.xlu0 %2524
      %2526 = vrot.lane.b32.xlu0 %v2484, 64
      %v2527 = vpop.permute.xlu0 %2526
      %2528 = vrot.lane.b32.xlu0 %v2485, 64
      %v2529 = vpop.permute.xlu0 %2528
      %2530 = vrot.lane.b32.xlu0 %v2503, 64
      %v2531 = vpop.permute.xlu0 %2530
      %2532 = vrot.lane.b32.xlu0 %v2505, 64
      %v2533 = vpop.permute.xlu0 %2532
      %2534 = vrot.lane.b32.xlu0 %v2507, 64
      %v2535 = vpop.permute.xlu0 %2534
      %2536 = vrot.lane.b32.xlu0 %v2509, 64
      %v2537 = vpop.permute.xlu0 %2536
      %2538 = vrot.lane.b32.xlu0 %v2511, 64
      %v2539 = vpop.permute.xlu0 %2538
      %2540 = vrot.lane.b32.xlu0 %v2513, 64
      %v2541 = vpop.permute.xlu0 %2540
      %2542 = vrot.lane.b32.xlu0 %v2515, 64
      %v2543 = vpop.permute.xlu0 %2542
      %2544 = vrot.lane.b32.xlu0 %v2517, 64
      %v2545 = vpop.permute.xlu0 %2544
      %2546 = vrot.lane.b32.xlu0 %v2519, 64
      %v2547 = vpop.permute.xlu0 %2546
      %2548 = vrot.lane.b32.xlu0 %v2521, 64
      %v2549 = vpop.permute.xlu0 %2548
      %2550 = vrot.lane.b32.xlu0 %v2523, 64
      %v2551 = vpop.permute.xlu0 %2550
      %2552 = vrot.lane.b32.xlu0 %v2525, 64
      %v2553 = vpop.permute.xlu0 %2552
      %2554 = vrot.lane.b32.xlu0 %v2527, 64
      %v2555 = vpop.permute.xlu0 %2554
      %2556 = vrot.lane.b32.xlu0 %v2529, 64
      %v2557 = vpop.permute.xlu0 %2556
      %v2572 = vadd.f32 %v2472, %v2425
      %v2573 = vadd.f32 %v2473, %v2425
      %v2574 = vadd.f32 %v2474, %v2531
      %v2575 = vadd.f32 %v2475, %v2533
      %v2576 = vadd.f32 %v2476, %v2535
      %v2577 = vadd.f32 %v2477, %v2537
      %v2578 = vadd.f32 %v2478, %v2539
      %v2579 = vadd.f32 %v2479, %v2541
      %v2580 = vadd.f32 %v2480, %v2543
      %v2581 = vadd.f32 %v2481, %v2545
      %v2582 = vadd.f32 %v2482, %v2547
      %v2583 = vadd.f32 %v2483, %v2549
      %v2584 = vadd.f32 %v2484, %v2551
      %v2585 = vadd.f32 %v2485, %v2553
      %v2586 = vadd.f32 %v2486, %v2555
      %v2587 = vadd.f32 %v2487, %v2557
      %2600 = vrot.lane.b32.xlu0 %v2572, 64
      %v2601 = vpop.permute.xlu0 %2600
      %2602 = vrot.lane.b32.xlu0 %v2573, 64
      %v2603 = vpop.permute.xlu0 %2602
      %2604 = vrot.lane.b32.xlu0 %v2574, 64
      %v2605 = vpop.permute.xlu0 %2604
      %2606 = vrot.lane.b32.xlu0 %v2575, 64
      %v2607 = vpop.permute.xlu0 %2606
      %2608 = vrot.lane.b32.xlu0 %v2576, 64
      %v2609 = vpop.permute.xlu0 %2608
      %2610 = vrot.lane.b32.xlu0 %v2577, 64
      %v2611 = vpop.permute.xlu0 %2610
      %2612 = vrot.lane.b32.xlu0 %v2578, 64
      %v2613 = vpop.permute.xlu0 %2612
      %2614 = vrot.lane.b32.xlu0 %v2579, 64
      %v2615 = vpop.permute.xlu0 %2614
      %2616 = vrot.lane.b32.xlu0 %v2580, 64
      %v2617 = vpop.permute.xlu0 %2616
      %2618 = vrot.lane.b32.xlu0 %v2581, 64
      %v2619 = vpop.permute.xlu0 %2618
      %2620 = vrot.lane.b32.xlu0 %v2582, 64
      %v2621 = vpop.permute.xlu0 %2620
      %2622 = vrot.lane.b32.xlu0 %v2583, 64
      %v2623 = vpop.permute.xlu0 %2622
      %2624 = vrot.lane.b32.xlu0 %v2601, 64
      %v2625 = vpop.permute.xlu0 %2624
      %2626 = vrot.lane.b32.xlu0 %v2603, 64
      %v2627 = vpop.permute.xlu0 %2626
      %2628 = vrot.lane.b32.xlu0 %v2605, 64
      %v2629 = vpop.permute.xlu0 %2628
      %2630 = vrot.lane.b32.xlu0 %v2607, 64
      %v2631 = vpop.permute.xlu0 %2630
      %2632 = vrot.lane.b32.xlu0 %v2609, 64
      %v2633 = vpop.permute.xlu0 %2632
      %2634 = vrot.lane.b32.xlu0 %v2611, 64
      %v2635 = vpop.permute.xlu0 %2634
      %2636 = vrot.lane.b32.xlu0 %v2613, 64
      %v2637 = vpop.permute.xlu0 %2636
      %2638 = vrot.lane.b32.xlu0 %v2615, 64
      %v2639 = vpop.permute.xlu0 %2638
      %2640 = vrot.lane.b32.xlu0 %v2617, 64
      %v2641 = vpop.permute.xlu0 %2640
      %2642 = vrot.lane.b32.xlu0 %v2619, 64
      %v2643 = vpop.permute.xlu0 %2642
      %2644 = vrot.lane.b32.xlu0 %v2621, 64
      %v2645 = vpop.permute.xlu0 %2644
      %2646 = vrot.lane.b32.xlu0 %v2623, 64
      %v2647 = vpop.permute.xlu0 %2646
      %v2660 = vadd.f32 %v2572, %v2425
      %v2661 = vadd.f32 %v2573, %v2425
      %v2662 = vadd.f32 %v2574, %v2425
      %v2663 = vadd.f32 %v2575, %v2425
      %v2664 = vadd.f32 %v2576, %v2625
      %v2665 = vadd.f32 %v2577, %v2627
      %v2666 = vadd.f32 %v2578, %v2629
      %v2667 = vadd.f32 %v2579, %v2631
      %v2668 = vadd.f32 %v2580, %v2633
      %v2669 = vadd.f32 %v2581, %v2635
      %v2670 = vadd.f32 %v2582, %v2637
      %v2671 = vadd.f32 %v2583, %v2639
      %v2672 = vadd.f32 %v2584, %v2641
      %v2673 = vadd.f32 %v2585, %v2643
      %v2674 = vadd.f32 %v2586, %v2645
      %v2675 = vadd.f32 %v2587, %v2647
      %2684 = vrot.lane.b32.xlu0 %v2660, 64
      %v2685 = vpop.permute.xlu0 %2684
      %2686 = vrot.lane.b32.xlu0 %v2661, 64
      %v2687 = vpop.permute.xlu0 %2686
      %2688 = vrot.lane.b32.xlu0 %v2662, 64
      %v2689 = vpop.permute.xlu0 %2688
      %2690 = vrot.lane.b32.xlu0 %v2663, 64
      %v2691 = vpop.permute.xlu0 %2690
      %2692 = vrot.lane.b32.xlu0 %v2664, 64
      %v2693 = vpop.permute.xlu0 %2692
      %2694 = vrot.lane.b32.xlu0 %v2665, 64
      %v2695 = vpop.permute.xlu0 %2694
      %2696 = vrot.lane.b32.xlu0 %v2666, 64
      %v2697 = vpop.permute.xlu0 %2696
      %2698 = vrot.lane.b32.xlu0 %v2667, 64
      %v2699 = vpop.permute.xlu0 %2698
      %2700 = vrot.lane.b32.xlu0 %v2685, 64
      %v2701 = vpop.permute.xlu0 %2700
      %2702 = vrot.lane.b32.xlu0 %v2687, 64
      %v2703 = vpop.permute.xlu0 %2702
      %2704 = vrot.lane.b32.xlu0 %v2689, 64
      %v2705 = vpop.permute.xlu0 %2704
      %2706 = vrot.lane.b32.xlu0 %v2691, 64
      %v2707 = vpop.permute.xlu0 %2706
      %2708 = vrot.lane.b32.xlu0 %v2693, 64
      %v2709 = vpop.permute.xlu0 %2708
      %2710 = vrot.lane.b32.xlu0 %v2695, 64
      %v2711 = vpop.permute.xlu0 %2710
      %2712 = vrot.lane.b32.xlu0 %v2697, 64
      %v2713 = vpop.permute.xlu0 %2712
      %2714 = vrot.lane.b32.xlu0 %v2699, 64
      %v2715 = vpop.permute.xlu0 %2714
      %v2724 = vadd.f32 %v2660, %v2425
      %v2725 = vadd.f32 %v2661, %v2425
      %v2726 = vadd.f32 %v2662, %v2425
      %v2727 = vadd.f32 %v2663, %v2425
      %v2728 = vadd.f32 %v2664, %v2425
      %v2729 = vadd.f32 %v2665, %v2425
      %v2730 = vadd.f32 %v2666, %v2425
      %v2731 = vadd.f32 %v2667, %v2425
      %v2732 = vadd.f32 %v2668, %v2701
      %v2733 = vadd.f32 %v2669, %v2703
      %v2734 = vadd.f32 %v2670, %v2705
      %v2735 = vadd.f32 %v2671, %v2707
      %v2736 = vadd.f32 %v2672, %v2709
      %v2737 = vadd.f32 %v2673, %v2711
      %v2738 = vadd.f32 %v2674, %v2713
      %v2739 = vadd.f32 %v2675, %v2715
      %2756 = vrot.lane.b32.xlu0 %v2724, 64
      %v2757 = vpop.permute.xlu0 %2756
      %2758 = vrot.lane.b32.xlu0 %v2725, 64
      %v2759 = vpop.permute.xlu0 %2758
      %2760 = vrot.lane.b32.xlu0 %v2726, 64
      %v2761 = vpop.permute.xlu0 %2760
      %2762 = vrot.lane.b32.xlu0 %v2727, 64
      %v2763 = vpop.permute.xlu0 %2762
      %2764 = vrot.lane.b32.xlu0 %v2728, 64
      %v2765 = vpop.permute.xlu0 %2764
      %2766 = vrot.lane.b32.xlu0 %v2729, 64
      %v2767 = vpop.permute.xlu0 %2766
      %2768 = vrot.lane.b32.xlu0 %v2730, 64
      %v2769 = vpop.permute.xlu0 %2768
      %2770 = vrot.lane.b32.xlu0 %v2731, 64
      %v2771 = vpop.permute.xlu0 %2770
      %2772 = vrot.lane.b32.xlu0 %v2732, 64
      %v2773 = vpop.permute.xlu0 %2772
      %2774 = vrot.lane.b32.xlu0 %v2733, 64
      %v2775 = vpop.permute.xlu0 %2774
      %2776 = vrot.lane.b32.xlu0 %v2734, 64
      %v2777 = vpop.permute.xlu0 %2776
      %2778 = vrot.lane.b32.xlu0 %v2735, 64
      %v2779 = vpop.permute.xlu0 %2778
      %2780 = vrot.lane.b32.xlu0 %v2736, 64
      %v2781 = vpop.permute.xlu0 %2780
      %2782 = vrot.lane.b32.xlu0 %v2737, 64
      %v2783 = vpop.permute.xlu0 %2782
      %2784 = vrot.lane.b32.xlu0 %v2738, 64
      %v2785 = vpop.permute.xlu0 %2784
      %2786 = vrot.lane.b32.xlu0 %v2739, 64
      %v2787 = vpop.permute.xlu0 %2786
      %2804 = vxpose.xlu0.b32.start [1/16] %v2757, 128
      %2805 = vxpose.xlu0.b32.cont [2/16] %v2759, 128
      %2806 = vxpose.xlu0.b32.cont [3/16] %v2761, 128
      %2807 = vxpose.xlu0.b32.cont [4/16] %v2763, 128
      %2808 = vxpose.xlu0.b32.cont [5/16] %v2765, 128
      %2809 = vxpose.xlu0.b32.cont [6/16] %v2767, 128
      %2810 = vxpose.xlu0.b32.cont [7/16] %v2769, 128
      %2811 = vxpose.xlu0.b32.cont [8/16] %v2771, 128
      %2812 = vxpose.xlu0.b32.cont [9/16] %v2773, 128
      %2813 = vxpose.xlu0.b32.cont [10/16] %v2775, 128
      %2814 = vxpose.xlu0.b32.cont [11/16] %v2777, 128
      %2815 = vxpose.xlu0.b32.cont [12/16] %v2779, 128
      %2816 = vxpose.xlu0.b32.cont [13/16] %v2781, 128
      %2817 = vxpose.xlu0.b32.cont [14/16] %v2783, 128
      %2818 = vxpose.xlu0.b32.cont [15/16] %v2785, 128
      %2819 = vxpose.xlu0.b32.end [16/16] %v2787, 128
      %v2820 = vpop.trf.xlu0
      %v2821 = vpop.trf.xlu0
      %v2822 = vpop.trf.xlu0
      %v2823 = vpop.trf.xlu0
      %v2824 = vpop.trf.xlu0
      %v2825 = vpop.trf.xlu0
      %v2826 = vpop.trf.xlu0
      %v2827 = vpop.trf.xlu0
      %v2828 = vpop.trf.xlu0
      %v2829 = vpop.trf.xlu0
      %v2830 = vpop.trf.xlu0
      %v2831 = vpop.trf.xlu0
      %v2832 = vpop.trf.xlu0
      %v2833 = vpop.trf.xlu0
      %v2834 = vpop.trf.xlu0
      %v2835 = vpop.trf.xlu0
      %2837 = vset.pattern.permute.xlu0 64
      %2838 = vperm.xlu0 %2837, %v1896
      %v2839 = vpop.permute.xlu0 %2838
      %2842 = vset.pattern.permute.xlu0 64
      %2843 = vperm.xlu0 %2842, %v1897
      %v2844 = vpop.permute.xlu0 %2843
      %2847 = vset.pattern.permute.xlu0 64
      %2848 = vperm.xlu0 %2847, %v1898
      %v2849 = vpop.permute.xlu0 %2848
      %2852 = vset.pattern.permute.xlu0 64
      %2853 = vperm.xlu0 %2852, %v1899
      %v2854 = vpop.permute.xlu0 %2853
      %2857 = vset.pattern.permute.xlu0 64
      %2858 = vperm.xlu0 %2857, %v1900
      %v2859 = vpop.permute.xlu0 %2858
      %2862 = vset.pattern.permute.xlu0 64
      %2863 = vperm.xlu0 %2862, %v1901
      %v2864 = vpop.permute.xlu0 %2863
      %2867 = vset.pattern.permute.xlu0 64
      %2868 = vperm.xlu0 %2867, %v1902
      %v2869 = vpop.permute.xlu0 %2868
      %2872 = vset.pattern.permute.xlu0 64
      %2873 = vperm.xlu0 %2872, %v1903
      %v2874 = vpop.permute.xlu0 %2873
      %2877 = vset.pattern.permute.xlu0 64
      %2878 = vperm.xlu0 %2877, %v1904
      %v2879 = vpop.permute.xlu0 %2878
      %2882 = vset.pattern.permute.xlu0 64
      %2883 = vperm.xlu0 %2882, %v1905
      %v2884 = vpop.permute.xlu0 %2883
      %2887 = vset.pattern.permute.xlu0 64
      %2888 = vperm.xlu0 %2887, %v1906
      %v2889 = vpop.permute.xlu0 %2888
      %2892 = vset.pattern.permute.xlu0 64
      %2893 = vperm.xlu0 %2892, %v1907
      %v2894 = vpop.permute.xlu0 %2893
      %2897 = vset.pattern.permute.xlu0 64
      %2898 = vperm.xlu0 %2897, %v1908
      %v2899 = vpop.permute.xlu0 %2898
      %2902 = vset.pattern.permute.xlu0 64
      %2903 = vperm.xlu0 %2902, %v1909
      %v2904 = vpop.permute.xlu0 %2903
      %2907 = vset.pattern.permute.xlu0 64
      %2908 = vperm.xlu0 %2907, %v1910
      %v2909 = vpop.permute.xlu0 %2908
      %2912 = vset.pattern.permute.xlu0 64
      %2913 = vperm.xlu0 %2912, %v1911
      %v2914 = vpop.permute.xlu0 %2913
      %2916 = vset.pattern.permute.xlu0 65
      %2917 = vperm.xlu0 %2916, %v1896
      %v2918 = vpop.permute.xlu0 %2917
      %2920 = vset.pattern.permute.xlu0 65
      %2921 = vperm.xlu0 %2920, %v1897
      %v2922 = vpop.permute.xlu0 %2921
      %2924 = vset.pattern.permute.xlu0 65
      %2925 = vperm.xlu0 %2924, %v1898
      %v2926 = vpop.permute.xlu0 %2925
      %2928 = vset.pattern.permute.xlu0 65
      %2929 = vperm.xlu0 %2928, %v1899
      %v2930 = vpop.permute.xlu0 %2929
      %2932 = vset.pattern.permute.xlu0 65
      %2933 = vperm.xlu0 %2932, %v1900
      %v2934 = vpop.permute.xlu0 %2933
      %2936 = vset.pattern.permute.xlu0 65
      %2937 = vperm.xlu0 %2936, %v1901
      %v2938 = vpop.permute.xlu0 %2937
      %2940 = vset.pattern.permute.xlu0 65
      %2941 = vperm.xlu0 %2940, %v1902
      %v2942 = vpop.permute.xlu0 %2941
      %2944 = vset.pattern.permute.xlu0 65
      %2945 = vperm.xlu0 %2944, %v1903
      %v2946 = vpop.permute.xlu0 %2945
      %2948 = vset.pattern.permute.xlu0 65
      %2949 = vperm.xlu0 %2948, %v1904
      %v2950 = vpop.permute.xlu0 %2949
      %2952 = vset.pattern.permute.xlu0 65
      %2953 = vperm.xlu0 %2952, %v1905
      %v2954 = vpop.permute.xlu0 %2953
      %2956 = vset.pattern.permute.xlu0 65
      %2957 = vperm.xlu0 %2956, %v1906
      %v2958 = vpop.permute.xlu0 %2957
      %2960 = vset.pattern.permute.xlu0 65
      %2961 = vperm.xlu0 %2960, %v1907
      %v2962 = vpop.permute.xlu0 %2961
      %2964 = vset.pattern.permute.xlu0 65
      %2965 = vperm.xlu0 %2964, %v1908
      %v2966 = vpop.permute.xlu0 %2965
      %2968 = vset.pattern.permute.xlu0 65
      %2969 = vperm.xlu0 %2968, %v1909
      %v2970 = vpop.permute.xlu0 %2969
      %2972 = vset.pattern.permute.xlu0 65
      %2973 = vperm.xlu0 %2972, %v1910
      %v2974 = vpop.permute.xlu0 %2973
      %2976 = vset.pattern.permute.xlu0 65
      %2977 = vperm.xlu0 %2976, %v1911
      %v2978 = vpop.permute.xlu0 %2977
      %2980 = vset.pattern.permute.xlu0 66
      %2981 = vperm.xlu0 %2980, %v1896
      %v2982 = vpop.permute.xlu0 %2981
      %2984 = vset.pattern.permute.xlu0 66
      %2985 = vperm.xlu0 %2984, %v1897
      %v2986 = vpop.permute.xlu0 %2985
      %2988 = vset.pattern.permute.xlu0 66
      %2989 = vperm.xlu0 %2988, %v1898
      %v2990 = vpop.permute.xlu0 %2989
      %2992 = vset.pattern.permute.xlu0 66
      %2993 = vperm.xlu0 %2992, %v1899
      %v2994 = vpop.permute.xlu0 %2993
      %2996 = vset.pattern.permute.xlu0 66
      %2997 = vperm.xlu0 %2996, %v1900
      %v2998 = vpop.permute.xlu0 %2997
      %3000 = vset.pattern.permute.xlu0 66
      %3001 = vperm.xlu0 %3000, %v1901
      %v3002 = vpop.permute.xlu0 %3001
      %3004 = vset.pattern.permute.xlu0 66
      %3005 = vperm.xlu0 %3004, %v1902
      %v3006 = vpop.permute.xlu0 %3005
      %3008 = vset.pattern.permute.xlu0 66
      %3009 = vperm.xlu0 %3008, %v1903
      %v3010 = vpop.permute.xlu0 %3009
      %3012 = vset.pattern.permute.xlu0 66
      %3013 = vperm.xlu0 %3012, %v1904
      %v3014 = vpop.permute.xlu0 %3013
      %3016 = vset.pattern.permute.xlu0 66
      %3017 = vperm.xlu0 %3016, %v1905
      %v3018 = vpop.permute.xlu0 %3017
      %3020 = vset.pattern.permute.xlu0 66
      %3021 = vperm.xlu0 %3020, %v1906
      %v3022 = vpop.permute.xlu0 %3021
      %3024 = vset.pattern.permute.xlu0 66
      %3025 = vperm.xlu0 %3024, %v1907
      %v3026 = vpop.permute.xlu0 %3025
      %3028 = vset.pattern.permute.xlu0 66
      %3029 = vperm.xlu0 %3028, %v1908
      %v3030 = vpop.permute.xlu0 %3029
      %3032 = vset.pattern.permute.xlu0 66
      %3033 = vperm.xlu0 %3032, %v1909
      %v3034 = vpop.permute.xlu0 %3033
      %3036 = vset.pattern.permute.xlu0 66
      %3037 = vperm.xlu0 %3036, %v1910
      %v3038 = vpop.permute.xlu0 %3037
      %3040 = vset.pattern.permute.xlu0 66
      %3041 = vperm.xlu0 %3040, %v1911
      %v3042 = vpop.permute.xlu0 %3041
      %3044 = vset.pattern.permute.xlu0 67
      %3045 = vperm.xlu0 %3044, %v1896
      %v3046 = vpop.permute.xlu0 %3045
      %3048 = vset.pattern.permute.xlu0 67
      %3049 = vperm.xlu0 %3048, %v1897
      %v3050 = vpop.permute.xlu0 %3049
      %3052 = vset.pattern.permute.xlu0 67
      %3053 = vperm.xlu0 %3052, %v1898
      %v3054 = vpop.permute.xlu0 %3053
      %3056 = vset.pattern.permute.xlu0 67
      %3057 = vperm.xlu0 %3056, %v1899
      %v3058 = vpop.permute.xlu0 %3057
      %3060 = vset.pattern.permute.xlu0 67
      %3061 = vperm.xlu0 %3060, %v1900
      %v3062 = vpop.permute.xlu0 %3061
      %3064 = vset.pattern.permute.xlu0 67
      %3065 = vperm.xlu0 %3064, %v1901
      %v3066 = vpop.permute.xlu0 %3065
      %3068 = vset.pattern.permute.xlu0 67
      %3069 = vperm.xlu0 %3068, %v1902
      %v3070 = vpop.permute.xlu0 %3069
      %3072 = vset.pattern.permute.xlu0 67
      %3073 = vperm.xlu0 %3072, %v1903
      %v3074 = vpop.permute.xlu0 %3073
      %3076 = vset.pattern.permute.xlu0 67
      %3077 = vperm.xlu0 %3076, %v1904
      %v3078 = vpop.permute.xlu0 %3077
      %3080 = vset.pattern.permute.xlu0 67
      %3081 = vperm.xlu0 %3080, %v1905
      %v3082 = vpop.permute.xlu0 %3081
      %3084 = vset.pattern.permute.xlu0 67
      %3085 = vperm.xlu0 %3084, %v1906
      %v3086 = vpop.permute.xlu0 %3085
      %3088 = vset.pattern.permute.xlu0 67
      %3089 = vperm.xlu0 %3088, %v1907
      %v3090 = vpop.permute.xlu0 %3089
      %3092 = vset.pattern.permute.xlu0 67
      %3093 = vperm.xlu0 %3092, %v1908
      %v3094 = vpop.permute.xlu0 %3093
      %3096 = vset.pattern.permute.xlu0 67
      %3097 = vperm.xlu0 %3096, %v1909
      %v3098 = vpop.permute.xlu0 %3097
      %3100 = vset.pattern.permute.xlu0 67
      %3101 = vperm.xlu0 %3100, %v1910
      %v3102 = vpop.permute.xlu0 %3101
      %3104 = vset.pattern.permute.xlu0 67
      %3105 = vperm.xlu0 %3104, %v1911
      %v3106 = vpop.permute.xlu0 %3105
      %vm3108 = vcmask 130048
      %v3109 = vsel %vm3108, %v2839, %v2918
      %v3110 = vsel %vm3108, %v2844, %v2922
      %v3111 = vsel %vm3108, %v2849, %v2926
      %v3112 = vsel %vm3108, %v2854, %v2930
      %v3113 = vsel %vm3108, %v2859, %v2934
      %v3114 = vsel %vm3108, %v2864, %v2938
      %v3115 = vsel %vm3108, %v2869, %v2942
      %v3116 = vsel %vm3108, %v2874, %v2946
      %v3117 = vsel %vm3108, %v2879, %v2950
      %v3118 = vsel %vm3108, %v2884, %v2954
      %v3119 = vsel %vm3108, %v2889, %v2958
      %v3120 = vsel %vm3108, %v2894, %v2962
      %v3121 = vsel %vm3108, %v2899, %v2966
      %v3122 = vsel %vm3108, %v2904, %v2970
      %v3123 = vsel %vm3108, %v2909, %v2974
      %v3124 = vsel %vm3108, %v2914, %v2978
      %v3125 = vsel %vm495, %v3109, %v2982
      %v3126 = vsel %vm495, %v3110, %v2986
      %v3127 = vsel %vm495, %v3111, %v2990
      %v3128 = vsel %vm495, %v3112, %v2994
      %v3129 = vsel %vm495, %v3113, %v2998
      %v3130 = vsel %vm495, %v3114, %v3002
      %v3131 = vsel %vm495, %v3115, %v3006
      %v3132 = vsel %vm495, %v3116, %v3010
      %v3133 = vsel %vm495, %v3117, %v3014
      %v3134 = vsel %vm495, %v3118, %v3018
      %v3135 = vsel %vm495, %v3119, %v3022
      %v3136 = vsel %vm495, %v3120, %v3026
      %v3137 = vsel %vm495, %v3121, %v3030
      %v3138 = vsel %vm495, %v3122, %v3034
      %v3139 = vsel %vm495, %v3123, %v3038
      %v3140 = vsel %vm495, %v3124, %v3042
      %vm3141 = vcmask 392192
      %v3142 = vsel %vm3141, %v3125, %v3046
      %v3143 = vsel %vm3141, %v3126, %v3050
      %v3144 = vsel %vm3141, %v3127, %v3054
      %v3145 = vsel %vm3141, %v3128, %v3058
      %v3146 = vsel %vm3141, %v3129, %v3062
      %v3147 = vsel %vm3141, %v3130, %v3066
      %v3148 = vsel %vm3141, %v3131, %v3070
      %v3149 = vsel %vm3141, %v3132, %v3074
      %v3150 = vsel %vm3141, %v3133, %v3078
      %v3151 = vsel %vm3141, %v3134, %v3082
      %v3152 = vsel %vm3141, %v3135, %v3086
      %v3153 = vsel %vm3141, %v3136, %v3090
      %v3154 = vsel %vm3141, %v3137, %v3094
      %v3155 = vsel %vm3141, %v3138, %v3098
      %v3156 = vsel %vm3141, %v3139, %v3102
      %v3157 = vsel %vm3141, %v3140, %v3106
      %v3174 = vrot.slane %v3142, 3
      %v3175 = vrot.slane %v3143, 3
      %v3176 = vsel %vm1141, %v3174, %v3175
      %v3177 = vrot.slane %v3144, 3
      %v3178 = vsel %vm1141, %v3175, %v3177
      %v3179 = vrot.slane %v3145, 3
      %v3180 = vsel %vm1141, %v3177, %v3179
      %v3181 = vrot.slane %v3146, 3
      %v3182 = vsel %vm1141, %v3179, %v3181
      %v3183 = vrot.slane %v3147, 3
      %v3184 = vsel %vm1141, %v3181, %v3183
      %v3185 = vrot.slane %v3148, 3
      %v3186 = vsel %vm1141, %v3183, %v3185
      %v3187 = vrot.slane %v3149, 3
      %v3188 = vsel %vm1141, %v3185, %v3187
      %v3189 = vrot.slane %v3150, 3
      %v3190 = vsel %vm1141, %v3187, %v3189
      %v3191 = vrot.slane %v3151, 3
      %v3192 = vsel %vm1141, %v3189, %v3191
      %v3193 = vrot.slane %v3152, 3
      %v3194 = vsel %vm1141, %v3191, %v3193
      %v3195 = vrot.slane %v3153, 3
      %v3196 = vsel %vm1141, %v3193, %v3195
      %v3197 = vrot.slane %v3154, 3
      %v3198 = vsel %vm1141, %v3195, %v3197
      %v3199 = vrot.slane %v3155, 3
      %v3200 = vsel %vm1141, %v3197, %v3199
      %v3201 = vrot.slane %v3156, 3
      %v3202 = vsel %vm1141, %v3199, %v3201
      %v3203 = vrot.slane %v3157, 3
      %v3204 = vsel %vm1141, %v3201, %v3203
      %v3222 = vmul.f32 %v1294, %v3174
      %v3223 = vmul.f32 %v1295, %v3176
      %v3224 = vmul.f32 %v1296, %v3178
      %v3225 = vmul.f32 %v1297, %v3180
      %v3226 = vmul.f32 %v1298, %v3182
      %v3227 = vmul.f32 %v1299, %v3184
      %v3228 = vmul.f32 %v1300, %v3186
      %v3229 = vmul.f32 %v1301, %v3188
      %v3230 = vmul.f32 %v1302, %v3190
      %v3231 = vmul.f32 %v1303, %v3192
      %v3232 = vmul.f32 %v1304, %v3194
      %v3233 = vmul.f32 %v1305, %v3196
      %v3234 = vmul.f32 %v1306, %v3198
      %v3235 = vmul.f32 %v1307, %v3200
      %v3236 = vmul.f32 %v1308, %v3202
      %v3237 = vmul.f32 %v1309, %v3204
      %v3238 = vmul.f32 %v1310, %v3203
      %v3239 = vpack.c.bf16 %v3223, %v3222
      %v3240 = vpack.c.bf16 %v3225, %v3224
      %v3241 = vpack.c.bf16 %v3227, %v3226
      %v3242 = vpack.c.bf16 %v3229, %v3228
      %v3243 = vpack.c.bf16 %v3231, %v3230
      %v3244 = vpack.c.bf16 %v3233, %v3232
      %v3245 = vpack.c.bf16 %v3235, %v3234
      %v3246 = vpack.c.bf16 %v3237, %v3236
      %v3247 = vpack.c.bf16 %v3238, %v3238
      %v3248 = vlaneseq
      %v3249 = vshrl.u32 %v3248, 7
      %v3250 = vsub.s32 7, %v3249
      %v3251 = vrot.slane %v2739, %v3250
      %v3252 = vsub.f32 %v3251, %v2724
      %v3253 = vsub.f32 %v3251, %v2725
      %v3254 = vsub.f32 %v3251, %v2726
      %v3255 = vsub.f32 %v3251, %v2727
      %v3256 = vsub.f32 %v3251, %v2728
      %v3257 = vsub.f32 %v3251, %v2729
      %v3258 = vsub.f32 %v3251, %v2730
      %v3259 = vsub.f32 %v3251, %v2731
      %v3260 = vsub.f32 %v3251, %v2732
      %v3261 = vsub.f32 %v3251, %v2733
      %v3262 = vsub.f32 %v3251, %v2734
      %v3263 = vsub.f32 %v3251, %v2735
      %v3264 = vsub.f32 %v3251, %v2736
      %v3265 = vsub.f32 %v3251, %v2737
      %v3266 = vsub.f32 %v3251, %v2738
      %v3267 = vsub.f32 %v3251, %v2739
      %v3268 = vmul.f32 %v3252, 1.442695
      %v3269 = vpow.pop %v3268
      %v3270 = vmul.f32 %v3253, 1.442695
      %v3271 = vpow.pop %v3270
      %v3272 = vmul.f32 %v3254, 1.442695
      %v3273 = vpow.pop %v3272
      %v3274 = vmul.f32 %v3255, 1.442695
      %v3275 = vpow.pop %v3274
      %v3276 = vmul.f32 %v3256, 1.442695
      %v3277 = vpow.pop %v3276
      %v3278 = vmul.f32 %v3257, 1.442695
      %v3279 = vpow.pop %v3278
      %v3280 = vmul.f32 %v3258, 1.442695
      %v3281 = vpow.pop %v3280
      %v3282 = vmul.f32 %v3259, 1.442695
      %v3283 = vpow.pop %v3282
      %v3284 = vmul.f32 %v3260, 1.442695
      %v3285 = vpow.pop %v3284
      %v3286 = vmul.f32 %v3261, 1.442695
      %v3287 = vpow.pop %v3286
      %v3288 = vmul.f32 %v3262, 1.442695
      %v3289 = vpow.pop %v3288
      %v3290 = vmul.f32 %v3263, 1.442695
      %v3291 = vpow.pop %v3290
      %v3292 = vmul.f32 %v3264, 1.442695
      %v3293 = vpow.pop %v3292
      %v3294 = vmul.f32 %v3265, 1.442695
      %v3295 = vpow.pop %v3294
      %v3296 = vmul.f32 %v3266, 1.442695
      %v3297 = vpow.pop %v3296
      %v3298 = vmul.f32 %v3267, 1.442695
      %v3299 = vpow.pop %v3298
      %3301 = vset.pattern.permute.xlu0 64
      %3302 = vperm.xlu0 %3301, %v3269
      %v3303 = vpop.permute.xlu0 %3302
      %3306 = vset.pattern.permute.xlu0 64
      %3307 = vperm.xlu0 %3306, %v3271
      %v3308 = vpop.permute.xlu0 %3307
      %3311 = vset.pattern.permute.xlu0 64
      %3312 = vperm.xlu0 %3311, %v3273
      %v3313 = vpop.permute.xlu0 %3312
      %3316 = vset.pattern.permute.xlu0 64
      %3317 = vperm.xlu0 %3316, %v3275
      %v3318 = vpop.permute.xlu0 %3317
      %3321 = vset.pattern.permute.xlu0 64
      %3322 = vperm.xlu0 %3321, %v3277
      %v3323 = vpop.permute.xlu0 %3322
      %3326 = vset.pattern.permute.xlu0 64
      %3327 = vperm.xlu0 %3326, %v3279
      %v3328 = vpop.permute.xlu0 %3327
      %3331 = vset.pattern.permute.xlu0 64
      %3332 = vperm.xlu0 %3331, %v3281
      %v3333 = vpop.permute.xlu0 %3332
      %3336 = vset.pattern.permute.xlu0 64
      %3337 = vperm.xlu0 %3336, %v3283
      %v3338 = vpop.permute.xlu0 %3337
      %3341 = vset.pattern.permute.xlu0 64
      %3342 = vperm.xlu0 %3341, %v3285
      %v3343 = vpop.permute.xlu0 %3342
      %3346 = vset.pattern.permute.xlu0 64
      %3347 = vperm.xlu0 %3346, %v3287
      %v3348 = vpop.permute.xlu0 %3347
      %3351 = vset.pattern.permute.xlu0 64
      %3352 = vperm.xlu0 %3351, %v3289
      %v3353 = vpop.permute.xlu0 %3352
      %3356 = vset.pattern.permute.xlu0 64
      %3357 = vperm.xlu0 %3356, %v3291
      %v3358 = vpop.permute.xlu0 %3357
      %3361 = vset.pattern.permute.xlu0 64
      %3362 = vperm.xlu0 %3361, %v3293
      %v3363 = vpop.permute.xlu0 %3362
      %3366 = vset.pattern.permute.xlu0 64
      %3367 = vperm.xlu0 %3366, %v3295
      %v3368 = vpop.permute.xlu0 %3367
      %3371 = vset.pattern.permute.xlu0 64
      %3372 = vperm.xlu0 %3371, %v3297
      %v3373 = vpop.permute.xlu0 %3372
      %3376 = vset.pattern.permute.xlu0 64
      %3377 = vperm.xlu0 %3376, %v3299
      %v3378 = vpop.permute.xlu0 %3377
      %3380 = vset.pattern.permute.xlu0 65
      %3381 = vperm.xlu0 %3380, %v3269
      %v3382 = vpop.permute.xlu0 %3381
      %3384 = vset.pattern.permute.xlu0 65
      %3385 = vperm.xlu0 %3384, %v3271
      %v3386 = vpop.permute.xlu0 %3385
      %3388 = vset.pattern.permute.xlu0 65
      %3389 = vperm.xlu0 %3388, %v3273
      %v3390 = vpop.permute.xlu0 %3389
      %3392 = vset.pattern.permute.xlu0 65
      %3393 = vperm.xlu0 %3392, %v3275
      %v3394 = vpop.permute.xlu0 %3393
      %3396 = vset.pattern.permute.xlu0 65
      %3397 = vperm.xlu0 %3396, %v3277
      %v3398 = vpop.permute.xlu0 %3397
      %3400 = vset.pattern.permute.xlu0 65
      %3401 = vperm.xlu0 %3400, %v3279
      %v3402 = vpop.permute.xlu0 %3401
      %3404 = vset.pattern.permute.xlu0 65
      %3405 = vperm.xlu0 %3404, %v3281
      %v3406 = vpop.permute.xlu0 %3405
      %3408 = vset.pattern.permute.xlu0 65
      %3409 = vperm.xlu0 %3408, %v3283
      %v3410 = vpop.permute.xlu0 %3409
      %3412 = vset.pattern.permute.xlu0 65
      %3413 = vperm.xlu0 %3412, %v3285
      %v3414 = vpop.permute.xlu0 %3413
      %3416 = vset.pattern.permute.xlu0 65
      %3417 = vperm.xlu0 %3416, %v3287
      %v3418 = vpop.permute.xlu0 %3417
      %3420 = vset.pattern.permute.xlu0 65
      %3421 = vperm.xlu0 %3420, %v3289
      %v3422 = vpop.permute.xlu0 %3421
      %3424 = vset.pattern.permute.xlu0 65
      %3425 = vperm.xlu0 %3424, %v3291
      %v3426 = vpop.permute.xlu0 %3425
      %3428 = vset.pattern.permute.xlu0 65
      %3429 = vperm.xlu0 %3428, %v3293
      %v3430 = vpop.permute.xlu0 %3429
      %3432 = vset.pattern.permute.xlu0 65
      %3433 = vperm.xlu0 %3432, %v3295
      %v3434 = vpop.permute.xlu0 %3433
      %3436 = vset.pattern.permute.xlu0 65
      %3437 = vperm.xlu0 %3436, %v3297
      %v3438 = vpop.permute.xlu0 %3437
      %3440 = vset.pattern.permute.xlu0 65
      %3441 = vperm.xlu0 %3440, %v3299
      %v3442 = vpop.permute.xlu0 %3441
      %3444 = vset.pattern.permute.xlu0 66
      %3445 = vperm.xlu0 %3444, %v3269
      %v3446 = vpop.permute.xlu0 %3445
      %3448 = vset.pattern.permute.xlu0 66
      %3449 = vperm.xlu0 %3448, %v3271
      %v3450 = vpop.permute.xlu0 %3449
      %3452 = vset.pattern.permute.xlu0 66
      %3453 = vperm.xlu0 %3452, %v3273
      %v3454 = vpop.permute.xlu0 %3453
      %3456 = vset.pattern.permute.xlu0 66
      %3457 = vperm.xlu0 %3456, %v3275
      %v3458 = vpop.permute.xlu0 %3457
      %3460 = vset.pattern.permute.xlu0 66
      %3461 = vperm.xlu0 %3460, %v3277
      %v3462 = vpop.permute.xlu0 %3461
      %3464 = vset.pattern.permute.xlu0 66
      %3465 = vperm.xlu0 %3464, %v3279
      %v3466 = vpop.permute.xlu0 %3465
      %3468 = vset.pattern.permute.xlu0 66
      %3469 = vperm.xlu0 %3468, %v3281
      %v3470 = vpop.permute.xlu0 %3469
      %3472 = vset.pattern.permute.xlu0 66
      %3473 = vperm.xlu0 %3472, %v3283
      %v3474 = vpop.permute.xlu0 %3473
      %3476 = vset.pattern.permute.xlu0 66
      %3477 = vperm.xlu0 %3476, %v3285
      %v3478 = vpop.permute.xlu0 %3477
      %3480 = vset.pattern.permute.xlu0 66
      %3481 = vperm.xlu0 %3480, %v3287
      %v3482 = vpop.permute.xlu0 %3481
      %3484 = vset.pattern.permute.xlu0 66
      %3485 = vperm.xlu0 %3484, %v3289
      %v3486 = vpop.permute.xlu0 %3485
      %3488 = vset.pattern.permute.xlu0 66
      %3489 = vperm.xlu0 %3488, %v3291
      %v3490 = vpop.permute.xlu0 %3489
      %3492 = vset.pattern.permute.xlu0 66
      %3493 = vperm.xlu0 %3492, %v3293
      %v3494 = vpop.permute.xlu0 %3493
      %3496 = vset.pattern.permute.xlu0 66
      %3497 = vperm.xlu0 %3496, %v3295
      %v3498 = vpop.permute.xlu0 %3497
      %3500 = vset.pattern.permute.xlu0 66
      %3501 = vperm.xlu0 %3500, %v3297
      %v3502 = vpop.permute.xlu0 %3501
      %3504 = vset.pattern.permute.xlu0 66
      %3505 = vperm.xlu0 %3504, %v3299
      %v3506 = vpop.permute.xlu0 %3505
      %3508 = vset.pattern.permute.xlu0 67
      %3509 = vperm.xlu0 %3508, %v3269
      %v3510 = vpop.permute.xlu0 %3509
      %3512 = vset.pattern.permute.xlu0 67
      %3513 = vperm.xlu0 %3512, %v3271
      %v3514 = vpop.permute.xlu0 %3513
      %3516 = vset.pattern.permute.xlu0 67
      %3517 = vperm.xlu0 %3516, %v3273
      %v3518 = vpop.permute.xlu0 %3517
      %3520 = vset.pattern.permute.xlu0 67
      %3521 = vperm.xlu0 %3520, %v3275
      %v3522 = vpop.permute.xlu0 %3521
      %3524 = vset.pattern.permute.xlu0 67
      %3525 = vperm.xlu0 %3524, %v3277
      %v3526 = vpop.permute.xlu0 %3525
      %3528 = vset.pattern.permute.xlu0 67
      %3529 = vperm.xlu0 %3528, %v3279
      %v3530 = vpop.permute.xlu0 %3529
      %3532 = vset.pattern.permute.xlu0 67
      %3533 = vperm.xlu0 %3532, %v3281
      %v3534 = vpop.permute.xlu0 %3533
      %3536 = vset.pattern.permute.xlu0 67
      %3537 = vperm.xlu0 %3536, %v3283
      %v3538 = vpop.permute.xlu0 %3537
      %3540 = vset.pattern.permute.xlu0 67
      %3541 = vperm.xlu0 %3540, %v3285
      %v3542 = vpop.permute.xlu0 %3541
      %3544 = vset.pattern.permute.xlu0 67
      %3545 = vperm.xlu0 %3544, %v3287
      %v3546 = vpop.permute.xlu0 %3545
      %3548 = vset.pattern.permute.xlu0 67
      %3549 = vperm.xlu0 %3548, %v3289
      %v3550 = vpop.permute.xlu0 %3549
      %3552 = vset.pattern.permute.xlu0 67
      %3553 = vperm.xlu0 %3552, %v3291
      %v3554 = vpop.permute.xlu0 %3553
      %3556 = vset.pattern.permute.xlu0 67
      %3557 = vperm.xlu0 %3556, %v3293
      %v3558 = vpop.permute.xlu0 %3557
      %3560 = vset.pattern.permute.xlu0 67
      %3561 = vperm.xlu0 %3560, %v3295
      %v3562 = vpop.permute.xlu0 %3561
      %3564 = vset.pattern.permute.xlu0 67
      %3565 = vperm.xlu0 %3564, %v3297
      %v3566 = vpop.permute.xlu0 %3565
      %3568 = vset.pattern.permute.xlu0 67
      %3569 = vperm.xlu0 %3568, %v3299
      %v3570 = vpop.permute.xlu0 %3569
      %v3572 = vsel %vm3108, %v3303, %v3382
      %v3573 = vsel %vm3108, %v3308, %v3386
      %v3574 = vsel %vm3108, %v3313, %v3390
      %v3575 = vsel %vm3108, %v3318, %v3394
      %v3576 = vsel %vm3108, %v3323, %v3398
      %v3577 = vsel %vm3108, %v3328, %v3402
      %v3578 = vsel %vm3108, %v3333, %v3406
      %v3579 = vsel %vm3108, %v3338, %v3410
      %v3580 = vsel %vm3108, %v3343, %v3414
      %v3581 = vsel %vm3108, %v3348, %v3418
      %v3582 = vsel %vm3108, %v3353, %v3422
      %v3583 = vsel %vm3108, %v3358, %v3426
      %v3584 = vsel %vm3108, %v3363, %v3430
      %v3585 = vsel %vm3108, %v3368, %v3434
      %v3586 = vsel %vm3108, %v3373, %v3438
      %v3587 = vsel %vm3108, %v3378, %v3442
      %v3588 = vsel %vm495, %v3572, %v3446
      %v3589 = vsel %vm495, %v3573, %v3450
      %v3590 = vsel %vm495, %v3574, %v3454
      %v3591 = vsel %vm495, %v3575, %v3458
      %v3592 = vsel %vm495, %v3576, %v3462
      %v3593 = vsel %vm495, %v3577, %v3466
      %v3594 = vsel %vm495, %v3578, %v3470
      %v3595 = vsel %vm495, %v3579, %v3474
      %v3596 = vsel %vm495, %v3580, %v3478
      %v3597 = vsel %vm495, %v3581, %v3482
      %v3598 = vsel %vm495, %v3582, %v3486
      %v3599 = vsel %vm495, %v3583, %v3490
      %v3600 = vsel %vm495, %v3584, %v3494
      %v3601 = vsel %vm495, %v3585, %v3498
      %v3602 = vsel %vm495, %v3586, %v3502
      %v3603 = vsel %vm495, %v3587, %v3506
      %v3604 = vsel %vm3141, %v3588, %v3510
      %v3605 = vsel %vm3141, %v3589, %v3514
      %v3606 = vsel %vm3141, %v3590, %v3518
      %v3607 = vsel %vm3141, %v3591, %v3522
      %v3608 = vsel %vm3141, %v3592, %v3526
      %v3609 = vsel %vm3141, %v3593, %v3530
      %v3610 = vsel %vm3141, %v3594, %v3534
      %v3611 = vsel %vm3141, %v3595, %v3538
      %v3612 = vsel %vm3141, %v3596, %v3542
      %v3613 = vsel %vm3141, %v3597, %v3546
      %v3614 = vsel %vm3141, %v3598, %v3550
      %v3615 = vsel %vm3141, %v3599, %v3554
      %v3616 = vsel %vm3141, %v3600, %v3558
      %v3617 = vsel %vm3141, %v3601, %v3562
      %v3618 = vsel %vm3141, %v3602, %v3566
      %v3619 = vsel %vm3141, %v3603, %v3570
      %v3636 = vrot.slane %v3604, 3
      %v3637 = vrot.slane %v3605, 3
      %v3638 = vsel %vm1141, %v3636, %v3637
      %v3639 = vrot.slane %v3606, 3
      %v3640 = vsel %vm1141, %v3637, %v3639
      %v3641 = vrot.slane %v3607, 3
      %v3642 = vsel %vm1141, %v3639, %v3641
      %v3643 = vrot.slane %v3608, 3
      %v3644 = vsel %vm1141, %v3641, %v3643
      %v3645 = vrot.slane %v3609, 3
      %v3646 = vsel %vm1141, %v3643, %v3645
      %v3647 = vrot.slane %v3610, 3
      %v3648 = vsel %vm1141, %v3645, %v3647
      %v3649 = vrot.slane %v3611, 3
      %v3650 = vsel %vm1141, %v3647, %v3649
      %v3651 = vrot.slane %v3612, 3
      %v3652 = vsel %vm1141, %v3649, %v3651
      %v3653 = vrot.slane %v3613, 3
      %v3654 = vsel %vm1141, %v3651, %v3653
      %v3655 = vrot.slane %v3614, 3
      %v3656 = vsel %vm1141, %v3653, %v3655
      %v3657 = vrot.slane %v3615, 3
      %v3658 = vsel %vm1141, %v3655, %v3657
      %v3659 = vrot.slane %v3616, 3
      %v3660 = vsel %vm1141, %v3657, %v3659
      %v3661 = vrot.slane %v3617, 3
      %v3662 = vsel %vm1141, %v3659, %v3661
      %v3663 = vrot.slane %v3618, 3
      %v3664 = vsel %vm1141, %v3661, %v3663
      %v3665 = vrot.slane %v3619, 3
      %v3666 = vsel %vm1141, %v3663, %v3665
      %v3684 = vmul.f32 %v3222, %v3636
      %v3685 = vmul.f32 %v3223, %v3638
      %v3686 = vmul.f32 %v3224, %v3640
      %v3687 = vmul.f32 %v3225, %v3642
      %v3688 = vmul.f32 %v3226, %v3644
      %v3689 = vmul.f32 %v3227, %v3646
      %v3690 = vmul.f32 %v3228, %v3648
      %v3691 = vmul.f32 %v3229, %v3650
      %v3692 = vmul.f32 %v3230, %v3652
      %v3693 = vmul.f32 %v3231, %v3654
      %v3694 = vmul.f32 %v3232, %v3656
      %v3695 = vmul.f32 %v3233, %v3658
      %v3696 = vmul.f32 %v3234, %v3660
      %v3697 = vmul.f32 %v3235, %v3662
      %v3698 = vmul.f32 %v3236, %v3664
      %v3699 = vmul.f32 %v3237, %v3666
      %v3700 = vmul.f32 %v3238, %v3665
      %v3701 = vpack.c.bf16 %v3685, %v3684
      %v3702 = vpack.c.bf16 %v3687, %v3686
      %v3703 = vpack.c.bf16 %v3689, %v3688
      %v3704 = vpack.c.bf16 %v3691, %v3690
      %v3705 = vpack.c.bf16 %v3693, %v3692
      %v3706 = vpack.c.bf16 %v3695, %v3694
      %v3707 = vpack.c.bf16 %v3697, %v3696
      %v3708 = vpack.c.bf16 %v3699, %v3698
      %v3709 = vpack.c.bf16 %v3700, %v3700
      %v3710 = vmul.f32 %v2724, 1.442695
      %v3711 = vpow.pop %v3710
      %v3712 = vmul.f32 %v2725, 1.442695
      %v3713 = vpow.pop %v3712
      %v3714 = vmul.f32 %v2726, 1.442695
      %v3715 = vpow.pop %v3714
      %v3716 = vmul.f32 %v2727, 1.442695
      %v3717 = vpow.pop %v3716
      %v3718 = vmul.f32 %v2728, 1.442695
      %v3719 = vpow.pop %v3718
      %v3720 = vmul.f32 %v2729, 1.442695
      %v3721 = vpow.pop %v3720
      %v3722 = vmul.f32 %v2730, 1.442695
      %v3723 = vpow.pop %v3722
      %v3724 = vmul.f32 %v2731, 1.442695
      %v3725 = vpow.pop %v3724
      %v3726 = vmul.f32 %v2732, 1.442695
      %v3727 = vpow.pop %v3726
      %v3728 = vmul.f32 %v2733, 1.442695
      %v3729 = vpow.pop %v3728
      %v3730 = vmul.f32 %v2734, 1.442695
      %v3731 = vpow.pop %v3730
      %v3732 = vmul.f32 %v2735, 1.442695
      %v3733 = vpow.pop %v3732
      %v3734 = vmul.f32 %v2736, 1.442695
      %v3735 = vpow.pop %v3734
      %v3736 = vmul.f32 %v2737, 1.442695
      %v3737 = vpow.pop %v3736
      %v3738 = vmul.f32 %v2738, 1.442695
      %v3739 = vpow.pop %v3738
      %v3740 = vmul.f32 %v2739, 1.442695
      %v3741 = vpow.pop %v3740
      %3743 = vset.pattern.permute.xlu0 64
      %3744 = vperm.xlu0 %3743, %v3711
      %v3745 = vpop.permute.xlu0 %3744
      %3748 = vset.pattern.permute.xlu0 64
      %3749 = vperm.xlu0 %3748, %v3713
      %v3750 = vpop.permute.xlu0 %3749
      %3753 = vset.pattern.permute.xlu0 64
      %3754 = vperm.xlu0 %3753, %v3715
      %v3755 = vpop.permute.xlu0 %3754
      %3758 = vset.pattern.permute.xlu0 64
      %3759 = vperm.xlu0 %3758, %v3717
      %v3760 = vpop.permute.xlu0 %3759
      %3763 = vset.pattern.permute.xlu0 64
      %3764 = vperm.xlu0 %3763, %v3719
      %v3765 = vpop.permute.xlu0 %3764
      %3768 = vset.pattern.permute.xlu0 64
      %3769 = vperm.xlu0 %3768, %v3721
      %v3770 = vpop.permute.xlu0 %3769
      %3773 = vset.pattern.permute.xlu0 64
      %3774 = vperm.xlu0 %3773, %v3723
      %v3775 = vpop.permute.xlu0 %3774
      %3778 = vset.pattern.permute.xlu0 64
      %3779 = vperm.xlu0 %3778, %v3725
      %v3780 = vpop.permute.xlu0 %3779
      %3783 = vset.pattern.permute.xlu0 64
      %3784 = vperm.xlu0 %3783, %v3727
      %v3785 = vpop.permute.xlu0 %3784
      %3788 = vset.pattern.permute.xlu0 64
      %3789 = vperm.xlu0 %3788, %v3729
      %v3790 = vpop.permute.xlu0 %3789
      %3793 = vset.pattern.permute.xlu0 64
      %3794 = vperm.xlu0 %3793, %v3731
      %v3795 = vpop.permute.xlu0 %3794
      %3798 = vset.pattern.permute.xlu0 64
      %3799 = vperm.xlu0 %3798, %v3733
      %v3800 = vpop.permute.xlu0 %3799
      %3803 = vset.pattern.permute.xlu0 64
      %3804 = vperm.xlu0 %3803, %v3735
      %v3805 = vpop.permute.xlu0 %3804
      %3808 = vset.pattern.permute.xlu0 64
      %3809 = vperm.xlu0 %3808, %v3737
      %v3810 = vpop.permute.xlu0 %3809
      %3813 = vset.pattern.permute.xlu0 64
      %3814 = vperm.xlu0 %3813, %v3739
      %v3815 = vpop.permute.xlu0 %3814
      %3818 = vset.pattern.permute.xlu0 64
      %3819 = vperm.xlu0 %3818, %v3741
      %v3820 = vpop.permute.xlu0 %3819
      %3822 = vset.pattern.permute.xlu0 65
      %3823 = vperm.xlu0 %3822, %v3711
      %v3824 = vpop.permute.xlu0 %3823
      %3826 = vset.pattern.permute.xlu0 65
      %3827 = vperm.xlu0 %3826, %v3713
      %v3828 = vpop.permute.xlu0 %3827
      %3830 = vset.pattern.permute.xlu0 65
      %3831 = vperm.xlu0 %3830, %v3715
      %v3832 = vpop.permute.xlu0 %3831
      %3834 = vset.pattern.permute.xlu0 65
      %3835 = vperm.xlu0 %3834, %v3717
      %v3836 = vpop.permute.xlu0 %3835
      %3838 = vset.pattern.permute.xlu0 65
      %3839 = vperm.xlu0 %3838, %v3719
      %v3840 = vpop.permute.xlu0 %3839
      %3842 = vset.pattern.permute.xlu0 65
      %3843 = vperm.xlu0 %3842, %v3721
      %v3844 = vpop.permute.xlu0 %3843
      %3846 = vset.pattern.permute.xlu0 65
      %3847 = vperm.xlu0 %3846, %v3723
      %v3848 = vpop.permute.xlu0 %3847
      %3850 = vset.pattern.permute.xlu0 65
      %3851 = vperm.xlu0 %3850, %v3725
      %v3852 = vpop.permute.xlu0 %3851
      %3854 = vset.pattern.permute.xlu0 65
      %3855 = vperm.xlu0 %3854, %v3727
      %v3856 = vpop.permute.xlu0 %3855
      %3858 = vset.pattern.permute.xlu0 65
      %3859 = vperm.xlu0 %3858, %v3729
      %v3860 = vpop.permute.xlu0 %3859
      %3862 = vset.pattern.permute.xlu0 65
      %3863 = vperm.xlu0 %3862, %v3731
      %v3864 = vpop.permute.xlu0 %3863
      %3866 = vset.pattern.permute.xlu0 65
      %3867 = vperm.xlu0 %3866, %v3733
      %v3868 = vpop.permute.xlu0 %3867
      %3870 = vset.pattern.permute.xlu0 65
      %3871 = vperm.xlu0 %3870, %v3735
      %v3872 = vpop.permute.xlu0 %3871
      %3874 = vset.pattern.permute.xlu0 65
      %3875 = vperm.xlu0 %3874, %v3737
      %v3876 = vpop.permute.xlu0 %3875
      %3878 = vset.pattern.permute.xlu0 65
      %3879 = vperm.xlu0 %3878, %v3739
      %v3880 = vpop.permute.xlu0 %3879
      %3882 = vset.pattern.permute.xlu0 65
      %3883 = vperm.xlu0 %3882, %v3741
      %v3884 = vpop.permute.xlu0 %3883
      %3886 = vset.pattern.permute.xlu0 66
      %3887 = vperm.xlu0 %3886, %v3711
      %v3888 = vpop.permute.xlu0 %3887
      %3890 = vset.pattern.permute.xlu0 66
      %3891 = vperm.xlu0 %3890, %v3713
      %v3892 = vpop.permute.xlu0 %3891
      %3894 = vset.pattern.permute.xlu0 66
      %3895 = vperm.xlu0 %3894, %v3715
      %v3896 = vpop.permute.xlu0 %3895
      %3898 = vset.pattern.permute.xlu0 66
      %3899 = vperm.xlu0 %3898, %v3717
      %v3900 = vpop.permute.xlu0 %3899
      %3902 = vset.pattern.permute.xlu0 66
      %3903 = vperm.xlu0 %3902, %v3719
      %v3904 = vpop.permute.xlu0 %3903
      %3906 = vset.pattern.permute.xlu0 66
      %3907 = vperm.xlu0 %3906, %v3721
      %v3908 = vpop.permute.xlu0 %3907
      %3910 = vset.pattern.permute.xlu0 66
      %3911 = vperm.xlu0 %3910, %v3723
      %v3912 = vpop.permute.xlu0 %3911
      %3914 = vset.pattern.permute.xlu0 66
      %3915 = vperm.xlu0 %3914, %v3725
      %v3916 = vpop.permute.xlu0 %3915
      %3918 = vset.pattern.permute.xlu0 66
      %3919 = vperm.xlu0 %3918, %v3727
      %v3920 = vpop.permute.xlu0 %3919
      %3922 = vset.pattern.permute.xlu0 66
      %3923 = vperm.xlu0 %3922, %v3729
      %v3924 = vpop.permute.xlu0 %3923
      %3926 = vset.pattern.permute.xlu0 66
      %3927 = vperm.xlu0 %3926, %v3731
      %v3928 = vpop.permute.xlu0 %3927
      %3930 = vset.pattern.permute.xlu0 66
      %3931 = vperm.xlu0 %3930, %v3733
      %v3932 = vpop.permute.xlu0 %3931
      %3934 = vset.pattern.permute.xlu0 66
      %3935 = vperm.xlu0 %3934, %v3735
      %v3936 = vpop.permute.xlu0 %3935
      %3938 = vset.pattern.permute.xlu0 66
      %3939 = vperm.xlu0 %3938, %v3737
      %v3940 = vpop.permute.xlu0 %3939
      %3942 = vset.pattern.permute.xlu0 66
      %3943 = vperm.xlu0 %3942, %v3739
      %v3944 = vpop.permute.xlu0 %3943
      %3946 = vset.pattern.permute.xlu0 66
      %3947 = vperm.xlu0 %3946, %v3741
      %v3948 = vpop.permute.xlu0 %3947
      %3950 = vset.pattern.permute.xlu0 67
      %3951 = vperm.xlu0 %3950, %v3711
      %v3952 = vpop.permute.xlu0 %3951
      %3954 = vset.pattern.permute.xlu0 67
      %3955 = vperm.xlu0 %3954, %v3713
      %v3956 = vpop.permute.xlu0 %3955
      %3958 = vset.pattern.permute.xlu0 67
      %3959 = vperm.xlu0 %3958, %v3715
      %v3960 = vpop.permute.xlu0 %3959
      %3962 = vset.pattern.permute.xlu0 67
      %3963 = vperm.xlu0 %3962, %v3717
      %v3964 = vpop.permute.xlu0 %3963
      %3966 = vset.pattern.permute.xlu0 67
      %3967 = vperm.xlu0 %3966, %v3719
      %v3968 = vpop.permute.xlu0 %3967
      %3970 = vset.pattern.permute.xlu0 67
      %3971 = vperm.xlu0 %3970, %v3721
      %v3972 = vpop.permute.xlu0 %3971
      %3974 = vset.pattern.permute.xlu0 67
      %3975 = vperm.xlu0 %3974, %v3723
      %v3976 = vpop.permute.xlu0 %3975
      %3978 = vset.pattern.permute.xlu0 67
      %3979 = vperm.xlu0 %3978, %v3725
      %v3980 = vpop.permute.xlu0 %3979
      %3982 = vset.pattern.permute.xlu0 67
      %3983 = vperm.xlu0 %3982, %v3727
      %v3984 = vpop.permute.xlu0 %3983
      %3986 = vset.pattern.permute.xlu0 67
      %3987 = vperm.xlu0 %3986, %v3729
      %v3988 = vpop.permute.xlu0 %3987
      %3990 = vset.pattern.permute.xlu0 67
      %3991 = vperm.xlu0 %3990, %v3731
      %v3992 = vpop.permute.xlu0 %3991
      %3994 = vset.pattern.permute.xlu0 67
      %3995 = vperm.xlu0 %3994, %v3733
      %v3996 = vpop.permute.xlu0 %3995
      %3998 = vset.pattern.permute.xlu0 67
      %3999 = vperm.xlu0 %3998, %v3735
      %v4000 = vpop.permute.xlu0 %3999
      %4002 = vset.pattern.permute.xlu0 67
      %4003 = vperm.xlu0 %4002, %v3737
      %v4004 = vpop.permute.xlu0 %4003
      %4006 = vset.pattern.permute.xlu0 67
      %4007 = vperm.xlu0 %4006, %v3739
      %v4008 = vpop.permute.xlu0 %4007
      %4010 = vset.pattern.permute.xlu0 67
      %4011 = vperm.xlu0 %4010, %v3741
      %v4012 = vpop.permute.xlu0 %4011
      %v4014 = vsel %vm3108, %v3745, %v3824
      %v4015 = vsel %vm3108, %v3750, %v3828
      %v4016 = vsel %vm3108, %v3755, %v3832
      %v4017 = vsel %vm3108, %v3760, %v3836
      %v4018 = vsel %vm3108, %v3765, %v3840
      %v4019 = vsel %vm3108, %v3770, %v3844
      %v4020 = vsel %vm3108, %v3775, %v3848
      %v4021 = vsel %vm3108, %v3780, %v3852
      %v4022 = vsel %vm3108, %v3785, %v3856
      %v4023 = vsel %vm3108, %v3790, %v3860
      %v4024 = vsel %vm3108, %v3795, %v3864
      %v4025 = vsel %vm3108, %v3800, %v3868
      %v4026 = vsel %vm3108, %v3805, %v3872
      %v4027 = vsel %vm3108, %v3810, %v3876
      %v4028 = vsel %vm3108, %v3815, %v3880
      %v4029 = vsel %vm3108, %v3820, %v3884
      %v4030 = vsel %vm495, %v4014, %v3888
      %v4031 = vsel %vm495, %v4015, %v3892
      %v4032 = vsel %vm495, %v4016, %v3896
      %v4033 = vsel %vm495, %v4017, %v3900
      %v4034 = vsel %vm495, %v4018, %v3904
      %v4035 = vsel %vm495, %v4019, %v3908
      %v4036 = vsel %vm495, %v4020, %v3912
      %v4037 = vsel %vm495, %v4021, %v3916
      %v4038 = vsel %vm495, %v4022, %v3920
      %v4039 = vsel %vm495, %v4023, %v3924
      %v4040 = vsel %vm495, %v4024, %v3928
      %v4041 = vsel %vm495, %v4025, %v3932
      %v4042 = vsel %vm495, %v4026, %v3936
      %v4043 = vsel %vm495, %v4027, %v3940
      %v4044 = vsel %vm495, %v4028, %v3944
      %v4045 = vsel %vm495, %v4029, %v3948
      %v4046 = vsel %vm3141, %v4030, %v3952
      %v4047 = vsel %vm3141, %v4031, %v3956
      %v4048 = vsel %vm3141, %v4032, %v3960
      %v4049 = vsel %vm3141, %v4033, %v3964
      %v4050 = vsel %vm3141, %v4034, %v3968
      %v4051 = vsel %vm3141, %v4035, %v3972
      %v4052 = vsel %vm3141, %v4036, %v3976
      %v4053 = vsel %vm3141, %v4037, %v3980
      %v4054 = vsel %vm3141, %v4038, %v3984
      %v4055 = vsel %vm3141, %v4039, %v3988
      %v4056 = vsel %vm3141, %v4040, %v3992
      %v4057 = vsel %vm3141, %v4041, %v3996
      %v4058 = vsel %vm3141, %v4042, %v4000
      %v4059 = vsel %vm3141, %v4043, %v4004
      %v4060 = vsel %vm3141, %v4044, %v4008
      %v4061 = vsel %vm3141, %v4045, %v4012
      %v4062 = vlaneseq
      %v4063 = vshrl.u32 %v4062, 7
      %v4064 = vadd.s32 %v4063, 8
      %v4065 = vadd.s32 %v4063, 16
      %v4066 = vadd.s32 %v4063, 24
      %v4067 = vadd.s32 %v4063, 32
      %v4068 = vadd.s32 %v4063, 40
      %v4069 = vadd.s32 %v4063, 48
      %v4070 = vadd.s32 %v4063, 56
      %v4071 = vadd.s32 %v4063, 64
      %v4072 = vadd.s32 %v4063, 72
      %v4073 = vadd.s32 %v4063, 80
      %v4074 = vadd.s32 %v4063, 88
      %v4075 = vadd.s32 %v4063, 96
      %v4076 = vadd.s32 %v4063, 104
      %v4077 = vadd.s32 %v4063, 112
      %v4078 = vadd.s32 %v4063, 120
      %v4079 = vlaneseq
      %v4080 = vand.u32 %v4079, 127
      %vm4081 = vcmp.le.s32.totalorder %v4080, %v4063
      %vm4082 = vcmp.le.s32.totalorder %v4080, %v4064
      %vm4083 = vcmp.le.s32.totalorder %v4080, %v4065
      %vm4084 = vcmp.le.s32.totalorder %v4080, %v4066
      %vm4085 = vcmp.le.s32.totalorder %v4080, %v4067
      %vm4086 = vcmp.le.s32.totalorder %v4080, %v4068
      %vm4087 = vcmp.le.s32.totalorder %v4080, %v4069
      %vm4088 = vcmp.le.s32.totalorder %v4080, %v4070
      %vm4089 = vcmp.le.s32.totalorder %v4080, %v4071
      %vm4090 = vcmp.le.s32.totalorder %v4080, %v4072
      %vm4091 = vcmp.le.s32.totalorder %v4080, %v4073
      %vm4092 = vcmp.le.s32.totalorder %v4080, %v4074
      %vm4093 = vcmp.le.s32.totalorder %v4080, %v4075
      %vm4094 = vcmp.le.s32.totalorder %v4080, %v4076
      %vm4095 = vcmp.le.s32.totalorder %v4080, %v4077
      %vm4096 = vcmp.le.s32.totalorder %v4080, %v4078
      %v4097 = vld [vmem:[#allocation2] sm:$0xff]
      %v4098 = vld [vmem:[#allocation2 + $0x8] sm:$0xff]
      %v4099 = vpack.c.bf16 %v1759, %v1758
      %v4100 = vpack.c.bf16 %v1761, %v1760
      %v4101 = vpack.c.bf16 %v1763, %v1762
      %v4102 = vpack.c.bf16 %v1765, %v1764
      %v4103 = vpack.c.bf16 %v1767, %v1766
      %v4104 = vpack.c.bf16 %v1769, %v1768
      %v4105 = vpack.c.bf16 %v1771, %v1770
      %v4106 = vpack.c.bf16 %v1773, %v1772
      %v4107 = vpack.c.bf16 %v1774, %v1774
      %vm4108 = vsmask.f32 5376
      %v4110 = vshrl.u32 %v4099, 16
      %v4112 = vrot.slane %v4110, 2
      %v4113 = vshll.u32 %v4099, 16
      %v4115 = vrot.slane %v4113, 3
      %v4116 = vor.u32 %v4112, %v4115
      %v4118 = vshrl.u32 %v4100, 16
      %v4120 = vrot.slane %v4118, 2
      %v4121 = vshll.u32 %v4100, 16
      %v4123 = vrot.slane %v4121, 3
      %v4124 = vor.u32 %v4120, %v4123
      %v4125 = vsel %vm4108, %v4116, %v4124
      %v4127 = vshrl.u32 %v4101, 16
      %v4129 = vrot.slane %v4127, 2
      %v4130 = vshll.u32 %v4101, 16
      %v4132 = vrot.slane %v4130, 3
      %v4133 = vor.u32 %v4129, %v4132
      %v4134 = vsel %vm4108, %v4124, %v4133
      %v4136 = vshrl.u32 %v4102, 16
      %v4138 = vrot.slane %v4136, 2
      %v4139 = vshll.u32 %v4102, 16
      %v4141 = vrot.slane %v4139, 3
      %v4142 = vor.u32 %v4138, %v4141
      %v4143 = vsel %vm4108, %v4133, %v4142
      %v4145 = vshrl.u32 %v4103, 16
      %v4147 = vrot.slane %v4145, 2
      %v4148 = vshll.u32 %v4103, 16
      %v4150 = vrot.slane %v4148, 3
      %v4151 = vor.u32 %v4147, %v4150
      %v4152 = vsel %vm4108, %v4142, %v4151
      %v4154 = vshrl.u32 %v4104, 16
      %v4156 = vrot.slane %v4154, 2
      %v4157 = vshll.u32 %v4104, 16
      %v4159 = vrot.slane %v4157, 3
      %v4160 = vor.u32 %v4156, %v4159
      %v4161 = vsel %vm4108, %v4151, %v4160
      %v4163 = vshrl.u32 %v4105, 16
      %v4165 = vrot.slane %v4163, 2
      %v4166 = vshll.u32 %v4105, 16
      %v4168 = vrot.slane %v4166, 3
      %v4169 = vor.u32 %v4165, %v4168
      %v4170 = vsel %vm4108, %v4160, %v4169
      %v4172 = vshrl.u32 %v4106, 16
      %v4174 = vrot.slane %v4172, 2
      %v4175 = vshll.u32 %v4106, 16
      %v4177 = vrot.slane %v4175, 3
      %v4178 = vor.u32 %v4174, %v4177
      %v4179 = vsel %vm4108, %v4169, %v4178
      %v4181 = vshrl.u32 %v4107, 16
      %v4183 = vrot.slane %v4181, 2
      %v4184 = vshll.u32 %v4107, 16
      %v4186 = vrot.slane %v4184, 3
      %v4187 = vor.u32 %v4183, %v4186
      %v4188 = vsel %vm4108, %v4178, %v4187
      %4189 = vrot.lane.b32.xlu0 %v4125, 112
      %v4190 = vpop.permute.xlu0 %4189
      %4191 = vrot.lane.b32.xlu0 %v4134, 112
      %v4192 = vpop.permute.xlu0 %4191
      %4193 = vrot.lane.b32.xlu0 %v4143, 112
      %v4194 = vpop.permute.xlu0 %4193
      %4195 = vrot.lane.b32.xlu0 %v4152, 112
      %v4196 = vpop.permute.xlu0 %4195
      %4197 = vrot.lane.b32.xlu0 %v4161, 112
      %v4198 = vpop.permute.xlu0 %4197
      %4199 = vrot.lane.b32.xlu0 %v4170, 112
      %v4200 = vpop.permute.xlu0 %4199
      %4201 = vrot.lane.b32.xlu0 %v4179, 112
      %v4202 = vpop.permute.xlu0 %4201
      %4203 = vrot.lane.b32.xlu0 %v4188, 112
      %v4204 = vpop.permute.xlu0 %4203
      %v4206 = vsel %vm3108, %v4190, 0
      %v4209 = vsel %vm3108, %v4192, 0
      %v4212 = vsel %vm3108, %v4194, 0
      %v4215 = vsel %vm3108, %v4196, 0
      %v4218 = vsel %vm3108, %v4198, 0
      %v4221 = vsel %vm3108, %v4200, 0
      %v4224 = vsel %vm3108, %v4202, 0
      %v4227 = vsel %vm3108, %v4204, 0
      %v4230 = vsel %vm3108, %v4125, 0
      %v4233 = vsel %vm3108, %v4134, 0
      %v4236 = vsel %vm3108, %v4143, 0
      %v4239 = vsel %vm3108, %v4152, 0
      %v4242 = vsel %vm3108, %v4161, 0
      %v4245 = vsel %vm3108, %v4170, 0
      %v4248 = vsel %vm3108, %v4179, 0
      %v4251 = vsel %vm3108, %v4188, 0
      %4253 = vmatprep.subr.bf16.mxu0 0
      %4254 = vmatpush1.bf16.xpose.msra.mxu0 %v4251
      %4255 = vmatprep.subr.bf16.mxu0 0
      %4256 = vmatpush1.bf16.xpose.msra.mxu0 %v4248
      %4257 = vmatprep.subr.bf16.mxu0 0
      %4258 = vmatpush1.bf16.xpose.msra.mxu0 %v4245
      %4259 = vmatprep.subr.bf16.mxu0 0
      %4260 = vmatpush1.bf16.xpose.msra.mxu0 %v4242
      %4261 = vmatprep.subr.bf16.mxu0 0
      %4262 = vmatpush1.bf16.xpose.msra.mxu0 %v4239
      %4263 = vmatprep.subr.bf16.mxu0 0
      %4264 = vmatpush1.bf16.xpose.msra.mxu0 %v4236
      %4265 = vmatprep.subr.bf16.mxu0 0
      %4266 = vmatpush1.bf16.xpose.msra.mxu0 %v4233
      %4267 = vmatprep.subr.bf16.mxu0 0
      %4268 = vmatpush1.bf16.xpose.msra.mxu0 %v4230
      %4269 = vmatprep.subr.bf16.mxu0 0
      %4270 = vmatpush2.bf16.xpose.msra.mxu0 0
      %4271 = vmatprep.subr.bf16.mxu0 0
      %4272 = vmatpush2.bf16.xpose.msra.mxu0 0
      %4273 = vmatprep.subr.bf16.mxu0 0
      %4274 = vmatpush2.bf16.xpose.msra.mxu0 0
      %4275 = vmatprep.subr.bf16.mxu0 0
      %4276 = vmatpush2.bf16.xpose.msra.mxu0 0
      %4277 = vmatprep.subr.bf16.mxu0 0
      %4278 = vmatpush2.bf16.xpose.msra.mxu0 0
      %4279 = vmatprep.subr.bf16.mxu0 0
      %4280 = vmatpush2.bf16.xpose.msra.mxu0 0
      %4281 = vmatprep.subr.bf16.mxu0 0
      %4282 = vmatpush2.bf16.xpose.msra.mxu0 0
      %4283 = vmatprep.subr.bf16.mxu0 0
      %4284 = vmatpush2.bf16.xpose.msra.mxu0 0
      %4285 = vmatprep.mubr.bf16.mxu0 0
      %4286 = vmatmul.mubr.bf16.gmra.mxu0 %v4206
      %v4287 = vpop.f32.mrf.mxu0
      %v4288 = vadd.f32 0.0, %v4287
      %v4289 = vpop.f32.mrf.mxu0
      %v4290 = vpop.f32.mrf.mxu0
      %v4291 = vadd.f32 0.0, %v4290
      %v4292 = vpop.f32.mrf.mxu0
      %4293 = vmatprep.mubr.bf16.mxu0 0
      %4294 = vmatmul.mubr.bf16.gmra.mxu0 %v4209
      %v4295 = vpop.f32.mrf.mxu0
      %v4296 = vadd.f32 0.0, %v4295
      %v4297 = vpop.f32.mrf.mxu0
      %v4298 = vpop.f32.mrf.mxu0
      %v4299 = vadd.f32 0.0, %v4298
      %v4300 = vpop.f32.mrf.mxu0
      %4301 = vmatprep.mubr.bf16.mxu0 0
      %4302 = vmatmul.mubr.bf16.gmra.mxu0 %v4212
      %v4303 = vpop.f32.mrf.mxu0
      %v4304 = vadd.f32 0.0, %v4303
      %v4305 = vpop.f32.mrf.mxu0
      %v4306 = vpop.f32.mrf.mxu0
      %v4307 = vadd.f32 0.0, %v4306
      %v4308 = vpop.f32.mrf.mxu0
      %4309 = vmatprep.mubr.bf16.mxu0 0
      %4310 = vmatmul.mubr.bf16.gmra.mxu0 %v4215
      %v4311 = vpop.f32.mrf.mxu0
      %v4312 = vadd.f32 0.0, %v4311
      %v4313 = vpop.f32.mrf.mxu0
      %v4314 = vpop.f32.mrf.mxu0
      %v4315 = vadd.f32 0.0, %v4314
      %v4316 = vpop.f32.mrf.mxu0
      %4317 = vmatprep.mubr.bf16.mxu0 0
      %4318 = vmatmul.mubr.bf16.gmra.mxu0 %v4218
      %v4319 = vpop.f32.mrf.mxu0
      %v4320 = vadd.f32 0.0, %v4319
      %v4321 = vpop.f32.mrf.mxu0
      %v4322 = vpop.f32.mrf.mxu0
      %v4323 = vadd.f32 0.0, %v4322
      %v4324 = vpop.f32.mrf.mxu0
      %4325 = vmatprep.mubr.bf16.mxu0 0
      %4326 = vmatmul.mubr.bf16.gmra.mxu0 %v4221
      %v4327 = vpop.f32.mrf.mxu0
      %v4328 = vadd.f32 0.0, %v4327
      %v4329 = vpop.f32.mrf.mxu0
      %v4330 = vpop.f32.mrf.mxu0
      %v4331 = vadd.f32 0.0, %v4330
      %v4332 = vpop.f32.mrf.mxu0
      %4333 = vmatprep.mubr.bf16.mxu0 0
      %4334 = vmatmul.mubr.bf16.gmra.mxu0 %v4224
      %v4335 = vpop.f32.mrf.mxu0
      %v4336 = vadd.f32 0.0, %v4335
      %v4337 = vpop.f32.mrf.mxu0
      %v4338 = vpop.f32.mrf.mxu0
      %v4339 = vadd.f32 0.0, %v4338
      %v4340 = vpop.f32.mrf.mxu0
      %4341 = vmatprep.mubr.bf16.mxu0 0
      %4342 = vmatmul.mubr.bf16.gmra.mxu0 %v4227
      %v4343 = vpop.f32.mrf.mxu0
      %v4344 = vadd.f32 0.0, %v4343
      %v4345 = vpop.f32.mrf.mxu0
      %v4346 = vpop.f32.mrf.mxu0
      %v4347 = vadd.f32 0.0, %v4346
      %v4348 = vpop.f32.mrf.mxu0
      %4349 = vdwg.mxu0
      %v4350 = vpack.c.bf16 %v4291, %v4288
      %v4351 = vpack.c.bf16 %v4299, %v4296
      %v4352 = vpack.c.bf16 %v4307, %v4304
      %v4353 = vpack.c.bf16 %v4315, %v4312
      %v4354 = vpack.c.bf16 %v4323, %v4320
      %v4355 = vpack.c.bf16 %v4331, %v4328
      %v4356 = vpack.c.bf16 %v4339, %v4336
      %v4357 = vpack.c.bf16 %v4347, %v4344
      %v4358 = vpack.c.bf16 %v4098, %v4097
      %4359 = vmatprep.subr.bf16.mxu0 0
      %4360 = vmatpush1.bf16.msra.mxu0 0
      %4361 = vmatprep.subr.bf16.mxu0 0
      %4362 = vmatpush1.bf16.msra.mxu0 0
      %4363 = vmatprep.subr.bf16.mxu0 0
      %4364 = vmatpush1.bf16.msra.mxu0 0
      %4365 = vmatprep.subr.bf16.mxu0 0
      %4366 = vmatpush1.bf16.msra.mxu0 0
      %4367 = vmatprep.subr.bf16.mxu0 0
      %4368 = vmatpush1.bf16.msra.mxu0 0
      %4369 = vmatprep.subr.bf16.mxu0 0
      %4370 = vmatpush1.bf16.msra.mxu0 0
      %4371 = vmatprep.subr.bf16.mxu0 0
      %4372 = vmatpush1.bf16.msra.mxu0 0
      %4373 = vmatprep.subr.bf16.mxu0 0
      %4374 = vmatpush1.bf16.msra.mxu0 %v4358
      %4375 = vmatprep.subr.bf16.mxu0 0
      %4376 = vmatpush2.bf16.msra.mxu0 0
      %4377 = vmatprep.subr.bf16.mxu0 0
      %4378 = vmatpush2.bf16.msra.mxu0 0
      %4379 = vmatprep.subr.bf16.mxu0 0
      %4380 = vmatpush2.bf16.msra.mxu0 0
      %4381 = vmatprep.subr.bf16.mxu0 0
      %4382 = vmatpush2.bf16.msra.mxu0 0
      %4383 = vmatprep.subr.bf16.mxu0 0
      %4384 = vmatpush2.bf16.msra.mxu0 0
      %4385 = vmatprep.subr.bf16.mxu0 0
      %4386 = vmatpush2.bf16.msra.mxu0 0
      %4387 = vmatprep.subr.bf16.mxu0 0
      %4388 = vmatpush2.bf16.msra.mxu0 0
      %4389 = vmatprep.subr.bf16.mxu0 0
      %4390 = vmatpush2.bf16.msra.mxu0 0
      %4391 = vmatprep.mubr.bf16.mxu0 0
      %4392 = vmatmul.mubr.bf16.gmra.mxu0 %v4206
      %v4393 = vpop.f32.mrf.mxu0
      %v4394 = vadd.f32 0.0, %v4393
      %v4395 = vpop.f32.mrf.mxu0
      %v4396 = vpop.f32.mrf.mxu0
      %v4397 = vadd.f32 0.0, %v4396
      %v4398 = vpop.f32.mrf.mxu0
      %4399 = vmatprep.mubr.bf16.mxu0 0
      %4400 = vmatmul.mubr.bf16.gmra.mxu0 %v4209
      %v4401 = vpop.f32.mrf.mxu0
      %v4402 = vadd.f32 0.0, %v4401
      %v4403 = vpop.f32.mrf.mxu0
      %v4404 = vpop.f32.mrf.mxu0
      %v4405 = vadd.f32 0.0, %v4404
      %v4406 = vpop.f32.mrf.mxu0
      %4407 = vmatprep.mubr.bf16.mxu0 0
      %4408 = vmatmul.mubr.bf16.gmra.mxu0 %v4212
      %v4409 = vpop.f32.mrf.mxu0
      %v4410 = vadd.f32 0.0, %v4409
      %v4411 = vpop.f32.mrf.mxu0
      %v4412 = vpop.f32.mrf.mxu0
      %v4413 = vadd.f32 0.0, %v4412
      %v4414 = vpop.f32.mrf.mxu0
      %4415 = vmatprep.mubr.bf16.mxu0 0
      %4416 = vmatmul.mubr.bf16.gmra.mxu0 %v4215
      %v4417 = vpop.f32.mrf.mxu0
      %v4418 = vadd.f32 0.0, %v4417
      %v4419 = vpop.f32.mrf.mxu0
      %v4420 = vpop.f32.mrf.mxu0
      %v4421 = vadd.f32 0.0, %v4420
      %v4422 = vpop.f32.mrf.mxu0
      %4423 = vmatprep.mubr.bf16.mxu0 0
      %4424 = vmatmul.mubr.bf16.gmra.mxu0 %v4218
      %v4425 = vpop.f32.mrf.mxu0
      %v4426 = vadd.f32 0.0, %v4425
      %v4427 = vpop.f32.mrf.mxu0
      %v4428 = vpop.f32.mrf.mxu0
      %v4429 = vadd.f32 0.0, %v4428
      %v4430 = vpop.f32.mrf.mxu0
      %4431 = vmatprep.mubr.bf16.mxu0 0
      %4432 = vmatmul.mubr.bf16.gmra.mxu0 %v4221
      %v4433 = vpop.f32.mrf.mxu0
      %v4434 = vadd.f32 0.0, %v4433
      %v4435 = vpop.f32.mrf.mxu0
      %v4436 = vpop.f32.mrf.mxu0
      %v4437 = vadd.f32 0.0, %v4436
      %v4438 = vpop.f32.mrf.mxu0
      %4439 = vmatprep.mubr.bf16.mxu0 0
      %4440 = vmatmul.mubr.bf16.gmra.mxu0 %v4224
      %v4441 = vpop.f32.mrf.mxu0
      %v4442 = vadd.f32 0.0, %v4441
      %v4443 = vpop.f32.mrf.mxu0
      %v4444 = vpop.f32.mrf.mxu0
      %v4445 = vadd.f32 0.0, %v4444
      %v4446 = vpop.f32.mrf.mxu0
      %4447 = vmatprep.mubr.bf16.mxu0 0
      %4448 = vmatmul.mubr.bf16.gmra.mxu0 %v4227
      %v4449 = vpop.f32.mrf.mxu0
      %v4450 = vadd.f32 0.0, %v4449
      %v4451 = vpop.f32.mrf.mxu0
      %v4452 = vpop.f32.mrf.mxu0
      %v4453 = vadd.f32 0.0, %v4452
      %v4454 = vpop.f32.mrf.mxu0
      %4455 = vdwg.mxu0
      %4464 = vxpose.xlu0.c.b16.start [1/8] %v4125, 128
      %4465 = vxpose.xlu0.c.b16.cont [2/8] %v4134, 128
      %4466 = vxpose.xlu0.c.b16.cont [3/8] %v4143, 128
      %4467 = vxpose.xlu0.c.b16.cont [4/8] %v4152, 128
      %4468 = vxpose.xlu0.c.b16.cont [5/8] %v4161, 128
      %4469 = vxpose.xlu0.c.b16.cont [6/8] %v4170, 128
      %4470 = vxpose.xlu0.c.b16.cont [7/8] %v4179, 128
      %4471 = vxpose.xlu0.c.b16.end [8/8] %v4188, 128
      %v4472 = vpop.trf.xlu0
      %v4473 = vpop.trf.xlu0
      %v4474 = vpop.trf.xlu0
      %v4475 = vpop.trf.xlu0
      %v4476 = vpop.trf.xlu0
      %v4477 = vpop.trf.xlu0
      %v4478 = vpop.trf.xlu0
      %v4479 = vpop.trf.xlu0
      %v4481 = vshrl.u32 %v3701, 16
      %v4483 = vrot.slane %v4481, 2
      %v4484 = vshll.u32 %v3701, 16
      %v4486 = vrot.slane %v4484, 3
      %v4487 = vor.u32 %v4483, %v4486
      %v4489 = vshrl.u32 %v3702, 16
      %v4491 = vrot.slane %v4489, 2
      %v4492 = vshll.u32 %v3702, 16
      %v4494 = vrot.slane %v4492, 3
      %v4495 = vor.u32 %v4491, %v4494
      %v4496 = vsel %vm4108, %v4487, %v4495
      %v4498 = vshrl.u32 %v3703, 16
      %v4500 = vrot.slane %v4498, 2
      %v4501 = vshll.u32 %v3703, 16
      %v4503 = vrot.slane %v4501, 3
      %v4504 = vor.u32 %v4500, %v4503
      %v4505 = vsel %vm4108, %v4495, %v4504
      %v4507 = vshrl.u32 %v3704, 16
      %v4509 = vrot.slane %v4507, 2
      %v4510 = vshll.u32 %v3704, 16
      %v4512 = vrot.slane %v4510, 3
      %v4513 = vor.u32 %v4509, %v4512
      %v4514 = vsel %vm4108, %v4504, %v4513
      %v4516 = vshrl.u32 %v3705, 16
      %v4518 = vrot.slane %v4516, 2
      %v4519 = vshll.u32 %v3705, 16
      %v4521 = vrot.slane %v4519, 3
      %v4522 = vor.u32 %v4518, %v4521
      %v4523 = vsel %vm4108, %v4513, %v4522
      %v4525 = vshrl.u32 %v3706, 16
      %v4527 = vrot.slane %v4525, 2
      %v4528 = vshll.u32 %v3706, 16
      %v4530 = vrot.slane %v4528, 3
      %v4531 = vor.u32 %v4527, %v4530
      %v4532 = vsel %vm4108, %v4522, %v4531
      %v4534 = vshrl.u32 %v3707, 16
      %v4536 = vrot.slane %v4534, 2
      %v4537 = vshll.u32 %v3707, 16
      %v4539 = vrot.slane %v4537, 3
      %v4540 = vor.u32 %v4536, %v4539
      %v4541 = vsel %vm4108, %v4531, %v4540
      %v4543 = vshrl.u32 %v3708, 16
      %v4545 = vrot.slane %v4543, 2
      %v4546 = vshll.u32 %v3708, 16
      %v4548 = vrot.slane %v4546, 3
      %v4549 = vor.u32 %v4545, %v4548
      %v4550 = vsel %vm4108, %v4540, %v4549
      %v4552 = vshrl.u32 %v3709, 16
      %v4554 = vrot.slane %v4552, 2
      %v4555 = vshll.u32 %v3709, 16
      %v4557 = vrot.slane %v4555, 3
      %v4558 = vor.u32 %v4554, %v4557
      %v4559 = vsel %vm4108, %v4549, %v4558
      %4568 = vmatprep.subr.bf16.mxu0 0
      %4569 = vmatpush1.bf16.msra.mxu0 %v4559
      %4570 = vmatprep.subr.bf16.mxu0 0
      %4571 = vmatpush1.bf16.msra.mxu0 %v4550
      %4572 = vmatprep.subr.bf16.mxu0 0
      %4573 = vmatpush1.bf16.msra.mxu0 %v4541
      %4574 = vmatprep.subr.bf16.mxu0 0
      %4575 = vmatpush1.bf16.msra.mxu0 %v4532
      %4576 = vmatprep.subr.bf16.mxu0 0
      %4577 = vmatpush1.bf16.msra.mxu0 %v4523
      %4578 = vmatprep.subr.bf16.mxu0 0
      %4579 = vmatpush1.bf16.msra.mxu0 %v4514
      %4580 = vmatprep.subr.bf16.mxu0 0
      %4581 = vmatpush1.bf16.msra.mxu0 %v4505
      %4582 = vmatprep.subr.bf16.mxu0 0
      %4583 = vmatpush1.bf16.msra.mxu0 %v4496
      %4584 = vmatprep.subr.bf16.mxu0 0
      %4585 = vmatpush2.bf16.msra.mxu0 0
      %4586 = vmatprep.subr.bf16.mxu0 0
      %4587 = vmatpush2.bf16.msra.mxu0 0
      %4588 = vmatprep.subr.bf16.mxu0 0
      %4589 = vmatpush2.bf16.msra.mxu0 0
      %4590 = vmatprep.subr.bf16.mxu0 0
      %4591 = vmatpush2.bf16.msra.mxu0 0
      %4592 = vmatprep.subr.bf16.mxu0 0
      %4593 = vmatpush2.bf16.msra.mxu0 0
      %4594 = vmatprep.subr.bf16.mxu0 0
      %4595 = vmatpush2.bf16.msra.mxu0 0
      %4596 = vmatprep.subr.bf16.mxu0 0
      %4597 = vmatpush2.bf16.msra.mxu0 0
      %4598 = vmatprep.subr.bf16.mxu0 0
      %4599 = vmatpush2.bf16.msra.mxu0 0
      %4600 = vmatprep.mubr.bf16.mxu0 0
      %4601 = vmatmul.mubr.bf16.gmra.mxu0 %v4472
      %v4602 = vpop.f32.mrf.mxu0
      %v4603 = vadd.f32 0.0, %v4602
      %v4604 = vpop.f32.mrf.mxu0
      %v4605 = vpop.f32.mrf.mxu0
      %v4606 = vadd.f32 0.0, %v4605
      %v4607 = vpop.f32.mrf.mxu0
      %4608 = vdwg.mxu0
      %4609 = vset.pattern.permute.xlu0 64
      %4610 = vperm.xlu0 %4609, %v2724
      %v4611 = vpop.permute.xlu0 %4610
      %4613 = vset.pattern.permute.xlu0 64
      %4614 = vperm.xlu0 %4613, %v2725
      %v4615 = vpop.permute.xlu0 %4614
      %4617 = vset.pattern.permute.xlu0 64
      %4618 = vperm.xlu0 %4617, %v2726
      %v4619 = vpop.permute.xlu0 %4618
      %4621 = vset.pattern.permute.xlu0 64
      %4622 = vperm.xlu0 %4621, %v2727
      %v4623 = vpop.permute.xlu0 %4622
      %4625 = vset.pattern.permute.xlu0 64
      %4626 = vperm.xlu0 %4625, %v2728
      %v4627 = vpop.permute.xlu0 %4626
      %4629 = vset.pattern.permute.xlu0 64
      %4630 = vperm.xlu0 %4629, %v2729
      %v4631 = vpop.permute.xlu0 %4630
      %4633 = vset.pattern.permute.xlu0 64
      %4634 = vperm.xlu0 %4633, %v2730
      %v4635 = vpop.permute.xlu0 %4634
      %4637 = vset.pattern.permute.xlu0 64
      %4638 = vperm.xlu0 %4637, %v2731
      %v4639 = vpop.permute.xlu0 %4638
      %4641 = vset.pattern.permute.xlu0 64
      %4642 = vperm.xlu0 %4641, %v2732
      %v4643 = vpop.permute.xlu0 %4642
      %4645 = vset.pattern.permute.xlu0 64
      %4646 = vperm.xlu0 %4645, %v2733
      %v4647 = vpop.permute.xlu0 %4646
      %4649 = vset.pattern.permute.xlu0 64
      %4650 = vperm.xlu0 %4649, %v2734
      %v4651 = vpop.permute.xlu0 %4650
      %4653 = vset.pattern.permute.xlu0 64
      %4654 = vperm.xlu0 %4653, %v2735
      %v4655 = vpop.permute.xlu0 %4654
      %4657 = vset.pattern.permute.xlu0 64
      %4658 = vperm.xlu0 %4657, %v2736
      %v4659 = vpop.permute.xlu0 %4658
      %4661 = vset.pattern.permute.xlu0 64
      %4662 = vperm.xlu0 %4661, %v2737
      %v4663 = vpop.permute.xlu0 %4662
      %4665 = vset.pattern.permute.xlu0 64
      %4666 = vperm.xlu0 %4665, %v2738
      %v4667 = vpop.permute.xlu0 %4666
      %4669 = vset.pattern.permute.xlu0 64
      %4670 = vperm.xlu0 %4669, %v2739
      %v4671 = vpop.permute.xlu0 %4670
      %v4673 = vlaneseq
      %v4674 = vshrl.u32 %v4673, 7
      %v4675 = vsub.s32 0, %v4674
      %v4676 = vrot.slane %v2820, %v4675
      %v4677 = vsub.f32 %v4611, %v4676
      %v4678 = vsub.f32 %v4615, %v4676
      %v4679 = vsub.f32 %v4619, %v4676
      %v4680 = vsub.f32 %v4623, %v4676
      %v4681 = vsub.f32 %v4627, %v4676
      %v4682 = vsub.f32 %v4631, %v4676
      %v4683 = vsub.f32 %v4635, %v4676
      %v4684 = vsub.f32 %v4639, %v4676
      %v4685 = vsub.f32 %v4643, %v4676
      %v4686 = vsub.f32 %v4647, %v4676
      %v4687 = vsub.f32 %v4651, %v4676
      %v4688 = vsub.f32 %v4655, %v4676
      %v4689 = vsub.f32 %v4659, %v4676
      %v4690 = vsub.f32 %v4663, %v4676
      %v4691 = vsub.f32 %v4667, %v4676
      %v4692 = vsub.f32 %v4671, %v4676
      %v4693 = vsel %vm4081, %v4677, -1e+30
      %v4694 = vsel %vm4082, %v4678, -1e+30
      %v4695 = vsel %vm4083, %v4679, -1e+30
      %v4696 = vsel %vm4084, %v4680, -1e+30
      %v4697 = vsel %vm4085, %v4681, -1e+30
      %v4698 = vsel %vm4086, %v4682, -1e+30
      %v4699 = vsel %vm4087, %v4683, -1e+30
      %v4700 = vsel %vm4088, %v4684, -1e+30
      %v4701 = vsel %vm4089, %v4685, -1e+30
      %v4702 = vsel %vm4090, %v4686, -1e+30
      %v4703 = vsel %vm4091, %v4687, -1e+30
      %v4704 = vsel %vm4092, %v4688, -1e+30
      %v4705 = vsel %vm4093, %v4689, -1e+30
      %v4706 = vsel %vm4094, %v4690, -1e+30
      %v4707 = vsel %vm4095, %v4691, -1e+30
      %v4708 = vsel %vm4096, %v4692, -1e+30
      %v4709 = vpack.c.bf16 %v4694, %v4693
      %v4710 = vpack.c.bf16 %v4696, %v4695
      %v4711 = vpack.c.bf16 %v4698, %v4697
      %v4712 = vpack.c.bf16 %v4700, %v4699
      %v4713 = vpack.c.bf16 %v4702, %v4701
      %v4714 = vpack.c.bf16 %v4704, %v4703
      %v4715 = vpack.c.bf16 %v4706, %v4705
      %v4716 = vpack.c.bf16 %v4708, %v4707
      %v4718 = vmul.bf16 %v4709, 1069105081
      %v4719 = vpow.bf16.pop %v4718
      %v4721 = vmul.bf16 %v4710, 1069105081
      %v4722 = vpow.bf16.pop %v4721
      %v4724 = vmul.bf16 %v4711, 1069105081
      %v4725 = vpow.bf16.pop %v4724
      %v4727 = vmul.bf16 %v4712, 1069105081
      %v4728 = vpow.bf16.pop %v4727
      %v4730 = vmul.bf16 %v4713, 1069105081
      %v4731 = vpow.bf16.pop %v4730
      %v4733 = vmul.bf16 %v4714, 1069105081
      %v4734 = vpow.bf16.pop %v4733
      %v4736 = vmul.bf16 %v4715, 1069105081
      %v4737 = vpow.bf16.pop %v4736
      %v4739 = vmul.bf16 %v4716, 1069105081
      %v4740 = vpow.bf16.pop %v4739
      %v4741 = vmul.bf16 %v4350, %v4719
      %v4742 = vmul.bf16 %v4351, %v4722
      %v4743 = vmul.bf16 %v4352, %v4725
      %v4744 = vmul.bf16 %v4353, %v4728
      %v4745 = vmul.bf16 %v4354, %v4731
      %v4746 = vmul.bf16 %v4355, %v4734
      %v4747 = vmul.bf16 %v4356, %v4737
      %v4748 = vmul.bf16 %v4357, %v4740
      %v4750 = vshrl.u32 %v3239, 16
      %v4752 = vrot.slane %v4750, 2
      %v4753 = vshll.u32 %v3239, 16
      %v4755 = vrot.slane %v4753, 3
      %v4756 = vor.u32 %v4752, %v4755
      %v4758 = vshrl.u32 %v3240, 16
      %v4760 = vrot.slane %v4758, 2
      %v4761 = vshll.u32 %v3240, 16
      %v4763 = vrot.slane %v4761, 3
      %v4764 = vor.u32 %v4760, %v4763
      %v4765 = vsel %vm4108, %v4756, %v4764
      %v4767 = vshrl.u32 %v3241, 16
      %v4769 = vrot.slane %v4767, 2
      %v4770 = vshll.u32 %v3241, 16
      %v4772 = vrot.slane %v4770, 3
      %v4773 = vor.u32 %v4769, %v4772
      %v4774 = vsel %vm4108, %v4764, %v4773
      %v4776 = vshrl.u32 %v3242, 16
      %v4778 = vrot.slane %v4776, 2
      %v4779 = vshll.u32 %v3242, 16
      %v4781 = vrot.slane %v4779, 3
      %v4782 = vor.u32 %v4778, %v4781
      %v4783 = vsel %vm4108, %v4773, %v4782
      %v4785 = vshrl.u32 %v3243, 16
      %v4787 = vrot.slane %v4785, 2
      %v4788 = vshll.u32 %v3243, 16
      %v4790 = vrot.slane %v4788, 3
      %v4791 = vor.u32 %v4787, %v4790
      %v4792 = vsel %vm4108, %v4782, %v4791
      %v4794 = vshrl.u32 %v3244, 16
      %v4796 = vrot.slane %v4794, 2
      %v4797 = vshll.u32 %v3244, 16
      %v4799 = vrot.slane %v4797, 3
      %v4800 = vor.u32 %v4796, %v4799
      %v4801 = vsel %vm4108, %v4791, %v4800
      %v4803 = vshrl.u32 %v3245, 16
      %v4805 = vrot.slane %v4803, 2
      %v4806 = vshll.u32 %v3245, 16
      %v4808 = vrot.slane %v4806, 3
      %v4809 = vor.u32 %v4805, %v4808
      %v4810 = vsel %vm4108, %v4800, %v4809
      %v4812 = vshrl.u32 %v3246, 16
      %v4814 = vrot.slane %v4812, 2
      %v4815 = vshll.u32 %v3246, 16
      %v4817 = vrot.slane %v4815, 3
      %v4818 = vor.u32 %v4814, %v4817
      %v4819 = vsel %vm4108, %v4809, %v4818
      %v4821 = vshrl.u32 %v3247, 16
      %v4823 = vrot.slane %v4821, 2
      %v4824 = vshll.u32 %v3247, 16
      %v4826 = vrot.slane %v4824, 3
      %v4827 = vor.u32 %v4823, %v4826
      %v4828 = vsel %vm4108, %v4818, %v4827
      %4837 = vmatprep.subr.bf16.mxu0 0
      %4838 = vmatpush1.bf16.msra.mxu0 %v4828
      %4839 = vmatprep.subr.bf16.mxu0 0
      %4840 = vmatpush1.bf16.msra.mxu0 %v4819
      %4841 = vmatprep.subr.bf16.mxu0 0
      %4842 = vmatpush1.bf16.msra.mxu0 %v4810
      %4843 = vmatprep.subr.bf16.mxu0 0
      %4844 = vmatpush1.bf16.msra.mxu0 %v4801
      %4845 = vmatprep.subr.bf16.mxu0 0
      %4846 = vmatpush1.bf16.msra.mxu0 %v4792
      %4847 = vmatprep.subr.bf16.mxu0 0
      %4848 = vmatpush1.bf16.msra.mxu0 %v4783
      %4849 = vmatprep.subr.bf16.mxu0 0
      %4850 = vmatpush1.bf16.msra.mxu0 %v4774
      %4851 = vmatprep.subr.bf16.mxu0 0
      %4852 = vmatpush1.bf16.msra.mxu0 %v4765
      %4853 = vmatprep.subr.bf16.mxu0 0
      %4854 = vmatpush2.bf16.msra.mxu0 0
      %4855 = vmatprep.subr.bf16.mxu0 0
      %4856 = vmatpush2.bf16.msra.mxu0 0
      %4857 = vmatprep.subr.bf16.mxu0 0
      %4858 = vmatpush2.bf16.msra.mxu0 0
      %4859 = vmatprep.subr.bf16.mxu0 0
      %4860 = vmatpush2.bf16.msra.mxu0 0
      %4861 = vmatprep.subr.bf16.mxu0 0
      %4862 = vmatpush2.bf16.msra.mxu0 0
      %4863 = vmatprep.subr.bf16.mxu0 0
      %4864 = vmatpush2.bf16.msra.mxu0 0
      %4865 = vmatprep.subr.bf16.mxu0 0
      %4866 = vmatpush2.bf16.msra.mxu0 0
      %4867 = vmatprep.subr.bf16.mxu0 0
      %4868 = vmatpush2.bf16.msra.mxu0 0
      %4869 = vmatprep.mubr.bf16.mxu0 0
      %4870 = vmatmul.mubr.bf16.gmra.mxu0 %v4741
      %v4871 = vpop.f32.mrf.mxu0
      %v4872 = vadd.f32 0.0, %v4871
      %v4873 = vpop.f32.mrf.mxu0
      %v4874 = vpop.f32.mrf.mxu0
      %v4875 = vadd.f32 0.0, %v4874
      %v4876 = vpop.f32.mrf.mxu0
      %4877 = vmatprep.mubr.bf16.mxu0 0
      %4878 = vmatmul.mubr.bf16.gmra.mxu0 %v4742
      %v4879 = vpop.f32.mrf.mxu0
      %v4880 = vadd.f32 0.0, %v4879
      %v4881 = vpop.f32.mrf.mxu0
      %v4882 = vpop.f32.mrf.mxu0
      %v4883 = vadd.f32 0.0, %v4882
      %v4884 = vpop.f32.mrf.mxu0
      %4885 = vmatprep.mubr.bf16.mxu0 0
      %4886 = vmatmul.mubr.bf16.gmra.mxu0 %v4743
      %v4887 = vpop.f32.mrf.mxu0
      %v4888 = vadd.f32 0.0, %v4887
      %v4889 = vpop.f32.mrf.mxu0
      %v4890 = vpop.f32.mrf.mxu0
      %v4891 = vadd.f32 0.0, %v4890
      %v4892 = vpop.f32.mrf.mxu0
      %4893 = vmatprep.mubr.bf16.mxu0 0
      %4894 = vmatmul.mubr.bf16.gmra.mxu0 %v4744
      %v4895 = vpop.f32.mrf.mxu0
      %v4896 = vadd.f32 0.0, %v4895
      %v4897 = vpop.f32.mrf.mxu0
      %v4898 = vpop.f32.mrf.mxu0
      %v4899 = vadd.f32 0.0, %v4898
      %v4900 = vpop.f32.mrf.mxu0
      %4901 = vmatprep.mubr.bf16.mxu0 0
      %4902 = vmatmul.mubr.bf16.gmra.mxu0 %v4745
      %v4903 = vpop.f32.mrf.mxu0
      %v4904 = vadd.f32 0.0, %v4903
      %v4905 = vpop.f32.mrf.mxu0
      %v4906 = vpop.f32.mrf.mxu0
      %v4907 = vadd.f32 0.0, %v4906
      %v4908 = vpop.f32.mrf.mxu0
      %4909 = vmatprep.mubr.bf16.mxu0 0
      %4910 = vmatmul.mubr.bf16.gmra.mxu0 %v4746
      %v4911 = vpop.f32.mrf.mxu0
      %v4912 = vadd.f32 0.0, %v4911
      %v4913 = vpop.f32.mrf.mxu0
      %v4914 = vpop.f32.mrf.mxu0
      %v4915 = vadd.f32 0.0, %v4914
      %v4916 = vpop.f32.mrf.mxu0
      %4917 = vmatprep.mubr.bf16.mxu0 0
      %4918 = vmatmul.mubr.bf16.gmra.mxu0 %v4747
      %v4919 = vpop.f32.mrf.mxu0
      %v4920 = vadd.f32 0.0, %v4919
      %v4921 = vpop.f32.mrf.mxu0
      %v4922 = vpop.f32.mrf.mxu0
      %v4923 = vadd.f32 0.0, %v4922
      %v4924 = vpop.f32.mrf.mxu0
      %4925 = vmatprep.mubr.bf16.mxu0 0
      %4926 = vmatmul.mubr.bf16.gmra.mxu0 %v4748
      %v4927 = vpop.f32.mrf.mxu0
      %v4928 = vadd.f32 0.0, %v4927
      %v4929 = vpop.f32.mrf.mxu0
      %v4930 = vpop.f32.mrf.mxu0
      %v4931 = vadd.f32 0.0, %v4930
      %v4932 = vpop.f32.mrf.mxu0
      %4933 = vdwg.mxu0
      %4934 = vset.pattern.permute.xlu0 65
      %4935 = vperm.xlu0 %4934, %v2724
      %v4936 = vpop.permute.xlu0 %4935
      %4938 = vset.pattern.permute.xlu0 65
      %4939 = vperm.xlu0 %4938, %v2725
      %v4940 = vpop.permute.xlu0 %4939
      %4942 = vset.pattern.permute.xlu0 65
      %4943 = vperm.xlu0 %4942, %v2726
      %v4944 = vpop.permute.xlu0 %4943
      %4946 = vset.pattern.permute.xlu0 65
      %4947 = vperm.xlu0 %4946, %v2727
      %v4948 = vpop.permute.xlu0 %4947
      %4950 = vset.pattern.permute.xlu0 65
      %4951 = vperm.xlu0 %4950, %v2728
      %v4952 = vpop.permute.xlu0 %4951
      %4954 = vset.pattern.permute.xlu0 65
      %4955 = vperm.xlu0 %4954, %v2729
      %v4956 = vpop.permute.xlu0 %4955
      %4958 = vset.pattern.permute.xlu0 65
      %4959 = vperm.xlu0 %4958, %v2730
      %v4960 = vpop.permute.xlu0 %4959
      %4962 = vset.pattern.permute.xlu0 65
      %4963 = vperm.xlu0 %4962, %v2731
      %v4964 = vpop.permute.xlu0 %4963
      %4966 = vset.pattern.permute.xlu0 65
      %4967 = vperm.xlu0 %4966, %v2732
      %v4968 = vpop.permute.xlu0 %4967
      %4970 = vset.pattern.permute.xlu0 65
      %4971 = vperm.xlu0 %4970, %v2733
      %v4972 = vpop.permute.xlu0 %4971
      %4974 = vset.pattern.permute.xlu0 65
      %4975 = vperm.xlu0 %4974, %v2734
      %v4976 = vpop.permute.xlu0 %4975
      %4978 = vset.pattern.permute.xlu0 65
      %4979 = vperm.xlu0 %4978, %v2735
      %v4980 = vpop.permute.xlu0 %4979
      %4982 = vset.pattern.permute.xlu0 65
      %4983 = vperm.xlu0 %4982, %v2736
      %v4984 = vpop.permute.xlu0 %4983
      %4986 = vset.pattern.permute.xlu0 65
      %4987 = vperm.xlu0 %4986, %v2737
      %v4988 = vpop.permute.xlu0 %4987
      %4990 = vset.pattern.permute.xlu0 65
      %4991 = vperm.xlu0 %4990, %v2738
      %v4992 = vpop.permute.xlu0 %4991
      %4994 = vset.pattern.permute.xlu0 65
      %4995 = vperm.xlu0 %4994, %v2739
      %v4996 = vpop.permute.xlu0 %4995
      %v4998 = vlaneseq
      %v4999 = vshrl.u32 %v4998, 7
      %v5000 = vsub.s32 1, %v4999
      %v5001 = vrot.slane %v2820, %v5000
      %v5002 = vsub.f32 %v4936, %v5001
      %v5003 = vsub.f32 %v4940, %v5001
      %v5004 = vsub.f32 %v4944, %v5001
      %v5005 = vsub.f32 %v4948, %v5001
      %v5006 = vsub.f32 %v4952, %v5001
      %v5007 = vsub.f32 %v4956, %v5001
      %v5008 = vsub.f32 %v4960, %v5001
      %v5009 = vsub.f32 %v4964, %v5001
      %v5010 = vsub.f32 %v4968, %v5001
      %v5011 = vsub.f32 %v4972, %v5001
      %v5012 = vsub.f32 %v4976, %v5001
      %v5013 = vsub.f32 %v4980, %v5001
      %v5014 = vsub.f32 %v4984, %v5001
      %v5015 = vsub.f32 %v4988, %v5001
      %v5016 = vsub.f32 %v4992, %v5001
      %v5017 = vsub.f32 %v4996, %v5001
      %v5018 = vsel %vm4081, %v5002, -1e+30
      %v5019 = vsel %vm4082, %v5003, -1e+30
      %v5020 = vsel %vm4083, %v5004, -1e+30
      %v5021 = vsel %vm4084, %v5005, -1e+30
      %v5022 = vsel %vm4085, %v5006, -1e+30
      %v5023 = vsel %vm4086, %v5007, -1e+30
      %v5024 = vsel %vm4087, %v5008, -1e+30
      %v5025 = vsel %vm4088, %v5009, -1e+30
      %v5026 = vsel %vm4089, %v5010, -1e+30
      %v5027 = vsel %vm4090, %v5011, -1e+30
      %v5028 = vsel %vm4091, %v5012, -1e+30
      %v5029 = vsel %vm4092, %v5013, -1e+30
      %v5030 = vsel %vm4093, %v5014, -1e+30
      %v5031 = vsel %vm4094, %v5015, -1e+30
      %v5032 = vsel %vm4095, %v5016, -1e+30
      %v5033 = vsel %vm4096, %v5017, -1e+30
      %v5034 = vpack.c.bf16 %v5019, %v5018
      %v5035 = vpack.c.bf16 %v5021, %v5020
      %v5036 = vpack.c.bf16 %v5023, %v5022
      %v5037 = vpack.c.bf16 %v5025, %v5024
      %v5038 = vpack.c.bf16 %v5027, %v5026
      %v5039 = vpack.c.bf16 %v5029, %v5028
      %v5040 = vpack.c.bf16 %v5031, %v5030
      %v5041 = vpack.c.bf16 %v5033, %v5032
      %v5043 = vmul.bf16 %v5034, 1069105081
      %v5044 = vpow.bf16.pop %v5043
      %v5046 = vmul.bf16 %v5035, 1069105081
      %v5047 = vpow.bf16.pop %v5046
      %v5049 = vmul.bf16 %v5036, 1069105081
      %v5050 = vpow.bf16.pop %v5049
      %v5052 = vmul.bf16 %v5037, 1069105081
      %v5053 = vpow.bf16.pop %v5052
      %v5055 = vmul.bf16 %v5038, 1069105081
      %v5056 = vpow.bf16.pop %v5055
      %v5058 = vmul.bf16 %v5039, 1069105081
      %v5059 = vpow.bf16.pop %v5058
      %v5061 = vmul.bf16 %v5040, 1069105081
      %v5062 = vpow.bf16.pop %v5061
      %v5064 = vmul.bf16 %v5041, 1069105081
      %v5065 = vpow.bf16.pop %v5064
      %v5066 = vmul.bf16 %v4350, %v5044
      %v5067 = vmul.bf16 %v4351, %v5047
      %v5068 = vmul.bf16 %v4352, %v5050
      %v5069 = vmul.bf16 %v4353, %v5053
      %v5070 = vmul.bf16 %v4354, %v5056
      %v5071 = vmul.bf16 %v4355, %v5059
      %v5072 = vmul.bf16 %v4356, %v5062
      %v5073 = vmul.bf16 %v4357, %v5065
      %5074 = vrot.lane.b32.xlu0 %v4765, 112
      %v5075 = vpop.permute.xlu0 %5074
      %5076 = vrot.lane.b32.xlu0 %v4774, 112
      %v5077 = vpop.permute.xlu0 %5076
      %5078 = vrot.lane.b32.xlu0 %v4783, 112
      %v5079 = vpop.permute.xlu0 %5078
      %5080 = vrot.lane.b32.xlu0 %v4792, 112
      %v5081 = vpop.permute.xlu0 %5080
      %5082 = vrot.lane.b32.xlu0 %v4801, 112
      %v5083 = vpop.permute.xlu0 %5082
      %5084 = vrot.lane.b32.xlu0 %v4810, 112
      %v5085 = vpop.permute.xlu0 %5084
      %5086 = vrot.lane.b32.xlu0 %v4819, 112
      %v5087 = vpop.permute.xlu0 %5086
      %5088 = vrot.lane.b32.xlu0 %v4828, 112
      %v5089 = vpop.permute.xlu0 %5088
      %5098 = vmatprep.subr.bf16.mxu0 0
      %5099 = vmatpush1.bf16.msra.mxu0 %v5089
      %5100 = vmatprep.subr.bf16.mxu0 0
      %5101 = vmatpush1.bf16.msra.mxu0 %v5087
      %5102 = vmatprep.subr.bf16.mxu0 0
      %5103 = vmatpush1.bf16.msra.mxu0 %v5085
      %5104 = vmatprep.subr.bf16.mxu0 0
      %5105 = vmatpush1.bf16.msra.mxu0 %v5083
      %5106 = vmatprep.subr.bf16.mxu0 0
      %5107 = vmatpush1.bf16.msra.mxu0 %v5081
      %5108 = vmatprep.subr.bf16.mxu0 0
      %5109 = vmatpush1.bf16.msra.mxu0 %v5079
      %5110 = vmatprep.subr.bf16.mxu0 0
      %5111 = vmatpush1.bf16.msra.mxu0 %v5077
      %5112 = vmatprep.subr.bf16.mxu0 0
      %5113 = vmatpush1.bf16.msra.mxu0 %v5075
      %5114 = vmatprep.subr.bf16.mxu0 0
      %5115 = vmatpush2.bf16.msra.mxu0 0
      %5116 = vmatprep.subr.bf16.mxu0 0
      %5117 = vmatpush2.bf16.msra.mxu0 0
      %5118 = vmatprep.subr.bf16.mxu0 0
      %5119 = vmatpush2.bf16.msra.mxu0 0
      %5120 = vmatprep.subr.bf16.mxu0 0
      %5121 = vmatpush2.bf16.msra.mxu0 0
      %5122 = vmatprep.subr.bf16.mxu0 0
      %5123 = vmatpush2.bf16.msra.mxu0 0
      %5124 = vmatprep.subr.bf16.mxu0 0
      %5125 = vmatpush2.bf16.msra.mxu0 0
      %5126 = vmatprep.subr.bf16.mxu0 0
      %5127 = vmatpush2.bf16.msra.mxu0 0
      %5128 = vmatprep.subr.bf16.mxu0 0
      %5129 = vmatpush2.bf16.msra.mxu0 0
      %5130 = vmatprep.mubr.bf16.mxu0 0
      %5131 = vmatmul.mubr.bf16.gmra.mxu0 %v5066
      %v5132 = vpop.f32.mrf.mxu0
      %v5133 = vadd.f32 0.0, %v5132
      %v5134 = vpop.f32.mrf.mxu0
      %v5135 = vpop.f32.mrf.mxu0
      %v5136 = vadd.f32 0.0, %v5135
      %v5137 = vpop.f32.mrf.mxu0
      %5138 = vmatprep.mubr.bf16.mxu0 0
      %5139 = vmatmul.mubr.bf16.gmra.mxu0 %v5067
      %v5140 = vpop.f32.mrf.mxu0
      %v5141 = vadd.f32 0.0, %v5140
      %v5142 = vpop.f32.mrf.mxu0
      %v5143 = vpop.f32.mrf.mxu0
      %v5144 = vadd.f32 0.0, %v5143
      %v5145 = vpop.f32.mrf.mxu0
      %5146 = vmatprep.mubr.bf16.mxu0 0
      %5147 = vmatmul.mubr.bf16.gmra.mxu0 %v5068
      %v5148 = vpop.f32.mrf.mxu0
      %v5149 = vadd.f32 0.0, %v5148
      %v5150 = vpop.f32.mrf.mxu0
      %v5151 = vpop.f32.mrf.mxu0
      %v5152 = vadd.f32 0.0, %v5151
      %v5153 = vpop.f32.mrf.mxu0
      %5154 = vmatprep.mubr.bf16.mxu0 0
      %5155 = vmatmul.mubr.bf16.gmra.mxu0 %v5069
      %v5156 = vpop.f32.mrf.mxu0
      %v5157 = vadd.f32 0.0, %v5156
      %v5158 = vpop.f32.mrf.mxu0
      %v5159 = vpop.f32.mrf.mxu0
      %v5160 = vadd.f32 0.0, %v5159
      %v5161 = vpop.f32.mrf.mxu0
      %5162 = vmatprep.mubr.bf16.mxu0 0
      %5163 = vmatmul.mubr.bf16.gmra.mxu0 %v5070
      %v5164 = vpop.f32.mrf.mxu0
      %v5165 = vadd.f32 0.0, %v5164
      %v5166 = vpop.f32.mrf.mxu0
      %v5167 = vpop.f32.mrf.mxu0
      %v5168 = vadd.f32 0.0, %v5167
      %v5169 = vpop.f32.mrf.mxu0
      %5170 = vmatprep.mubr.bf16.mxu0 0
      %5171 = vmatmul.mubr.bf16.gmra.mxu0 %v5071
      %v5172 = vpop.f32.mrf.mxu0
      %v5173 = vadd.f32 0.0, %v5172
      %v5174 = vpop.f32.mrf.mxu0
      %v5175 = vpop.f32.mrf.mxu0
      %v5176 = vadd.f32 0.0, %v5175
      %v5177 = vpop.f32.mrf.mxu0
      %5178 = vmatprep.mubr.bf16.mxu0 0
      %5179 = vmatmul.mubr.bf16.gmra.mxu0 %v5072
      %v5180 = vpop.f32.mrf.mxu0
      %v5181 = vadd.f32 0.0, %v5180
      %v5182 = vpop.f32.mrf.mxu0
      %v5183 = vpop.f32.mrf.mxu0
      %v5184 = vadd.f32 0.0, %v5183
      %v5185 = vpop.f32.mrf.mxu0
      %5186 = vmatprep.mubr.bf16.mxu0 0
      %5187 = vmatmul.mubr.bf16.gmra.mxu0 %v5073
      %v5188 = vpop.f32.mrf.mxu0
      %v5189 = vadd.f32 0.0, %v5188
      %v5190 = vpop.f32.mrf.mxu0
      %v5191 = vpop.f32.mrf.mxu0
      %v5192 = vadd.f32 0.0, %v5191
      %v5193 = vpop.f32.mrf.mxu0
      %5194 = vdwg.mxu0
      %5195 = vset.pattern.permute.xlu0 66
      %5196 = vperm.xlu0 %5195, %v2724
      %v5197 = vpop.permute.xlu0 %5196
      %5199 = vset.pattern.permute.xlu0 66
      %5200 = vperm.xlu0 %5199, %v2725
      %v5201 = vpop.permute.xlu0 %5200
      %5203 = vset.pattern.permute.xlu0 66
      %5204 = vperm.xlu0 %5203, %v2726
      %v5205 = vpop.permute.xlu0 %5204
      %5207 = vset.pattern.permute.xlu0 66
      %5208 = vperm.xlu0 %5207, %v2727
      %v5209 = vpop.permute.xlu0 %5208
      %5211 = vset.pattern.permute.xlu0 66
      %5212 = vperm.xlu0 %5211, %v2728
      %v5213 = vpop.permute.xlu0 %5212
      %5215 = vset.pattern.permute.xlu0 66
      %5216 = vperm.xlu0 %5215, %v2729
      %v5217 = vpop.permute.xlu0 %5216
      %5219 = vset.pattern.permute.xlu0 66
      %5220 = vperm.xlu0 %5219, %v2730
      %v5221 = vpop.permute.xlu0 %5220
      %5223 = vset.pattern.permute.xlu0 66
      %5224 = vperm.xlu0 %5223, %v2731
      %v5225 = vpop.permute.xlu0 %5224
      %5227 = vset.pattern.permute.xlu0 66
      %5228 = vperm.xlu0 %5227, %v2732
      %v5229 = vpop.permute.xlu0 %5228
      %5231 = vset.pattern.permute.xlu0 66
      %5232 = vperm.xlu0 %5231, %v2733
      %v5233 = vpop.permute.xlu0 %5232
      %5235 = vset.pattern.permute.xlu0 66
      %5236 = vperm.xlu0 %5235, %v2734
      %v5237 = vpop.permute.xlu0 %5236
      %5239 = vset.pattern.permute.xlu0 66
      %5240 = vperm.xlu0 %5239, %v2735
      %v5241 = vpop.permute.xlu0 %5240
      %5243 = vset.pattern.permute.xlu0 66
      %5244 = vperm.xlu0 %5243, %v2736
      %v5245 = vpop.permute.xlu0 %5244
      %5247 = vset.pattern.permute.xlu0 66
      %5248 = vperm.xlu0 %5247, %v2737
      %v5249 = vpop.permute.xlu0 %5248
      %5251 = vset.pattern.permute.xlu0 66
      %5252 = vperm.xlu0 %5251, %v2738
      %v5253 = vpop.permute.xlu0 %5252
      %5255 = vset.pattern.permute.xlu0 66
      %5256 = vperm.xlu0 %5255, %v2739
      %v5257 = vpop.permute.xlu0 %5256
      %v5259 = vlaneseq
      %v5260 = vshrl.u32 %v5259, 7
      %v5261 = vsub.s32 2, %v5260
      %v5262 = vrot.slane %v2820, %v5261
      %v5263 = vsub.f32 %v5197, %v5262
      %v5264 = vsub.f32 %v5201, %v5262
      %v5265 = vsub.f32 %v5205, %v5262
      %v5266 = vsub.f32 %v5209, %v5262
      %v5267 = vsub.f32 %v5213, %v5262
      %v5268 = vsub.f32 %v5217, %v5262
      %v5269 = vsub.f32 %v5221, %v5262
      %v5270 = vsub.f32 %v5225, %v5262
      %v5271 = vsub.f32 %v5229, %v5262
      %v5272 = vsub.f32 %v5233, %v5262
      %v5273 = vsub.f32 %v5237, %v5262
      %v5274 = vsub.f32 %v5241, %v5262
      %v5275 = vsub.f32 %v5245, %v5262
      %v5276 = vsub.f32 %v5249, %v5262
      %v5277 = vsub.f32 %v5253, %v5262
      %v5278 = vsub.f32 %v5257, %v5262
      %v5279 = vsel %vm4081, %v5263, -1e+30
      %v5280 = vsel %vm4082, %v5264, -1e+30
      %v5281 = vsel %vm4083, %v5265, -1e+30
      %v5282 = vsel %vm4084, %v5266, -1e+30
      %v5283 = vsel %vm4085, %v5267, -1e+30
      %v5284 = vsel %vm4086, %v5268, -1e+30
      %v5285 = vsel %vm4087, %v5269, -1e+30
      %v5286 = vsel %vm4088, %v5270, -1e+30
      %v5287 = vsel %vm4089, %v5271, -1e+30
      %v5288 = vsel %vm4090, %v5272, -1e+30
      %v5289 = vsel %vm4091, %v5273, -1e+30
      %v5290 = vsel %vm4092, %v5274, -1e+30
      %v5291 = vsel %vm4093, %v5275, -1e+30
      %v5292 = vsel %vm4094, %v5276, -1e+30
      %v5293 = vsel %vm4095, %v5277, -1e+30
      %v5294 = vsel %vm4096, %v5278, -1e+30
      %v5295 = vpack.c.bf16 %v5280, %v5279
      %v5296 = vpack.c.bf16 %v5282, %v5281
      %v5297 = vpack.c.bf16 %v5284, %v5283
      %v5298 = vpack.c.bf16 %v5286, %v5285
      %v5299 = vpack.c.bf16 %v5288, %v5287
      %v5300 = vpack.c.bf16 %v5290, %v5289
      %v5301 = vpack.c.bf16 %v5292, %v5291
      %v5302 = vpack.c.bf16 %v5294, %v5293
      %v5304 = vmul.bf16 %v5295, 1069105081
      %v5305 = vpow.bf16.pop %v5304
      %v5307 = vmul.bf16 %v5296, 1069105081
      %v5308 = vpow.bf16.pop %v5307
      %v5310 = vmul.bf16 %v5297, 1069105081
      %v5311 = vpow.bf16.pop %v5310
      %v5313 = vmul.bf16 %v5298, 1069105081
      %v5314 = vpow.bf16.pop %v5313
      %v5316 = vmul.bf16 %v5299, 1069105081
      %v5317 = vpow.bf16.pop %v5316
      %v5319 = vmul.bf16 %v5300, 1069105081
      %v5320 = vpow.bf16.pop %v5319
      %v5322 = vmul.bf16 %v5301, 1069105081
      %v5323 = vpow.bf16.pop %v5322
      %v5325 = vmul.bf16 %v5302, 1069105081
      %v5326 = vpow.bf16.pop %v5325
      %v5327 = vmul.bf16 %v4350, %v5305
      %v5328 = vmul.bf16 %v4351, %v5308
      %v5329 = vmul.bf16 %v4352, %v5311
      %v5330 = vmul.bf16 %v4353, %v5314
      %v5331 = vmul.bf16 %v4354, %v5317
      %v5332 = vmul.bf16 %v4355, %v5320
      %v5333 = vmul.bf16 %v4356, %v5323
      %v5334 = vmul.bf16 %v4357, %v5326
      %5335 = vrot.lane.b32.xlu0 %v4765, 96
      %v5336 = vpop.permute.xlu0 %5335
      %5337 = vrot.lane.b32.xlu0 %v4774, 96
      %v5338 = vpop.permute.xlu0 %5337
      %5339 = vrot.lane.b32.xlu0 %v4783, 96
      %v5340 = vpop.permute.xlu0 %5339
      %5341 = vrot.lane.b32.xlu0 %v4792, 96
      %v5342 = vpop.permute.xlu0 %5341
      %5343 = vrot.lane.b32.xlu0 %v4801, 96
      %v5344 = vpop.permute.xlu0 %5343
      %5345 = vrot.lane.b32.xlu0 %v4810, 96
      %v5346 = vpop.permute.xlu0 %5345
      %5347 = vrot.lane.b32.xlu0 %v4819, 96
      %v5348 = vpop.permute.xlu0 %5347
      %5349 = vrot.lane.b32.xlu0 %v4828, 96
      %v5350 = vpop.permute.xlu0 %5349
      %5359 = vmatprep.subr.bf16.mxu0 0
      %5360 = vmatpush1.bf16.msra.mxu0 %v5350
      %5361 = vmatprep.subr.bf16.mxu0 0
      %5362 = vmatpush1.bf16.msra.mxu0 %v5348
      %5363 = vmatprep.subr.bf16.mxu0 0
      %5364 = vmatpush1.bf16.msra.mxu0 %v5346
      %5365 = vmatprep.subr.bf16.mxu0 0
      %5366 = vmatpush1.bf16.msra.mxu0 %v5344
      %5367 = vmatprep.subr.bf16.mxu0 0
      %5368 = vmatpush1.bf16.msra.mxu0 %v5342
      %5369 = vmatprep.subr.bf16.mxu0 0
      %5370 = vmatpush1.bf16.msra.mxu0 %v5340
      %5371 = vmatprep.subr.bf16.mxu0 0
      %5372 = vmatpush1.bf16.msra.mxu0 %v5338
      %5373 = vmatprep.subr.bf16.mxu0 0
      %5374 = vmatpush1.bf16.msra.mxu0 %v5336
      %5375 = vmatprep.subr.bf16.mxu0 0
      %5376 = vmatpush2.bf16.msra.mxu0 0
      %5377 = vmatprep.subr.bf16.mxu0 0
      %5378 = vmatpush2.bf16.msra.mxu0 0
      %5379 = vmatprep.subr.bf16.mxu0 0
      %5380 = vmatpush2.bf16.msra.mxu0 0
      %5381 = vmatprep.subr.bf16.mxu0 0
      %5382 = vmatpush2.bf16.msra.mxu0 0
      %5383 = vmatprep.subr.bf16.mxu0 0
      %5384 = vmatpush2.bf16.msra.mxu0 0
      %5385 = vmatprep.subr.bf16.mxu0 0
      %5386 = vmatpush2.bf16.msra.mxu0 0
      %5387 = vmatprep.subr.bf16.mxu0 0
      %5388 = vmatpush2.bf16.msra.mxu0 0
      %5389 = vmatprep.subr.bf16.mxu0 0
      %5390 = vmatpush2.bf16.msra.mxu0 0
      %5391 = vmatprep.mubr.bf16.mxu0 0
      %5392 = vmatmul.mubr.bf16.gmra.mxu0 %v5327
      %v5393 = vpop.f32.mrf.mxu0
      %v5394 = vadd.f32 0.0, %v5393
      %v5395 = vpop.f32.mrf.mxu0
      %v5396 = vpop.f32.mrf.mxu0
      %v5397 = vadd.f32 0.0, %v5396
      %v5398 = vpop.f32.mrf.mxu0
      %5399 = vmatprep.mubr.bf16.mxu0 0
      %5400 = vmatmul.mubr.bf16.gmra.mxu0 %v5328
      %v5401 = vpop.f32.mrf.mxu0
      %v5402 = vadd.f32 0.0, %v5401
      %v5403 = vpop.f32.mrf.mxu0
      %v5404 = vpop.f32.mrf.mxu0
      %v5405 = vadd.f32 0.0, %v5404
      %v5406 = vpop.f32.mrf.mxu0
      %5407 = vmatprep.mubr.bf16.mxu0 0
      %5408 = vmatmul.mubr.bf16.gmra.mxu0 %v5329
      %v5409 = vpop.f32.mrf.mxu0
      %v5410 = vadd.f32 0.0, %v5409
      %v5411 = vpop.f32.mrf.mxu0
      %v5412 = vpop.f32.mrf.mxu0
      %v5413 = vadd.f32 0.0, %v5412
      %v5414 = vpop.f32.mrf.mxu0
      %5415 = vmatprep.mubr.bf16.mxu0 0
      %5416 = vmatmul.mubr.bf16.gmra.mxu0 %v5330
      %v5417 = vpop.f32.mrf.mxu0
      %v5418 = vadd.f32 0.0, %v5417
      %v5419 = vpop.f32.mrf.mxu0
      %v5420 = vpop.f32.mrf.mxu0
      %v5421 = vadd.f32 0.0, %v5420
      %v5422 = vpop.f32.mrf.mxu0
      %5423 = vmatprep.mubr.bf16.mxu0 0
      %5424 = vmatmul.mubr.bf16.gmra.mxu0 %v5331
      %v5425 = vpop.f32.mrf.mxu0
      %v5426 = vadd.f32 0.0, %v5425
      %v5427 = vpop.f32.mrf.mxu0
      %v5428 = vpop.f32.mrf.mxu0
      %v5429 = vadd.f32 0.0, %v5428
      %v5430 = vpop.f32.mrf.mxu0
      %5431 = vmatprep.mubr.bf16.mxu0 0
      %5432 = vmatmul.mubr.bf16.gmra.mxu0 %v5332
      %v5433 = vpop.f32.mrf.mxu0
      %v5434 = vadd.f32 0.0, %v5433
      %v5435 = vpop.f32.mrf.mxu0
      %v5436 = vpop.f32.mrf.mxu0
      %v5437 = vadd.f32 0.0, %v5436
      %v5438 = vpop.f32.mrf.mxu0
      %5439 = vmatprep.mubr.bf16.mxu0 0
      %5440 = vmatmul.mubr.bf16.gmra.mxu0 %v5333
      %v5441 = vpop.f32.mrf.mxu0
      %v5442 = vadd.f32 0.0, %v5441
      %v5443 = vpop.f32.mrf.mxu0
      %v5444 = vpop.f32.mrf.mxu0
      %v5445 = vadd.f32 0.0, %v5444
      %v5446 = vpop.f32.mrf.mxu0
      %5447 = vmatprep.mubr.bf16.mxu0 0
      %5448 = vmatmul.mubr.bf16.gmra.mxu0 %v5334
      %v5449 = vpop.f32.mrf.mxu0
      %v5450 = vadd.f32 0.0, %v5449
      %v5451 = vpop.f32.mrf.mxu0
      %v5452 = vpop.f32.mrf.mxu0
      %v5453 = vadd.f32 0.0, %v5452
      %v5454 = vpop.f32.mrf.mxu0
      %5455 = vdwg.mxu0
      %5456 = vset.pattern.permute.xlu0 67
      %5457 = vperm.xlu0 %5456, %v2724
      %v5458 = vpop.permute.xlu0 %5457
      %5460 = vset.pattern.permute.xlu0 67
      %5461 = vperm.xlu0 %5460, %v2725
      %v5462 = vpop.permute.xlu0 %5461
      %5464 = vset.pattern.permute.xlu0 67
      %5465 = vperm.xlu0 %5464, %v2726
      %v5466 = vpop.permute.xlu0 %5465
      %5468 = vset.pattern.permute.xlu0 67
      %5469 = vperm.xlu0 %5468, %v2727
      %v5470 = vpop.permute.xlu0 %5469
      %5472 = vset.pattern.permute.xlu0 67
      %5473 = vperm.xlu0 %5472, %v2728
      %v5474 = vpop.permute.xlu0 %5473
      %5476 = vset.pattern.permute.xlu0 67
      %5477 = vperm.xlu0 %5476, %v2729
      %v5478 = vpop.permute.xlu0 %5477
      %5480 = vset.pattern.permute.xlu0 67
      %5481 = vperm.xlu0 %5480, %v2730
      %v5482 = vpop.permute.xlu0 %5481
      %5484 = vset.pattern.permute.xlu0 67
      %5485 = vperm.xlu0 %5484, %v2731
      %v5486 = vpop.permute.xlu0 %5485
      %5488 = vset.pattern.permute.xlu0 67
      %5489 = vperm.xlu0 %5488, %v2732
      %v5490 = vpop.permute.xlu0 %5489
      %5492 = vset.pattern.permute.xlu0 67
      %5493 = vperm.xlu0 %5492, %v2733
      %v5494 = vpop.permute.xlu0 %5493
      %5496 = vset.pattern.permute.xlu0 67
      %5497 = vperm.xlu0 %5496, %v2734
      %v5498 = vpop.permute.xlu0 %5497
      %5500 = vset.pattern.permute.xlu0 67
      %5501 = vperm.xlu0 %5500, %v2735
      %v5502 = vpop.permute.xlu0 %5501
      %5504 = vset.pattern.permute.xlu0 67
      %5505 = vperm.xlu0 %5504, %v2736
      %v5506 = vpop.permute.xlu0 %5505
      %5508 = vset.pattern.permute.xlu0 67
      %5509 = vperm.xlu0 %5508, %v2737
      %v5510 = vpop.permute.xlu0 %5509
      %5512 = vset.pattern.permute.xlu0 67
      %5513 = vperm.xlu0 %5512, %v2738
      %v5514 = vpop.permute.xlu0 %5513
      %5516 = vset.pattern.permute.xlu0 67
      %5517 = vperm.xlu0 %5516, %v2739
      %v5518 = vpop.permute.xlu0 %5517
      %v5520 = vlaneseq
      %v5521 = vshrl.u32 %v5520, 7
      %v5522 = vsub.s32 3, %v5521
      %v5523 = vrot.slane %v2820, %v5522
      %v5524 = vsub.f32 %v5458, %v5523
      %v5525 = vsub.f32 %v5462, %v5523
      %v5526 = vsub.f32 %v5466, %v5523
      %v5527 = vsub.f32 %v5470, %v5523
      %v5528 = vsub.f32 %v5474, %v5523
      %v5529 = vsub.f32 %v5478, %v5523
      %v5530 = vsub.f32 %v5482, %v5523
      %v5531 = vsub.f32 %v5486, %v5523
      %v5532 = vsub.f32 %v5490, %v5523
      %v5533 = vsub.f32 %v5494, %v5523
      %v5534 = vsub.f32 %v5498, %v5523
      %v5535 = vsub.f32 %v5502, %v5523
      %v5536 = vsub.f32 %v5506, %v5523
      %v5537 = vsub.f32 %v5510, %v5523
      %v5538 = vsub.f32 %v5514, %v5523
      %v5539 = vsub.f32 %v5518, %v5523
      %v5540 = vsel %vm4081, %v5524, -1e+30
      %v5541 = vsel %vm4082, %v5525, -1e+30
      %v5542 = vsel %vm4083, %v5526, -1e+30
      %v5543 = vsel %vm4084, %v5527, -1e+30
      %v5544 = vsel %vm4085, %v5528, -1e+30
      %v5545 = vsel %vm4086, %v5529, -1e+30
      %v5546 = vsel %vm4087, %v5530, -1e+30
      %v5547 = vsel %vm4088, %v5531, -1e+30
      %v5548 = vsel %vm4089, %v5532, -1e+30
      %v5549 = vsel %vm4090, %v5533, -1e+30
      %v5550 = vsel %vm4091, %v5534, -1e+30
      %v5551 = vsel %vm4092, %v5535, -1e+30
      %v5552 = vsel %vm4093, %v5536, -1e+30
      %v5553 = vsel %vm4094, %v5537, -1e+30
      %v5554 = vsel %vm4095, %v5538, -1e+30
      %v5555 = vsel %vm4096, %v5539, -1e+30
      %v5556 = vpack.c.bf16 %v5541, %v5540
      %v5557 = vpack.c.bf16 %v5543, %v5542
      %v5558 = vpack.c.bf16 %v5545, %v5544
      %v5559 = vpack.c.bf16 %v5547, %v5546
      %v5560 = vpack.c.bf16 %v5549, %v5548
      %v5561 = vpack.c.bf16 %v5551, %v5550
      %v5562 = vpack.c.bf16 %v5553, %v5552
      %v5563 = vpack.c.bf16 %v5555, %v5554
      %v5565 = vmul.bf16 %v5556, 1069105081
      %v5566 = vpow.bf16.pop %v5565
      %v5568 = vmul.bf16 %v5557, 1069105081
      %v5569 = vpow.bf16.pop %v5568
      %v5571 = vmul.bf16 %v5558, 1069105081
      %v5572 = vpow.bf16.pop %v5571
      %v5574 = vmul.bf16 %v5559, 1069105081
      %v5575 = vpow.bf16.pop %v5574
      %v5577 = vmul.bf16 %v5560, 1069105081
      %v5578 = vpow.bf16.pop %v5577
      %v5580 = vmul.bf16 %v5561, 1069105081
      %v5581 = vpow.bf16.pop %v5580
      %v5583 = vmul.bf16 %v5562, 1069105081
      %v5584 = vpow.bf16.pop %v5583
      %v5586 = vmul.bf16 %v5563, 1069105081
      %v5587 = vpow.bf16.pop %v5586
      %v5588 = vmul.bf16 %v4350, %v5566
      %v5589 = vmul.bf16 %v4351, %v5569
      %v5590 = vmul.bf16 %v4352, %v5572
      %v5591 = vmul.bf16 %v4353, %v5575
      %v5592 = vmul.bf16 %v4354, %v5578
      %v5593 = vmul.bf16 %v4355, %v5581
      %v5594 = vmul.bf16 %v4356, %v5584
      %v5595 = vmul.bf16 %v4357, %v5587
      %5596 = vrot.lane.b32.xlu0 %v4765, 80
      %v5597 = vpop.permute.xlu0 %5596
      %5598 = vrot.lane.b32.xlu0 %v4774, 80
      %v5599 = vpop.permute.xlu0 %5598
      %5600 = vrot.lane.b32.xlu0 %v4783, 80
      %v5601 = vpop.permute.xlu0 %5600
      %5602 = vrot.lane.b32.xlu0 %v4792, 80
      %v5603 = vpop.permute.xlu0 %5602
      %5604 = vrot.lane.b32.xlu0 %v4801, 80
      %v5605 = vpop.permute.xlu0 %5604
      %5606 = vrot.lane.b32.xlu0 %v4810, 80
      %v5607 = vpop.permute.xlu0 %5606
      %5608 = vrot.lane.b32.xlu0 %v4819, 80
      %v5609 = vpop.permute.xlu0 %5608
      %5610 = vrot.lane.b32.xlu0 %v4828, 80
      %v5611 = vpop.permute.xlu0 %5610
      %5620 = vmatprep.subr.bf16.mxu0 0
      %5621 = vmatpush1.bf16.msra.mxu0 %v5611
      %5622 = vmatprep.subr.bf16.mxu0 0
      %5623 = vmatpush1.bf16.msra.mxu0 %v5609
      %5624 = vmatprep.subr.bf16.mxu0 0
      %5625 = vmatpush1.bf16.msra.mxu0 %v5607
      %5626 = vmatprep.subr.bf16.mxu0 0
      %5627 = vmatpush1.bf16.msra.mxu0 %v5605
      %5628 = vmatprep.subr.bf16.mxu0 0
      %5629 = vmatpush1.bf16.msra.mxu0 %v5603
      %5630 = vmatprep.subr.bf16.mxu0 0
      %5631 = vmatpush1.bf16.msra.mxu0 %v5601
      %5632 = vmatprep.subr.bf16.mxu0 0
      %5633 = vmatpush1.bf16.msra.mxu0 %v5599
      %5634 = vmatprep.subr.bf16.mxu0 0
      %5635 = vmatpush1.bf16.msra.mxu0 %v5597
      %5636 = vmatprep.subr.bf16.mxu0 0
      %5637 = vmatpush2.bf16.msra.mxu0 0
      %5638 = vmatprep.subr.bf16.mxu0 0
      %5639 = vmatpush2.bf16.msra.mxu0 0
      %5640 = vmatprep.subr.bf16.mxu0 0
      %5641 = vmatpush2.bf16.msra.mxu0 0
      %5642 = vmatprep.subr.bf16.mxu0 0
      %5643 = vmatpush2.bf16.msra.mxu0 0
      %5644 = vmatprep.subr.bf16.mxu0 0
      %5645 = vmatpush2.bf16.msra.mxu0 0
      %5646 = vmatprep.subr.bf16.mxu0 0
      %5647 = vmatpush2.bf16.msra.mxu0 0
      %5648 = vmatprep.subr.bf16.mxu0 0
      %5649 = vmatpush2.bf16.msra.mxu0 0
      %5650 = vmatprep.subr.bf16.mxu0 0
      %5651 = vmatpush2.bf16.msra.mxu0 0
      %5652 = vmatprep.mubr.bf16.mxu0 0
      %5653 = vmatmul.mubr.bf16.gmra.mxu0 %v5588
      %v5654 = vpop.f32.mrf.mxu0
      %v5655 = vadd.f32 0.0, %v5654
      %v5656 = vpop.f32.mrf.mxu0
      %v5657 = vpop.f32.mrf.mxu0
      %v5658 = vadd.f32 0.0, %v5657
      %v5659 = vpop.f32.mrf.mxu0
      %5660 = vmatprep.mubr.bf16.mxu0 0
      %5661 = vmatmul.mubr.bf16.gmra.mxu0 %v5589
      %v5662 = vpop.f32.mrf.mxu0
      %v5663 = vadd.f32 0.0, %v5662
      %v5664 = vpop.f32.mrf.mxu0
      %v5665 = vpop.f32.mrf.mxu0
      %v5666 = vadd.f32 0.0, %v5665
      %v5667 = vpop.f32.mrf.mxu0
      %5668 = vmatprep.mubr.bf16.mxu0 0
      %5669 = vmatmul.mubr.bf16.gmra.mxu0 %v5590
      %v5670 = vpop.f32.mrf.mxu0
      %v5671 = vadd.f32 0.0, %v5670
      %v5672 = vpop.f32.mrf.mxu0
      %v5673 = vpop.f32.mrf.mxu0
      %v5674 = vadd.f32 0.0, %v5673
      %v5675 = vpop.f32.mrf.mxu0
      %5676 = vmatprep.mubr.bf16.mxu0 0
      %5677 = vmatmul.mubr.bf16.gmra.mxu0 %v5591
      %v5678 = vpop.f32.mrf.mxu0
      %v5679 = vadd.f32 0.0, %v5678
      %v5680 = vpop.f32.mrf.mxu0
      %v5681 = vpop.f32.mrf.mxu0
      %v5682 = vadd.f32 0.0, %v5681
      %v5683 = vpop.f32.mrf.mxu0
      %5684 = vmatprep.mubr.bf16.mxu0 0
      %5685 = vmatmul.mubr.bf16.gmra.mxu0 %v5592
      %v5686 = vpop.f32.mrf.mxu0
      %v5687 = vadd.f32 0.0, %v5686
      %v5688 = vpop.f32.mrf.mxu0
      %v5689 = vpop.f32.mrf.mxu0
      %v5690 = vadd.f32 0.0, %v5689
      %v5691 = vpop.f32.mrf.mxu0
      %5692 = vmatprep.mubr.bf16.mxu0 0
      %5693 = vmatmul.mubr.bf16.gmra.mxu0 %v5593
      %v5694 = vpop.f32.mrf.mxu0
      %v5695 = vadd.f32 0.0, %v5694
      %v5696 = vpop.f32.mrf.mxu0
      %v5697 = vpop.f32.mrf.mxu0
      %v5698 = vadd.f32 0.0, %v5697
      %v5699 = vpop.f32.mrf.mxu0
      %5700 = vmatprep.mubr.bf16.mxu0 0
      %5701 = vmatmul.mubr.bf16.gmra.mxu0 %v5594
      %v5702 = vpop.f32.mrf.mxu0
      %v5703 = vadd.f32 0.0, %v5702
      %v5704 = vpop.f32.mrf.mxu0
      %v5705 = vpop.f32.mrf.mxu0
      %v5706 = vadd.f32 0.0, %v5705
      %v5707 = vpop.f32.mrf.mxu0
      %5708 = vmatprep.mubr.bf16.mxu0 0
      %5709 = vmatmul.mubr.bf16.gmra.mxu0 %v5595
      %v5710 = vpop.f32.mrf.mxu0
      %v5711 = vadd.f32 0.0, %v5710
      %v5712 = vpop.f32.mrf.mxu0
      %v5713 = vpop.f32.mrf.mxu0
      %v5714 = vadd.f32 0.0, %v5713
      %v5715 = vpop.f32.mrf.mxu0
      %5716 = vdwg.mxu0
      %v5717 = vlaneseq
      %v5718 = vshrl.u32 %v5717, 7
      %v5719 = vsub.s32 7, %v5718
      %v5720 = vrot.slane %v4061, %v5719
      %v5721 = vmul.f32 %v5720, %v4097
      %v5722 = vmul.f32 %v5720, %v4098
      %v5723 = vadd.f32 %v5721, %v4603
      %v5724 = vadd.f32 %v5722, %v4606
      %5725 = vst.msk [vmem:[#allocation2] sm:$0xff] %vm1207, %v5723
      %5726 = vst.msk [vmem:[#allocation2 + $0x8] sm:$0xff] %vm1207, %v5724
      %5743 = vrot.lane.b32.xlu0 %v5133, 16
      %v5744 = vpop.permute.xlu0 %5743
      %5745 = vrot.lane.b32.xlu0 %v5136, 16
      %v5746 = vpop.permute.xlu0 %5745
      %5747 = vrot.lane.b32.xlu0 %v5141, 16
      %v5748 = vpop.permute.xlu0 %5747
      %5749 = vrot.lane.b32.xlu0 %v5144, 16
      %v5750 = vpop.permute.xlu0 %5749
      %5751 = vrot.lane.b32.xlu0 %v5149, 16
      %v5752 = vpop.permute.xlu0 %5751
      %5753 = vrot.lane.b32.xlu0 %v5152, 16
      %v5754 = vpop.permute.xlu0 %5753
      %5755 = vrot.lane.b32.xlu0 %v5157, 16
      %v5756 = vpop.permute.xlu0 %5755
      %5757 = vrot.lane.b32.xlu0 %v5160, 16
      %v5758 = vpop.permute.xlu0 %5757
      %5759 = vrot.lane.b32.xlu0 %v5165, 16
      %v5760 = vpop.permute.xlu0 %5759
      %5761 = vrot.lane.b32.xlu0 %v5168, 16
      %v5762 = vpop.permute.xlu0 %5761
      %5763 = vrot.lane.b32.xlu0 %v5173, 16
      %v5764 = vpop.permute.xlu0 %5763
      %5765 = vrot.lane.b32.xlu0 %v5176, 16
      %v5766 = vpop.permute.xlu0 %5765
      %5767 = vrot.lane.b32.xlu0 %v5181, 16
      %v5768 = vpop.permute.xlu0 %5767
      %5769 = vrot.lane.b32.xlu0 %v5184, 16
      %v5770 = vpop.permute.xlu0 %5769
      %5771 = vrot.lane.b32.xlu0 %v5189, 16
      %v5772 = vpop.permute.xlu0 %5771
      %5773 = vrot.lane.b32.xlu0 %v5192, 16
      %v5774 = vpop.permute.xlu0 %5773
      %5807 = vrot.lane.b32.xlu0 %v5394, 32
      %v5808 = vpop.permute.xlu0 %5807
      %5809 = vrot.lane.b32.xlu0 %v5397, 32
      %v5810 = vpop.permute.xlu0 %5809
      %5811 = vrot.lane.b32.xlu0 %v5402, 32
      %v5812 = vpop.permute.xlu0 %5811
      %5813 = vrot.lane.b32.xlu0 %v5405, 32
      %v5814 = vpop.permute.xlu0 %5813
      %5815 = vrot.lane.b32.xlu0 %v5410, 32
      %v5816 = vpop.permute.xlu0 %5815
      %5817 = vrot.lane.b32.xlu0 %v5413, 32
      %v5818 = vpop.permute.xlu0 %5817
      %5819 = vrot.lane.b32.xlu0 %v5418, 32
      %v5820 = vpop.permute.xlu0 %5819
      %5821 = vrot.lane.b32.xlu0 %v5421, 32
      %v5822 = vpop.permute.xlu0 %5821
      %5823 = vrot.lane.b32.xlu0 %v5426, 32
      %v5824 = vpop.permute.xlu0 %5823
      %5825 = vrot.lane.b32.xlu0 %v5429, 32
      %v5826 = vpop.permute.xlu0 %5825
      %5827 = vrot.lane.b32.xlu0 %v5434, 32
      %v5828 = vpop.permute.xlu0 %5827
      %5829 = vrot.lane.b32.xlu0 %v5437, 32
      %v5830 = vpop.permute.xlu0 %5829
      %5831 = vrot.lane.b32.xlu0 %v5442, 32
      %v5832 = vpop.permute.xlu0 %5831
      %5833 = vrot.lane.b32.xlu0 %v5445, 32
      %v5834 = vpop.permute.xlu0 %5833
      %5835 = vrot.lane.b32.xlu0 %v5450, 32
      %v5836 = vpop.permute.xlu0 %5835
      %5837 = vrot.lane.b32.xlu0 %v5453, 32
      %v5838 = vpop.permute.xlu0 %5837
      %5871 = vrot.lane.b32.xlu0 %v5655, 48
      %v5872 = vpop.permute.xlu0 %5871
      %5873 = vrot.lane.b32.xlu0 %v5658, 48
      %v5874 = vpop.permute.xlu0 %5873
      %5875 = vrot.lane.b32.xlu0 %v5663, 48
      %v5876 = vpop.permute.xlu0 %5875
      %5877 = vrot.lane.b32.xlu0 %v5666, 48
      %v5878 = vpop.permute.xlu0 %5877
      %5879 = vrot.lane.b32.xlu0 %v5671, 48
      %v5880 = vpop.permute.xlu0 %5879
      %5881 = vrot.lane.b32.xlu0 %v5674, 48
      %v5882 = vpop.permute.xlu0 %5881
      %5883 = vrot.lane.b32.xlu0 %v5679, 48
      %v5884 = vpop.permute.xlu0 %5883
      %5885 = vrot.lane.b32.xlu0 %v5682, 48
      %v5886 = vpop.permute.xlu0 %5885
      %5887 = vrot.lane.b32.xlu0 %v5687, 48
      %v5888 = vpop.permute.xlu0 %5887
      %5889 = vrot.lane.b32.xlu0 %v5690, 48
      %v5890 = vpop.permute.xlu0 %5889
      %5891 = vrot.lane.b32.xlu0 %v5695, 48
      %v5892 = vpop.permute.xlu0 %5891
      %5893 = vrot.lane.b32.xlu0 %v5698, 48
      %v5894 = vpop.permute.xlu0 %5893
      %5895 = vrot.lane.b32.xlu0 %v5703, 48
      %v5896 = vpop.permute.xlu0 %5895
      %5897 = vrot.lane.b32.xlu0 %v5706, 48
      %v5898 = vpop.permute.xlu0 %5897
      %5899 = vrot.lane.b32.xlu0 %v5711, 48
      %v5900 = vpop.permute.xlu0 %5899
      %5901 = vrot.lane.b32.xlu0 %v5714, 48
      %v5902 = vpop.permute.xlu0 %5901
      %v5919 = vsel %vm3108, %v4872, %v5744
      %v5920 = vsel %vm3108, %v4875, %v5746
      %v5921 = vsel %vm3108, %v4880, %v5748
      %v5922 = vsel %vm3108, %v4883, %v5750
      %v5923 = vsel %vm3108, %v4888, %v5752
      %v5924 = vsel %vm3108, %v4891, %v5754
      %v5925 = vsel %vm3108, %v4896, %v5756
      %v5926 = vsel %vm3108, %v4899, %v5758
      %v5927 = vsel %vm3108, %v4904, %v5760
      %v5928 = vsel %vm3108, %v4907, %v5762
      %v5929 = vsel %vm3108, %v4912, %v5764
      %v5930 = vsel %vm3108, %v4915, %v5766
      %v5931 = vsel %vm3108, %v4920, %v5768
      %v5932 = vsel %vm3108, %v4923, %v5770
      %v5933 = vsel %vm3108, %v4928, %v5772
      %v5934 = vsel %vm3108, %v4931, %v5774
      %v5935 = vsel %vm495, %v5919, %v5808
      %v5936 = vsel %vm495, %v5920, %v5810
      %v5937 = vsel %vm495, %v5921, %v5812
      %v5938 = vsel %vm495, %v5922, %v5814
      %v5939 = vsel %vm495, %v5923, %v5816
      %v5940 = vsel %vm495, %v5924, %v5818
      %v5941 = vsel %vm495, %v5925, %v5820
      %v5942 = vsel %vm495, %v5926, %v5822
      %v5943 = vsel %vm495, %v5927, %v5824
      %v5944 = vsel %vm495, %v5928, %v5826
      %v5945 = vsel %vm495, %v5929, %v5828
      %v5946 = vsel %vm495, %v5930, %v5830
      %v5947 = vsel %vm495, %v5931, %v5832
      %v5948 = vsel %vm495, %v5932, %v5834
      %v5949 = vsel %vm495, %v5933, %v5836
      %v5950 = vsel %vm495, %v5934, %v5838
      %v5951 = vsel %vm3141, %v5935, %v5872
      %v5952 = vsel %vm3141, %v5936, %v5874
      %v5953 = vsel %vm3141, %v5937, %v5876
      %v5954 = vsel %vm3141, %v5938, %v5878
      %v5955 = vsel %vm3141, %v5939, %v5880
      %v5956 = vsel %vm3141, %v5940, %v5882
      %v5957 = vsel %vm3141, %v5941, %v5884
      %v5958 = vsel %vm3141, %v5942, %v5886
      %v5959 = vsel %vm3141, %v5943, %v5888
      %v5960 = vsel %vm3141, %v5944, %v5890
      %v5961 = vsel %vm3141, %v5945, %v5892
      %v5962 = vsel %vm3141, %v5946, %v5894
      %v5963 = vsel %vm3141, %v5947, %v5896
      %v5964 = vsel %vm3141, %v5948, %v5898
      %v5965 = vsel %vm3141, %v5949, %v5900
      %v5966 = vsel %vm3141, %v5950, %v5902
      %v5967 = vmul.f32 %v4046, %v4394
      %v5968 = vmul.f32 %v4047, %v4397
      %v5969 = vmul.f32 %v4048, %v4402
      %v5970 = vmul.f32 %v4049, %v4405
      %v5971 = vmul.f32 %v4050, %v4410
      %v5972 = vmul.f32 %v4051, %v4413
      %v5973 = vmul.f32 %v4052, %v4418
      %v5974 = vmul.f32 %v4053, %v4421
      %v5975 = vmul.f32 %v4054, %v4426
      %v5976 = vmul.f32 %v4055, %v4429
      %v5977 = vmul.f32 %v4056, %v4434
      %v5978 = vmul.f32 %v4057, %v4437
      %v5979 = vmul.f32 %v4058, %v4442
      %v5980 = vmul.f32 %v4059, %v4445
      %v5981 = vmul.f32 %v4060, %v4450
      %v5982 = vmul.f32 %v4061, %v4453
      %v5983 = vadd.f32 %v5951, %v5967
      %v5984 = vadd.f32 %v5952, %v5968
      %v5985 = vadd.f32 %v5953, %v5969
      %v5986 = vadd.f32 %v5954, %v5970
      %v5987 = vadd.f32 %v5955, %v5971
      %v5988 = vadd.f32 %v5956, %v5972
      %v5989 = vadd.f32 %v5957, %v5973
      %v5990 = vadd.f32 %v5958, %v5974
      %v5991 = vadd.f32 %v5959, %v5975
      %v5992 = vadd.f32 %v5960, %v5976
      %v5993 = vadd.f32 %v5961, %v5977
      %v5994 = vadd.f32 %v5962, %v5978
      %v5995 = vadd.f32 %v5963, %v5979
      %v5996 = vadd.f32 %v5964, %v5980
      %v5997 = vadd.f32 %v5965, %v5981
      %v5998 = vadd.f32 %v5966, %v5982
      %v5999 = vld [vmem:[%s10] sm:$0x1]
      %v6001 = vlaneseq
      %v6002 = vshrl.u32 %v6001, 7
      %v6003 = vsub.s32 0, %v6002
      %v6004 = vrot.slane %v5999, %v6003
      %v6006 = vmul.f32 %v6004, %v1294
      %v6007 = vmul.f32 %v6004, %v1295
      %v6008 = vmul.f32 %v6004, %v1296
      %v6009 = vmul.f32 %v6004, %v1297
      %v6010 = vmul.f32 %v6004, %v1298
      %v6011 = vmul.f32 %v6004, %v1299
      %v6012 = vmul.f32 %v6004, %v1300
      %v6013 = vmul.f32 %v6004, %v1301
      %v6014 = vmul.f32 %v6004, %v1302
      %v6015 = vmul.f32 %v6004, %v1303
      %v6016 = vmul.f32 %v6004, %v1304
      %v6017 = vmul.f32 %v6004, %v1305
      %v6018 = vmul.f32 %v6004, %v1306
      %v6019 = vmul.f32 %v6004, %v1307
      %v6020 = vmul.f32 %v6004, %v1308
      %v6021 = vmul.f32 %v6004, %v1309
      %v6022 = vmul.f32 %v6004, %v1310
      %vm6040 = vcmask 1042432
      %v6041 = vrot.slane %v6006, 5
      %v6042 = vrot.slane %v6007, 5
      %v6043 = vsel %vm6040, %v6041, %v6042
      %v6044 = vrot.slane %v6008, 5
      %v6045 = vsel %vm6040, %v6042, %v6044
      %v6046 = vrot.slane %v6009, 5
      %v6047 = vsel %vm6040, %v6044, %v6046
      %v6048 = vrot.slane %v6010, 5
      %v6049 = vsel %vm6040, %v6046, %v6048
      %v6050 = vrot.slane %v6011, 5
      %v6051 = vsel %vm6040, %v6048, %v6050
      %v6052 = vrot.slane %v6012, 5
      %v6053 = vsel %vm6040, %v6050, %v6052
      %v6054 = vrot.slane %v6013, 5
      %v6055 = vsel %vm6040, %v6052, %v6054
      %v6056 = vrot.slane %v6014, 5
      %v6057 = vsel %vm6040, %v6054, %v6056
      %v6058 = vrot.slane %v6015, 5
      %v6059 = vsel %vm6040, %v6056, %v6058
      %v6060 = vrot.slane %v6016, 5
      %v6061 = vsel %vm6040, %v6058, %v6060
      %v6062 = vrot.slane %v6017, 5
      %v6063 = vsel %vm6040, %v6060, %v6062
      %v6064 = vrot.slane %v6018, 5
      %v6065 = vsel %vm6040, %v6062, %v6064
      %v6066 = vrot.slane %v6019, 5
      %v6067 = vsel %vm6040, %v6064, %v6066
      %v6068 = vrot.slane %v6020, 5
      %v6069 = vsel %vm6040, %v6066, %v6068
      %v6070 = vrot.slane %v6021, 5
      %v6071 = vsel %vm6040, %v6068, %v6070
      %v6072 = vrot.slane %v6022, 5
      %v6073 = vsel %vm6040, %v6070, %v6072
      %v6090 = vadd.f32 %v5983, %v6043
      %v6091 = vadd.f32 %v5984, %v6045
      %v6092 = vadd.f32 %v5985, %v6047
      %v6093 = vadd.f32 %v5986, %v6049
      %v6094 = vadd.f32 %v5987, %v6051
      %v6095 = vadd.f32 %v5988, %v6053
      %v6096 = vadd.f32 %v5989, %v6055
      %v6097 = vadd.f32 %v5990, %v6057
      %v6098 = vadd.f32 %v5991, %v6059
      %v6099 = vadd.f32 %v5992, %v6061
      %v6100 = vadd.f32 %v5993, %v6063
      %v6101 = vadd.f32 %v5994, %v6065
      %v6102 = vadd.f32 %v5995, %v6067
      %v6103 = vadd.f32 %v5996, %v6069
      %v6104 = vadd.f32 %v5997, %v6071
      %v6105 = vadd.f32 %v5998, %v6073
      %v6106 = vsub.f32 0.0, %v555
      %v6107 = vsub.f32 0.0, %v558
      %v6108 = vsub.f32 0.0, %v563
      %v6109 = vsub.f32 0.0, %v566
      %v6110 = vsub.f32 0.0, %v571
      %v6111 = vsub.f32 0.0, %v574
      %v6112 = vsub.f32 0.0, %v579
      %v6113 = vsub.f32 0.0, %v582
      %v6114 = vsub.f32 0.0, %v587
      %v6115 = vsub.f32 0.0, %v590
      %v6116 = vsub.f32 0.0, %v595
      %v6117 = vsub.f32 0.0, %v598
      %v6118 = vsub.f32 0.0, %v603
      %v6119 = vsub.f32 0.0, %v606
      %v6120 = vsub.f32 0.0, %v611
      %v6121 = vsub.f32 0.0, %v614
      %v6122 = vmul.f32 %v6106, 1.442695
      %v6123 = vpow.pop %v6122
      %v6124 = vmul.f32 %v6107, 1.442695
      %v6125 = vpow.pop %v6124
      %v6126 = vmul.f32 %v6108, 1.442695
      %v6127 = vpow.pop %v6126
      %v6128 = vmul.f32 %v6109, 1.442695
      %v6129 = vpow.pop %v6128
      %v6130 = vmul.f32 %v6110, 1.442695
      %v6131 = vpow.pop %v6130
      %v6132 = vmul.f32 %v6111, 1.442695
      %v6133 = vpow.pop %v6132
      %v6134 = vmul.f32 %v6112, 1.442695
      %v6135 = vpow.pop %v6134
      %v6136 = vmul.f32 %v6113, 1.442695
      %v6137 = vpow.pop %v6136
      %v6138 = vmul.f32 %v6114, 1.442695
      %v6139 = vpow.pop %v6138
      %v6140 = vmul.f32 %v6115, 1.442695
      %v6141 = vpow.pop %v6140
      %v6142 = vmul.f32 %v6116, 1.442695
      %v6143 = vpow.pop %v6142
      %v6144 = vmul.f32 %v6117, 1.442695
      %v6145 = vpow.pop %v6144
      %v6146 = vmul.f32 %v6118, 1.442695
      %v6147 = vpow.pop %v6146
      %v6148 = vmul.f32 %v6119, 1.442695
      %v6149 = vpow.pop %v6148
      %v6150 = vmul.f32 %v6120, 1.442695
      %v6151 = vpow.pop %v6150
      %v6152 = vmul.f32 %v6121, 1.442695
      %v6153 = vpow.pop %v6152
      %v6154 = vadd.f32 %v6123, 1.0
      %v6155 = vadd.f32 %v6125, 1.0
      %v6156 = vadd.f32 %v6127, 1.0
      %v6157 = vadd.f32 %v6129, 1.0
      %v6158 = vadd.f32 %v6131, 1.0
      %v6159 = vadd.f32 %v6133, 1.0
      %v6160 = vadd.f32 %v6135, 1.0
      %v6161 = vadd.f32 %v6137, 1.0
      %v6162 = vadd.f32 %v6139, 1.0
      %v6163 = vadd.f32 %v6141, 1.0
      %v6164 = vadd.f32 %v6143, 1.0
      %v6165 = vadd.f32 %v6145, 1.0
      %v6166 = vadd.f32 %v6147, 1.0
      %v6167 = vadd.f32 %v6149, 1.0
      %v6168 = vadd.f32 %v6151, 1.0
      %v6169 = vadd.f32 %v6153, 1.0
      %v6170 = vrcp.pop %v6154
      %v6171 = vrcp.pop %v6155
      %v6172 = vrcp.pop %v6156
      %v6173 = vrcp.pop %v6157
      %v6174 = vrcp.pop %v6158
      %v6175 = vrcp.pop %v6159
      %v6176 = vrcp.pop %v6160
      %v6177 = vrcp.pop %v6161
      %v6178 = vrcp.pop %v6162
      %v6179 = vrcp.pop %v6163
      %v6180 = vrcp.pop %v6164
      %v6181 = vrcp.pop %v6165
      %v6182 = vrcp.pop %v6166
      %v6183 = vrcp.pop %v6167
      %v6184 = vrcp.pop %v6168
      %v6185 = vrcp.pop %v6169
      %v6186 = vmul.f32 %v555, %v6170
      %v6187 = vmul.f32 %v558, %v6171
      %v6188 = vmul.f32 %v563, %v6172
      %v6189 = vmul.f32 %v566, %v6173
      %v6190 = vmul.f32 %v571, %v6174
      %v6191 = vmul.f32 %v574, %v6175
      %v6192 = vmul.f32 %v579, %v6176
      %v6193 = vmul.f32 %v582, %v6177
      %v6194 = vmul.f32 %v587, %v6178
      %v6195 = vmul.f32 %v590, %v6179
      %v6196 = vmul.f32 %v595, %v6180
      %v6197 = vmul.f32 %v598, %v6181
      %v6198 = vmul.f32 %v603, %v6182
      %v6199 = vmul.f32 %v606, %v6183
      %v6200 = vmul.f32 %v611, %v6184
      %v6201 = vmul.f32 %v614, %v6185
      %v6202 = vmul.f32 %v6090, %v6186
      %v6203 = vmul.f32 %v6091, %v6187
      %v6204 = vmul.f32 %v6092, %v6188
      %v6205 = vmul.f32 %v6093, %v6189
      %v6206 = vmul.f32 %v6094, %v6190
      %v6207 = vmul.f32 %v6095, %v6191
      %v6208 = vmul.f32 %v6096, %v6192
      %v6209 = vmul.f32 %v6097, %v6193
      %v6210 = vmul.f32 %v6098, %v6194
      %v6211 = vmul.f32 %v6099, %v6195
      %v6212 = vmul.f32 %v6100, %v6196
      %v6213 = vmul.f32 %v6101, %v6197
      %v6214 = vmul.f32 %v6102, %v6198
      %v6215 = vmul.f32 %v6103, %v6199
      %v6216 = vmul.f32 %v6104, %v6200
      %v6217 = vmul.f32 %v6105, %v6201
      %v6218 = vmul.f32 %v6202, %v6202
      %v6219 = vmul.f32 %v6203, %v6203
      %v6220 = vmul.f32 %v6204, %v6204
      %v6221 = vmul.f32 %v6205, %v6205
      %v6222 = vmul.f32 %v6206, %v6206
      %v6223 = vmul.f32 %v6207, %v6207
      %v6224 = vmul.f32 %v6208, %v6208
      %v6225 = vmul.f32 %v6209, %v6209
      %v6226 = vmul.f32 %v6210, %v6210
      %v6227 = vmul.f32 %v6211, %v6211
      %v6228 = vmul.f32 %v6212, %v6212
      %v6229 = vmul.f32 %v6213, %v6213
      %v6230 = vmul.f32 %v6214, %v6214
      %v6231 = vmul.f32 %v6215, %v6215
      %v6232 = vmul.f32 %v6216, %v6216
      %v6233 = vmul.f32 %v6217, %v6217
      %v6234 = vsel %vm1207, %v6218, 0.0
      %6235 = vadd.xlane.f32.xlu0 %v6234
      %v6236 = vpop.xlane.xlu0 %6235
      %v6237 = vsel %vm1207, %v6219, 0.0
      %6238 = vadd.xlane.f32.xlu0 %v6237
      %v6239 = vpop.xlane.xlu0 %6238
      %v6240 = vsel %vm1207, %v6220, 0.0
      %6241 = vadd.xlane.f32.xlu0 %v6240
      %v6242 = vpop.xlane.xlu0 %6241
      %v6243 = vsel %vm1207, %v6221, 0.0
      %6244 = vadd.xlane.f32.xlu0 %v6243
      %v6245 = vpop.xlane.xlu0 %6244
      %v6246 = vsel %vm1207, %v6222, 0.0
      %6247 = vadd.xlane.f32.xlu0 %v6246
      %v6248 = vpop.xlane.xlu0 %6247
      %v6249 = vsel %vm1207, %v6223, 0.0
      %6250 = vadd.xlane.f32.xlu0 %v6249
      %v6251 = vpop.xlane.xlu0 %6250
      %v6252 = vsel %vm1207, %v6224, 0.0
      %6253 = vadd.xlane.f32.xlu0 %v6252
      %v6254 = vpop.xlane.xlu0 %6253
      %v6255 = vsel %vm1207, %v6225, 0.0
      %6256 = vadd.xlane.f32.xlu0 %v6255
      %v6257 = vpop.xlane.xlu0 %6256
      %v6258 = vsel %vm1207, %v6226, 0.0
      %6259 = vadd.xlane.f32.xlu0 %v6258
      %v6260 = vpop.xlane.xlu0 %6259
      %v6261 = vsel %vm1207, %v6227, 0.0
      %6262 = vadd.xlane.f32.xlu0 %v6261
      %v6263 = vpop.xlane.xlu0 %6262
      %v6264 = vsel %vm1207, %v6228, 0.0
      %6265 = vadd.xlane.f32.xlu0 %v6264
      %v6266 = vpop.xlane.xlu0 %6265
      %v6267 = vsel %vm1207, %v6229, 0.0
      %6268 = vadd.xlane.f32.xlu0 %v6267
      %v6269 = vpop.xlane.xlu0 %6268
      %v6270 = vsel %vm1207, %v6230, 0.0
      %6271 = vadd.xlane.f32.xlu0 %v6270
      %v6272 = vpop.xlane.xlu0 %6271
      %v6273 = vsel %vm1207, %v6231, 0.0
      %6274 = vadd.xlane.f32.xlu0 %v6273
      %v6275 = vpop.xlane.xlu0 %6274
      %v6276 = vsel %vm1207, %v6232, 0.0
      %6277 = vadd.xlane.f32.xlu0 %v6276
      %v6278 = vpop.xlane.xlu0 %6277
      %v6279 = vsel %vm1207, %v6233, 0.0
      %6280 = vadd.xlane.f32.xlu0 %v6279
      %v6281 = vpop.xlane.xlu0 %6280
      %v6282 = vrcp.pop 64.0
      %v6283 = vmul.f32 %v6236, %v6282
      %v6284 = vmul.f32 %v6239, %v6282
      %v6285 = vmul.f32 %v6242, %v6282
      %v6286 = vmul.f32 %v6245, %v6282
      %v6287 = vmul.f32 %v6248, %v6282
      %v6288 = vmul.f32 %v6251, %v6282
      %v6289 = vmul.f32 %v6254, %v6282
      %v6290 = vmul.f32 %v6257, %v6282
      %v6291 = vmul.f32 %v6260, %v6282
      %v6292 = vmul.f32 %v6263, %v6282
      %v6293 = vmul.f32 %v6266, %v6282
      %v6294 = vmul.f32 %v6269, %v6282
      %v6295 = vmul.f32 %v6272, %v6282
      %v6296 = vmul.f32 %v6275, %v6282
      %v6297 = vmul.f32 %v6278, %v6282
      %v6298 = vmul.f32 %v6281, %v6282
      %v6299 = vadd.f32 %v6283, 1e-05
      %v6300 = vadd.f32 %v6284, 1e-05
      %v6301 = vadd.f32 %v6285, 1e-05
      %v6302 = vadd.f32 %v6286, 1e-05
      %v6303 = vadd.f32 %v6287, 1e-05
      %v6304 = vadd.f32 %v6288, 1e-05
      %v6305 = vadd.f32 %v6289, 1e-05
      %v6306 = vadd.f32 %v6290, 1e-05
      %v6307 = vadd.f32 %v6291, 1e-05
      %v6308 = vadd.f32 %v6292, 1e-05
      %v6309 = vadd.f32 %v6293, 1e-05
      %v6310 = vadd.f32 %v6294, 1e-05
      %v6311 = vadd.f32 %v6295, 1e-05
      %v6312 = vadd.f32 %v6296, 1e-05
      %v6313 = vadd.f32 %v6297, 1e-05
      %v6314 = vadd.f32 %v6298, 1e-05
      %v6315 = vrsqrt.pop %v6299
      %v6316 = vrsqrt.pop %v6300
      %v6317 = vrsqrt.pop %v6301
      %v6318 = vrsqrt.pop %v6302
      %v6319 = vrsqrt.pop %v6303
      %v6320 = vrsqrt.pop %v6304
      %v6321 = vrsqrt.pop %v6305
      %v6322 = vrsqrt.pop %v6306
      %v6323 = vrsqrt.pop %v6307
      %v6324 = vrsqrt.pop %v6308
      %v6325 = vrsqrt.pop %v6309
      %v6326 = vrsqrt.pop %v6310
      %v6327 = vrsqrt.pop %v6311
      %v6328 = vrsqrt.pop %v6312
      %v6329 = vrsqrt.pop %v6313
      %v6330 = vrsqrt.pop %v6314
      %v6331 = vmul.f32 %v6202, %v6315
      %v6332 = vmul.f32 %v6203, %v6316
      %v6333 = vmul.f32 %v6204, %v6317
      %v6334 = vmul.f32 %v6205, %v6318
      %v6335 = vmul.f32 %v6206, %v6319
      %v6336 = vmul.f32 %v6207, %v6320
      %v6337 = vmul.f32 %v6208, %v6321
      %v6338 = vmul.f32 %v6209, %v6322
      %v6339 = vmul.f32 %v6210, %v6323
      %v6340 = vmul.f32 %v6211, %v6324
      %v6341 = vmul.f32 %v6212, %v6325
      %v6342 = vmul.f32 %v6213, %v6326
      %v6343 = vmul.f32 %v6214, %v6327
      %v6344 = vmul.f32 %v6215, %v6328
      %v6345 = vmul.f32 %v6216, %v6329
      %v6346 = vmul.f32 %v6217, %v6330
      %v6347 = vld [vmem:[%s11] sm:$0x1]
      %v6349 = vlaneseq
      %v6350 = vshrl.u32 %v6349, 7
      %v6351 = vsub.s32 0, %v6350
      %v6352 = vrot.slane %v6347, %v6351
      %v6354 = vmul.f32 %v6331, %v6352
      %v6355 = vmul.f32 %v6332, %v6352
      %v6356 = vmul.f32 %v6333, %v6352
      %v6357 = vmul.f32 %v6334, %v6352
      %v6358 = vmul.f32 %v6335, %v6352
      %v6359 = vmul.f32 %v6336, %v6352
      %v6360 = vmul.f32 %v6337, %v6352
      %v6361 = vmul.f32 %v6338, %v6352
      %v6362 = vmul.f32 %v6339, %v6352
      %v6363 = vmul.f32 %v6340, %v6352
      %v6364 = vmul.f32 %v6341, %v6352
      %v6365 = vmul.f32 %v6342, %v6352
      %v6366 = vmul.f32 %v6343, %v6352
      %v6367 = vmul.f32 %v6344, %v6352
      %v6368 = vmul.f32 %v6345, %v6352
      %v6369 = vmul.f32 %v6346, %v6352
      %v6370 = vpack.c.bf16 %v6355, %v6354
      %v6371 = vpack.c.bf16 %v6357, %v6356
      %v6372 = vpack.c.bf16 %v6359, %v6358
      %v6373 = vpack.c.bf16 %v6361, %v6360
      %v6374 = vpack.c.bf16 %v6363, %v6362
      %v6375 = vpack.c.bf16 %v6365, %v6364
      %v6376 = vpack.c.bf16 %v6367, %v6366
      %v6377 = vpack.c.bf16 %v6369, %v6368
      %v6378 = vld [vmem:[%s12] sm:$0xf]
      %v6379 = vld [vmem:[%s12 + $0x4] sm:$0xf]
      %v6380 = vld [vmem:[%s12 + $0x8] sm:$0xf]
      %v6381 = vld [vmem:[%s12 + $0xc] sm:$0xf]
      %v6382 = vld [vmem:[%s12 + $0x10] sm:$0xf]
      %v6383 = vld [vmem:[%s12 + $0x14] sm:$0xf]
      %v6384 = vld [vmem:[%s12 + $0x18] sm:$0xf]
      %v6385 = vld [vmem:[%s12 + $0x1c] sm:$0xf]
      %v6394 = vunpack.c.l.b16 %v6378
      %v6395 = vunpack.c.l.b16 %v6379
      %v6396 = vunpack.c.l.b16 %v6380
      %v6397 = vunpack.c.l.b16 %v6381
      %v6398 = vunpack.c.l.b16 %v6382
      %v6399 = vunpack.c.l.b16 %v6383
      %v6400 = vunpack.c.l.b16 %v6384
      %v6401 = vunpack.c.l.b16 %v6385
      %v6402 = vpack.c.b16 %v6395, %v6394
      %v6403 = vpack.c.b16 %v6397, %v6396
      %v6404 = vpack.c.b16 %v6399, %v6398
      %v6405 = vpack.c.b16 %v6401, %v6400
      %v6411 = vsel %vm1207, %v6370, 0
      %v6414 = vsel %vm1207, %v6371, 0
      %v6417 = vsel %vm1207, %v6372, 0
      %v6420 = vsel %vm1207, %v6373, 0
      %v6423 = vsel %vm1207, %v6374, 0
      %v6426 = vsel %vm1207, %v6375, 0
      %v6429 = vsel %vm1207, %v6376, 0
      %v6432 = vsel %vm1207, %v6377, 0
      %6434 = vmatprep.subr.bf16.mxu0 0
      %6435 = vmatpush1.bf16.msra.mxu0 0
      %6436 = vmatprep.subr.bf16.mxu0 0
      %6437 = vmatpush1.bf16.msra.mxu0 0
      %6438 = vmatprep.subr.bf16.mxu0 0
      %6439 = vmatpush1.bf16.msra.mxu0 0
      %6440 = vmatprep.subr.bf16.mxu0 0
      %6441 = vmatpush1.bf16.msra.mxu0 0
      %6442 = vmatprep.subr.bf16.mxu0 0
      %6443 = vmatpush1.bf16.msra.mxu0 %v6405
      %6444 = vmatprep.subr.bf16.mxu0 0
      %6445 = vmatpush1.bf16.msra.mxu0 %v6404
      %6446 = vmatprep.subr.bf16.mxu0 0
      %6447 = vmatpush1.bf16.msra.mxu0 %v6403
      %6448 = vmatprep.subr.bf16.mxu0 0
      %6449 = vmatpush1.bf16.msra.mxu0 %v6402
      %6450 = vmatprep.subr.bf16.mxu0 0
      %6451 = vmatpush2.bf16.msra.mxu0 0
      %6452 = vmatprep.subr.bf16.mxu0 0
      %6453 = vmatpush2.bf16.msra.mxu0 0
      %6454 = vmatprep.subr.bf16.mxu0 0
      %6455 = vmatpush2.bf16.msra.mxu0 0
      %6456 = vmatprep.subr.bf16.mxu0 0
      %6457 = vmatpush2.bf16.msra.mxu0 0
      %6458 = vmatprep.subr.bf16.mxu0 0
      %6459 = vmatpush2.bf16.msra.mxu0 0
      %6460 = vmatprep.subr.bf16.mxu0 0
      %6461 = vmatpush2.bf16.msra.mxu0 0
      %6462 = vmatprep.subr.bf16.mxu0 0
      %6463 = vmatpush2.bf16.msra.mxu0 0
      %6464 = vmatprep.subr.bf16.mxu0 0
      %6465 = vmatpush2.bf16.msra.mxu0 0
      %6466 = vmatprep.mubr.bf16.mxu0 0
      %6467 = vmatmul.mubr.bf16.gmra.mxu0 %v6411
      %v6468 = vpop.f32.mrf.mxu0
      %v6469 = vadd.f32 0.0, %v6468
      %v6470 = vpop.f32.mrf.mxu0
      %v6471 = vpop.f32.mrf.mxu0
      %v6472 = vadd.f32 0.0, %v6471
      %v6473 = vpop.f32.mrf.mxu0
      %6474 = vmatprep.mubr.bf16.mxu0 0
      %6475 = vmatmul.mubr.bf16.gmra.mxu0 %v6414
      %v6476 = vpop.f32.mrf.mxu0
      %v6477 = vadd.f32 0.0, %v6476
      %v6478 = vpop.f32.mrf.mxu0
      %v6479 = vpop.f32.mrf.mxu0
      %v6480 = vadd.f32 0.0, %v6479
      %v6481 = vpop.f32.mrf.mxu0
      %6482 = vmatprep.mubr.bf16.mxu0 0
      %6483 = vmatmul.mubr.bf16.gmra.mxu0 %v6417
      %v6484 = vpop.f32.mrf.mxu0
      %v6485 = vadd.f32 0.0, %v6484
      %v6486 = vpop.f32.mrf.mxu0
      %v6487 = vpop.f32.mrf.mxu0
      %v6488 = vadd.f32 0.0, %v6487
      %v6489 = vpop.f32.mrf.mxu0
      %6490 = vmatprep.mubr.bf16.mxu0 0
      %6491 = vmatmul.mubr.bf16.gmra.mxu0 %v6420
      %v6492 = vpop.f32.mrf.mxu0
      %v6493 = vadd.f32 0.0, %v6492
      %v6494 = vpop.f32.mrf.mxu0
      %v6495 = vpop.f32.mrf.mxu0
      %v6496 = vadd.f32 0.0, %v6495
      %v6497 = vpop.f32.mrf.mxu0
      %6498 = vmatprep.mubr.bf16.mxu0 0
      %6499 = vmatmul.mubr.bf16.gmra.mxu0 %v6423
      %v6500 = vpop.f32.mrf.mxu0
      %v6501 = vadd.f32 0.0, %v6500
      %v6502 = vpop.f32.mrf.mxu0
      %v6503 = vpop.f32.mrf.mxu0
      %v6504 = vadd.f32 0.0, %v6503
      %v6505 = vpop.f32.mrf.mxu0
      %6506 = vmatprep.mubr.bf16.mxu0 0
      %6507 = vmatmul.mubr.bf16.gmra.mxu0 %v6426
      %v6508 = vpop.f32.mrf.mxu0
      %v6509 = vadd.f32 0.0, %v6508
      %v6510 = vpop.f32.mrf.mxu0
      %v6511 = vpop.f32.mrf.mxu0
      %v6512 = vadd.f32 0.0, %v6511
      %v6513 = vpop.f32.mrf.mxu0
      %6514 = vmatprep.mubr.bf16.mxu0 0
      %6515 = vmatmul.mubr.bf16.gmra.mxu0 %v6429
      %v6516 = vpop.f32.mrf.mxu0
      %v6517 = vadd.f32 0.0, %v6516
      %v6518 = vpop.f32.mrf.mxu0
      %v6519 = vpop.f32.mrf.mxu0
      %v6520 = vadd.f32 0.0, %v6519
      %v6521 = vpop.f32.mrf.mxu0
      %6522 = vmatprep.mubr.bf16.mxu0 0
      %6523 = vmatmul.mubr.bf16.gmra.mxu0 %v6432
      %v6524 = vpop.f32.mrf.mxu0
      %v6525 = vadd.f32 0.0, %v6524
      %v6526 = vpop.f32.mrf.mxu0
      %v6527 = vpop.f32.mrf.mxu0
      %v6528 = vadd.f32 0.0, %v6527
      %v6529 = vpop.f32.mrf.mxu0
      %6530 = vdwg.mxu0
      %6531 = vst.msk [vmem:[%s442] sm:$0xff] %vm495, %v6469
      %6532 = vst.msk [vmem:[%s442 + $0x8] sm:$0xff] %vm495, %v6472
      %6533 = vst.msk [vmem:[%s442 + $0x10] sm:$0xff] %vm495, %v6477
      %6534 = vst.msk [vmem:[%s442 + $0x18] sm:$0xff] %vm495, %v6480
      %6535 = vst.msk [vmem:[%s442 + $0x20] sm:$0xff] %vm495, %v6485
      %6536 = vst.msk [vmem:[%s442 + $0x28] sm:$0xff] %vm495, %v6488
      %6537 = vst.msk [vmem:[%s442 + $0x30] sm:$0xff] %vm495, %v6493
      %6538 = vst.msk [vmem:[%s442 + $0x38] sm:$0xff] %vm495, %v6496
      %6539 = vst.msk [vmem:[%s442 + $0x40] sm:$0xff] %vm495, %v6501
      %6540 = vst.msk [vmem:[%s442 + $0x48] sm:$0xff] %vm495, %v6504
      %6541 = vst.msk [vmem:[%s442 + $0x50] sm:$0xff] %vm495, %v6509
      %6542 = vst.msk [vmem:[%s442 + $0x58] sm:$0xff] %vm495, %v6512
      %6543 = vst.msk [vmem:[%s442 + $0x60] sm:$0xff] %vm495, %v6517
      %6544 = vst.msk [vmem:[%s442 + $0x68] sm:$0xff] %vm495, %v6520
      %6545 = vst.msk [vmem:[%s442 + $0x70] sm:$0xff] %vm495, %v6525
      %6546 = vst.msk [vmem:[%s442 + $0x78] sm:$0xff] %vm495, %v6528
      %s6547 = smul.u32 16, %s24
      %p6548 = scmp.lt.s32.totalorder %s6547, 31
      %s6549 = scalar_select %p6548, %s6547, 31
      %s6550 = smul.addr %s6549, 8
      %s6551 = scalar_lea.vmem %s13, %s6550
      // Predicated region
      $region77: #{falcon_h1_ssm_decoder_layer.1} parent=71 // pred_check
        %p6552 = pneg %p320
      $region78: #{falcon_h1_ssm_decoder_layer.1} parent=71 // pred_check_branch
        %6554 = sbr.rel (%p6552) target = $region80
      $region79: #{falcon_h1_ssm_decoder_layer.1} parent=71 // pred_region
        %s6555 = smul.u32 16, %s24
      $region80: #{falcon_h1_ssm_decoder_layer.1} parent=71 // pred_fallthru
        _
    $region72: #{falcon_h1_ssm_decoder_layer.1} parent=5 // pred_fallthru
      _
    %p6556 = scmp.le.s32.totalorder 2, %s19
    // Predicated region
    $region81: #{falcon_h1_ssm_decoder_layer.1} parent=5 // pred_check
      %p6557 = pneg %p6556
    $region82: #{falcon_h1_ssm_decoder_layer.1} parent=5 // pred_check_branch
      %6559 = sbr.rel (%p6557) target = $region84
    $region83: #{falcon_h1_ssm_decoder_layer.1} parent=5 // pred_region
      %s6560 = ssub.s32 %s19, 2
      // Predicated region
      $region85: #{falcon_h1_ssm_decoder_layer.1} parent=83 // pred_check
        %p6561 = pneg %p326
      $region86: #{falcon_h1_ssm_decoder_layer.1} parent=83 // pred_check_branch
        %6563 = sbr.rel (%p6561) target = $region88
      $region87: #{falcon_h1_ssm_decoder_layer.1} parent=83 // pred_region
        %s6564 = smul.u32 16, %s25
        %p6565 = scmp.lt.s32.totalorder %s6564, 31
        %s6566 = scalar_select %p6565, %s6564, 31
        %s6567 = smul.addr %s6566, 8
        %s6568 = scalar_lea.vmem %s13, %s6567
      $region88: #{falcon_h1_ssm_decoder_layer.1} parent=83 // pred_fallthru
        _
    $region84: #{falcon_h1_ssm_decoder_layer.1} parent=5 // pred_fallthru
      _
  $region6: #{falcon_h1_ssm_decoder_layer.1} parent=0 // loop_footer
    %s23 = sadd.s32 1, %s19
  $region7: #{falcon_h1_ssm_decoder_layer.1} parent=0 // loop_footer_branch
    %18 = sbr.rel target = $region3
  $region8: #{falcon_h1_ssm_decoder_layer.1} parent=0 // loop_exit
    _

</llo_original>
